<compile_context>
chip_gen: v7x
topology: tpu7x:2x2x1
jax: 0.10.0
libtpu: 0.0.40
codegen_flags: <defaults>
</compile_context>

<pallas_src>
import math
import functools

import jax
import jax.numpy as jnp
from jax.experimental import pallas as pl
from jax.experimental.pallas import tpu as pltpu


# ---------------------------------------------------------------------------
# Fused decoder-layer kernel: one grid step == one batch element.
# ---------------------------------------------------------------------------

def _decoder_layer_kernel(
    x_ref, enc_ref, tbias_ref, sbias_ref,
    ln_g_ref, ln_b_ref,
    wqkv_s_ref, bqkv_s_ref, wo_s_ref, bo_s_ref,
    wq_e_ref, bq_e_ref, wkv_e_ref, bkv_e_ref, wo_e_ref, bo_e_ref,
    w1_ref, b1_ref, w2_ref, b2_ref,
    o_ref,
    *, n_heads, eps):
    f32 = jnp.float32
    x = x_ref[0].astype(f32)          # (Tq, D)
    enc = enc_ref[0].astype(f32)      # (Tk, D)
    tbias = tbias_ref[0]              # (Tq, Tq) additive mask bias
    sbias = sbias_ref[0]              # (Tq, Tk) additive mask bias
    D = x.shape[-1]
    dk = D // n_heads
    scale = 1.0 / math.sqrt(dk)

    def layer_norm(v, idx):
        # torch LayerNorm-from-spec: unbiased std, eps added to std (outside sqrt).
        mean = jnp.mean(v, axis=-1, keepdims=True)
        vc = v - mean
        var = jnp.sum(vc * vc, axis=-1, keepdims=True) / (v.shape[-1] - 1)
        inv = 1.0 / (jnp.sqrt(var) + eps)
        return ln_g_ref[idx] * (vc * inv) + ln_b_ref[idx]

    def mha_out_proj(q_all, k_all, v_all, bias, wo_ref, bo_ref):
        # Per-head attention with static dk-column slices; the output projection is
        # accumulated per head so the result is a lane-dense (Tq, D) slab
        # (no concat, no transposes, no sub-128 stores).
        acc = jnp.zeros((q_all.shape[0], D), f32)
        for h in range(n_heads):
            lo, hi = h * dk, (h + 1) * dk
            qh = q_all[:, lo:hi]                                   # (Tq, dk)
            kh = k_all[:, lo:hi]                                   # (Tk, dk)
            vh = v_all[:, lo:hi]                                   # (Tk, dk)
            s = jax.lax.dot_general(qh, kh, (((1,), (1,)), ((), ())),
                                    preferred_element_type=f32) * scale + bias
            s = s - jnp.max(s, axis=-1, keepdims=True)
            p = jnp.exp(s)
            p = p * pl.reciprocal(jnp.sum(p, axis=-1, keepdims=True), approx=True)
            ctx_h = jnp.dot(p, vh, preferred_element_type=f32)     # (Tq, dk)
            acc = acc + jnp.dot(ctx_h, wo_ref[lo:hi, :], preferred_element_type=f32)
        return acc + bo_ref[...]

    # ---- sublayer 0: masked self-attention (residual fused) -----------------
    h = layer_norm(x, 0)
    qkv = jnp.dot(h, wqkv_s_ref[...], preferred_element_type=f32) + bqkv_s_ref[...]
    x = x + mha_out_proj(qkv[:, 0:D], qkv[:, D:2 * D], qkv[:, 2 * D:3 * D],
                         tbias, wo_s_ref, bo_s_ref)

    # ---- sublayer 1: encoder-decoder attention ------------------------------
    h = layer_norm(x, 1)
    q = jnp.dot(h, wq_e_ref[...], preferred_element_type=f32) + bq_e_ref[...]
    kv = jnp.dot(enc, wkv_e_ref[...], preferred_element_type=f32) + bkv_e_ref[...]
    x = x + mha_out_proj(q, kv[:, 0:D], kv[:, D:2 * D], sbias, wo_e_ref, bo_e_ref)

    # ---- sublayer 2: position-wise feed-forward ------------------------------
    h = layer_norm(x, 2)
    f = jnp.maximum(jnp.dot(h, w1_ref[...], preferred_element_type=f32) + b1_ref[...], 0.0)
    x = x + jnp.dot(f, w2_ref[...], preferred_element_type=f32) + b2_ref[...]

    o_ref[0] = x.astype(o_ref.dtype)


# ---------------------------------------------------------------------------
# Wrapper: fold weights, build additive mask biases, launch the fused kernel.
# ---------------------------------------------------------------------------

def decoder_layer_forward(inputs, encoder_output, source_mask, target_mask,
                          params, *, n_heads, eps=1e-6):
    B, Tq, D = inputs.shape
    Tk = encoder_output.shape[1]
    d_ff = params["ff_w1"].shape[1]
    dtype = inputs.dtype

    sa, ea = params["self_attn"], params["enc_attn"]
    # Fused projection weights (concatenated once outside the kernel).
    wqkv_s = jnp.concatenate([sa["wq"], sa["wk"], sa["wv"]], axis=1)          # (D, 3D)
    bqkv_s = jnp.concatenate([sa["bq"], sa["bk"], sa["bv"]]).reshape(1, 3 * D)
    wkv_e = jnp.concatenate([ea["wk"], ea["wv"]], axis=1)                     # (D, 2D)
    bkv_e = jnp.concatenate([ea["bk"], ea["bv"]]).reshape(1, 2 * D)

    ln_g = jnp.stack([params["ln0_a"], params["ln1_a"], params["ln2_a"]]).reshape(3, 1, D)
    ln_b = jnp.stack([params["ln0_b"], params["ln1_b"], params["ln2_b"]]).reshape(3, 1, D)

    # Additive mask biases: 0 where attended, -1e9 where masked.
    tbias = jnp.where(target_mask != 0, 0.0, -1e9).astype(jnp.float32)        # (B, Tq, Tq)
    sbias = jnp.where(source_mask != 0, 0.0, -1e9).astype(jnp.float32)        # (B, Tq, Tk)

    def resident(shape):  # full-array block, constant index map -> stays in VMEM
        return pl.BlockSpec(shape, lambda b, _s=shape: (0,) * len(_s))

    grid_spec = pltpu.PrefetchScalarGridSpec(
        num_scalar_prefetch=0,
        grid=(B,),
        in_specs=[
            pl.BlockSpec((1, Tq, D), lambda b: (b, 0, 0)),      # inputs
            pl.BlockSpec((1, Tk, D), lambda b: (b, 0, 0)),      # encoder output
            pl.BlockSpec((1, Tq, Tq), lambda b: (b, 0, 0)),     # target mask bias
            pl.BlockSpec((1, Tq, Tk), lambda b: (b, 0, 0)),     # source mask bias
            resident((3, 1, D)), resident((3, 1, D)),           # LN gamma / beta (stacked)
            resident((D, 3 * D)), resident((1, 3 * D)),         # fused self QKV
            resident((D, D)), resident((1, D)),                 # self out proj
            resident((D, D)), resident((1, D)),                 # enc-attn Q proj
            resident((D, 2 * D)), resident((1, 2 * D)),         # fused enc KV
            resident((D, D)), resident((1, D)),                 # enc out proj
            resident((D, d_ff)), resident((1, d_ff)),           # FF layer 1
            resident((d_ff, D)), resident((1, D)),              # FF layer 2
        ],
        out_specs=pl.BlockSpec((1, Tq, D), lambda b: (b, 0, 0)),
    )

    out = pl.pallas_call(
        functools.partial(_decoder_layer_kernel, n_heads=n_heads, eps=eps),
        out_shape=jax.ShapeDtypeStruct((B, Tq, D), dtype),
        grid_spec=grid_spec,
        compiler_params=pltpu.CompilerParams(
            dimension_semantics=("parallel",),     # B grid steps -> both TCs on v7x
            vmem_limit_bytes=32 * 1024 * 1024,
        ),
    )(
        inputs, encoder_output, tbias, sbias,
        ln_g, ln_b,
        wqkv_s, bqkv_s, sa["wo"], sa["bo"].reshape(1, D),
        ea["wq"], ea["bq"].reshape(1, D), wkv_e, bkv_e, ea["wo"], ea["bo"].reshape(1, D),
        params["ff_w1"], params["ff_b1"].reshape(1, d_ff),
        params["ff_w2"], params["ff_b2"].reshape(1, D),
    )
    return out


# ---------------------------------------------------------------------------
# Pure-JAX reference (same math) for correctness checking
# ---------------------------------------------------------------------------

def _ref_layernorm(x, g, b, eps):
    mean = x.mean(-1, keepdims=True)
    std = jnp.std(x, axis=-1, keepdims=True, ddof=1)
    return g * (x - mean) / (std + eps) + b


def _ref_mha(q_in, k_in, v_in, mask, p, n_heads):
    B, Tq, D = q_in.shape
    Tk = k_in.shape[1]
    dk = D // n_heads
    q = (q_in @ p["wq"] + p["bq"]).reshape(B, Tq, n_heads, dk).transpose(0, 2, 1, 3)
    k = (k_in @ p["wk"] + p["bk"]).reshape(B, Tk, n_heads, dk).transpose(0, 2, 1, 3)
    v = (v_in @ p["wv"] + p["bv"]).reshape(B, Tk, n_heads, dk).transpose(0, 2, 1, 3)
    s = jnp.einsum("bhqd,bhkd->bhqk", q, k) / math.sqrt(dk)
    s = jnp.where(mask[:, None, :, :] != 0, s, -1e9)
    a = jax.nn.softmax(s, axis=-1)
    ctx = jnp.einsum("bhqk,bhkd->bhqd", a, v).transpose(0, 2, 1, 3).reshape(B, Tq, D)
    return ctx @ p["wo"] + p["bo"]


def _ref_decoder_layer(inputs, enc_out, src_mask, tgt_mask, params, n_heads, eps=1e-6):
    h = _ref_layernorm(inputs, params["ln0_a"], params["ln0_b"], eps)
    x = inputs + _ref_mha(h, h, h, tgt_mask, params["self_attn"], n_heads)
    h = _ref_layernorm(x, params["ln1_a"], params["ln1_b"], eps)
    x = x + _ref_mha(h, enc_out, enc_out, src_mask, params["enc_attn"], n_heads)
    h = _ref_layernorm(x, params["ln2_a"], params["ln2_b"], eps)
    f = jnp.maximum(h @ params["ff_w1"] + params["ff_b1"], 0.0)
    return x + f @ params["ff_w2"] + params["ff_b2"]


# ---------------------------------------------------------------------------
# main
# ---------------------------------------------------------------------------

if __name__ == "__main__":
    d_model, n_heads, d_ff = 128, 4, 256
    batch, tgt_len, src_len = 2, 8, 16
    eps = 1e-6
    # dropout_rate = 0.0  -> dropout is identity (eval semantics)

    key = jax.random.PRNGKey(0)
    keys = iter(jax.random.split(key, 24))

    def w(shape, scale=0.05):
        return jax.random.normal(next(keys), shape, dtype=jnp.float32) * scale

    def attn_params():
        return dict(
            wq=w((d_model, d_model)), bq=w((d_model,)),
            wk=w((d_model, d_model)), bk=w((d_model,)),
            wv=w((d_model, d_model)), bv=w((d_model,)),
            wo=w((d_model, d_model)), bo=w((d_model,)),
        )

    params = dict(
        ln0_a=jnp.ones((d_model,), jnp.float32), ln0_b=jnp.zeros((d_model,), jnp.float32),
        ln1_a=jnp.ones((d_model,), jnp.float32), ln1_b=jnp.zeros((d_model,), jnp.float32),
        ln2_a=jnp.ones((d_model,), jnp.float32), ln2_b=jnp.zeros((d_model,), jnp.float32),
        self_attn=attn_params(),
        enc_attn=attn_params(),
        ff_w1=w((d_model, d_ff)), ff_b1=w((d_ff,)),
        ff_w2=w((d_ff, d_model)), ff_b2=w((d_model,)),
    )

    inputs = jax.random.normal(next(keys), (batch, tgt_len, d_model), dtype=jnp.float32)
    encoder_output = jax.random.normal(next(keys), (batch, src_len, d_model), dtype=jnp.float32)

    # causal target mask; all-ones source mask (no padding)
    causal = jnp.tril(jnp.ones((tgt_len, tgt_len), jnp.int32))
    target_mask = jnp.broadcast_to(causal[None], (batch, tgt_len, tgt_len)).astype(jnp.int32)
    source_mask = jnp.ones((batch, tgt_len, src_len), jnp.int32)

    out = decoder_layer_forward(inputs, encoder_output, source_mask, target_mask,
                                params, n_heads=n_heads, eps=eps)
    out = jax.block_until_ready(out)

    ref = _ref_decoder_layer(inputs, encoder_output, source_mask, target_mask,
                             params, n_heads, eps)
    assert out.shape == (batch, tgt_len, d_model)
    max_err = float(jnp.max(jnp.abs(out - ref)))
    assert jnp.allclose(out, ref, atol=2e-3, rtol=2e-3), f"max abs err {max_err}"

    print("KERNEL_OK")
</pallas_src>

<mosaic_0001>
module attributes {stable_mosaic.version = 11 : i64} {
  func.func @_decoder_layer_kernel(%arg0: i32, %arg1: memref<1x8x128xf32, #tpu.memory_space<vmem>>, %arg2: memref<1x16x128xf32, #tpu.memory_space<vmem>>, %arg3: memref<1x8x8xf32, #tpu.memory_space<vmem>>, %arg4: memref<1x8x16xf32, #tpu.memory_space<vmem>>, %arg5: memref<3x1x128xf32, #tpu.memory_space<vmem>>, %arg6: memref<3x1x128xf32, #tpu.memory_space<vmem>>, %arg7: memref<128x384xf32, #tpu.memory_space<vmem>>, %arg8: memref<1x384xf32, #tpu.memory_space<vmem>>, %arg9: memref<128x128xf32, #tpu.memory_space<vmem>>, %arg10: memref<1x128xf32, #tpu.memory_space<vmem>>, %arg11: memref<128x128xf32, #tpu.memory_space<vmem>>, %arg12: memref<1x128xf32, #tpu.memory_space<vmem>>, %arg13: memref<128x256xf32, #tpu.memory_space<vmem>>, %arg14: memref<1x256xf32, #tpu.memory_space<vmem>>, %arg15: memref<128x128xf32, #tpu.memory_space<vmem>>, %arg16: memref<1x128xf32, #tpu.memory_space<vmem>>, %arg17: memref<128x256xf32, #tpu.memory_space<vmem>>, %arg18: memref<1x256xf32, #tpu.memory_space<vmem>>, %arg19: memref<256x128xf32, #tpu.memory_space<vmem>>, %arg20: memref<1x128xf32, #tpu.memory_space<vmem>>, %arg21: memref<1x8x128xf32, #tpu.memory_space<vmem>>) attributes {dimension_semantics = [#tpu.dimension_semantics<parallel>], iteration_bounds = array<i64: 2>, scalar_prefetch = 0 : i64, scratch_operands = 0 : i64, tpu.core_type = #tpu.core_type<tc>, window_params = [{transform_indices = @transform_0, window_bounds = array<i64: 1, 8, 128>}, {transform_indices = @transform_1, window_bounds = array<i64: 1, 16, 128>}, {transform_indices = @transform_2, window_bounds = array<i64: 1, 8, 8>}, {transform_indices = @transform_3, window_bounds = array<i64: 1, 8, 16>}, {pipeline_mode = #tpu.pipeline_mode<synchronous>, transform_indices = @transform_4, window_bounds = array<i64: 3, 1, 128>}, {pipeline_mode = #tpu.pipeline_mode<synchronous>, transform_indices = @transform_5, window_bounds = array<i64: 3, 1, 128>}, {pipeline_mode = #tpu.pipeline_mode<synchronous>, transform_indices = @transform_6, window_bounds = array<i64: 128, 384>}, {pipeline_mode = #tpu.pipeline_mode<synchronous>, transform_indices = @transform_7, window_bounds = array<i64: 1, 384>}, {pipeline_mode = #tpu.pipeline_mode<synchronous>, transform_indices = @transform_8, window_bounds = array<i64: 128, 128>}, {pipeline_mode = #tpu.pipeline_mode<synchronous>, transform_indices = @transform_9, window_bounds = array<i64: 1, 128>}, {pipeline_mode = #tpu.pipeline_mode<synchronous>, transform_indices = @transform_10, window_bounds = array<i64: 128, 128>}, {pipeline_mode = #tpu.pipeline_mode<synchronous>, transform_indices = @transform_11, window_bounds = array<i64: 1, 128>}, {pipeline_mode = #tpu.pipeline_mode<synchronous>, transform_indices = @transform_12, window_bounds = array<i64: 128, 256>}, {pipeline_mode = #tpu.pipeline_mode<synchronous>, transform_indices = @transform_13, window_bounds = array<i64: 1, 256>}, {pipeline_mode = #tpu.pipeline_mode<synchronous>, transform_indices = @transform_14, window_bounds = array<i64: 128, 128>}, {pipeline_mode = #tpu.pipeline_mode<synchronous>, transform_indices = @transform_15, window_bounds = array<i64: 1, 128>}, {pipeline_mode = #tpu.pipeline_mode<synchronous>, transform_indices = @transform_16, window_bounds = array<i64: 128, 256>}, {pipeline_mode = #tpu.pipeline_mode<synchronous>, transform_indices = @transform_17, window_bounds = array<i64: 1, 256>}, {pipeline_mode = #tpu.pipeline_mode<synchronous>, transform_indices = @transform_18, window_bounds = array<i64: 256, 128>}, {pipeline_mode = #tpu.pipeline_mode<synchronous>, transform_indices = @transform_19, window_bounds = array<i64: 1, 128>}, {transform_indices = @transform_20, window_bounds = array<i64: 1, 8, 128>}]} {
    %c0 = arith.constant 0 : index
    %c0_0 = arith.constant 0 : index
    %c0_1 = arith.constant 0 : index
    %0 = vector.load %arg1[%c0, %c0_0, %c0_1] : memref<1x8x128xf32, #tpu.memory_space<vmem>>, vector<1x8x128xf32>
    %1 = vector.shape_cast %0 : vector<1x8x128xf32> to vector<8x128xf32>
    %c0_2 = arith.constant 0 : index
    %c0_3 = arith.constant 0 : index
    %c0_4 = arith.constant 0 : index
    %2 = vector.load %arg2[%c0_2, %c0_3, %c0_4] : memref<1x16x128xf32, #tpu.memory_space<vmem>>, vector<1x16x128xf32>
    %3 = vector.shape_cast %2 : vector<1x16x128xf32> to vector<16x128xf32>
    %c0_5 = arith.constant 0 : index
    %c0_6 = arith.constant 0 : index
    %c0_7 = arith.constant 0 : index
    %4 = vector.load %arg3[%c0_5, %c0_6, %c0_7] : memref<1x8x8xf32, #tpu.memory_space<vmem>>, vector<1x8x8xf32>
    %5 = vector.shape_cast %4 : vector<1x8x8xf32> to vector<8x8xf32>
    %c0_8 = arith.constant 0 : index
    %c0_9 = arith.constant 0 : index
    %c0_10 = arith.constant 0 : index
    %6 = vector.load %arg4[%c0_8, %c0_9, %c0_10] : memref<1x8x16xf32, #tpu.memory_space<vmem>>, vector<1x8x16xf32>
    %7 = vector.shape_cast %6 : vector<1x8x16xf32> to vector<8x16xf32>
    %cst = arith.constant dense<0.000000e+00> : vector<8xf32>
    %8 = vector.multi_reduction <add>, %1, %cst [1] : vector<8x128xf32> to vector<8xf32>
    %9 = vector.shape_cast %8 : vector<8xf32> to vector<8x1xf32>
    %cst_11 = arith.constant 1.280000e+02 : f32
    %10 = vector.broadcast %cst_11 : f32 to vector<8x1xf32>
    %11 = arith.divf %9, %10 : vector<8x1xf32>
    %12 = vector.broadcast %11 : vector<8x1xf32> to vector<8x128xf32>
    %13 = arith.subf %1, %12 : vector<8x128xf32>
    %14 = arith.mulf %13, %13 : vector<8x128xf32>
    %cst_12 = arith.constant dense<0.000000e+00> : vector<8xf32>
    %15 = vector.multi_reduction <add>, %14, %cst_12 [1] : vector<8x128xf32> to vector<8xf32>
    %16 = vector.shape_cast %15 : vector<8xf32> to vector<8x1xf32>
    %cst_13 = arith.constant 1.270000e+02 : f32
    %17 = vector.broadcast %cst_13 : f32 to vector<8x1xf32>
    %18 = arith.divf %16, %17 : vector<8x1xf32>
    %19 = math.sqrt %18 : vector<8x1xf32>
    %cst_14 = arith.constant 9.99999997E-7 : f32
    %20 = vector.broadcast %cst_14 : f32 to vector<8x1xf32>
    %21 = arith.addf %19, %20 : vector<8x1xf32>
    %cst_15 = arith.constant 1.000000e+00 : f32
    %22 = vector.broadcast %cst_15 : f32 to vector<8x1xf32>
    %23 = arith.divf %22, %21 : vector<8x1xf32>
    %c0_16 = arith.constant 0 : index
    %c0_17 = arith.constant 0 : index
    %c0_18 = arith.constant 0 : index
    %24 = vector.load %arg5[%c0_16, %c0_17, %c0_18] : memref<3x1x128xf32, #tpu.memory_space<vmem>>, vector<1x1x128xf32>
    %25 = vector.shape_cast %24 : vector<1x1x128xf32> to vector<1x128xf32>
    %26 = vector.broadcast %23 : vector<8x1xf32> to vector<8x128xf32>
    %27 = arith.mulf %13, %26 : vector<8x128xf32>
    %28 = vector.broadcast %25 : vector<1x128xf32> to vector<8x128xf32>
    %29 = arith.mulf %28, %27 : vector<8x128xf32>
    %c0_19 = arith.constant 0 : index
    %c0_20 = arith.constant 0 : index
    %c0_21 = arith.constant 0 : index
    %30 = vector.load %arg6[%c0_19, %c0_20, %c0_21] : memref<3x1x128xf32, #tpu.memory_space<vmem>>, vector<1x1x128xf32>
    %31 = vector.shape_cast %30 : vector<1x1x128xf32> to vector<1x128xf32>
    %32 = vector.broadcast %31 : vector<1x128xf32> to vector<8x128xf32>
    %33 = arith.addf %29, %32 : vector<8x128xf32>
    %c0_22 = arith.constant 0 : index
    %c0_23 = arith.constant 0 : index
    %34 = vector.load %arg7[%c0_22, %c0_23] : memref<128x384xf32, #tpu.memory_space<vmem>>, vector<128x384xf32>
    %cst_24 = arith.constant dense<0.000000e+00> : vector<8x384xf32>
    %35 = tpu.matmul %33, %34, %cst_24 {dimension_numbers = #tpu.dot_dimension_numbers<[1], [0], [0], [1], [0, 0, 1, 1], [], []>} : vector<8x128xf32>, vector<128x384xf32>, vector<8x384xf32> -> vector<8x384xf32>
    %c0_25 = arith.constant 0 : index
    %c0_26 = arith.constant 0 : index
    %36 = vector.load %arg8[%c0_25, %c0_26] : memref<1x384xf32, #tpu.memory_space<vmem>>, vector<1x384xf32>
    %37 = vector.broadcast %36 : vector<1x384xf32> to vector<8x384xf32>
    %38 = arith.addf %35, %37 : vector<8x384xf32>
    %39 = vector.extract_strided_slice %38 {offsets = [0, 0], sizes = [8, 128], strides = [1, 1]} : vector<8x384xf32> to vector<8x128xf32>
    %40 = vector.extract_strided_slice %38 {offsets = [0, 128], sizes = [8, 128], strides = [1, 1]} : vector<8x384xf32> to vector<8x128xf32>
    %41 = vector.extract_strided_slice %38 {offsets = [0, 256], sizes = [8, 128], strides = [1, 1]} : vector<8x384xf32> to vector<8x128xf32>
    %cst_27 = arith.constant 0.000000e+00 : f32
    %42 = vector.broadcast %cst_27 : f32 to vector<8x128xf32>
    %43 = vector.extract_strided_slice %39 {offsets = [0, 0], sizes = [8, 32], strides = [1, 1]} : vector<8x128xf32> to vector<8x32xf32>
    %44 = vector.extract_strided_slice %40 {offsets = [0, 0], sizes = [8, 32], strides = [1, 1]} : vector<8x128xf32> to vector<8x32xf32>
    %45 = vector.extract_strided_slice %41 {offsets = [0, 0], sizes = [8, 32], strides = [1, 1]} : vector<8x128xf32> to vector<8x32xf32>
    %cst_28 = arith.constant dense<0.000000e+00> : vector<8x8xf32>
    %46 = tpu.matmul %43, %44, %cst_28 {dimension_numbers = #tpu.dot_dimension_numbers<[1], [1], [0], [0], [0, 0, 1, 0], [], []>} : vector<8x32xf32>, vector<8x32xf32>, vector<8x8xf32> -> vector<8x8xf32>
    %cst_29 = arith.constant 0.176776692 : f32
    %47 = vector.broadcast %cst_29 : f32 to vector<8x8xf32>
    %48 = arith.mulf %46, %47 : vector<8x8xf32>
    %49 = arith.addf %48, %5 : vector<8x8xf32>
    %cst_30 = arith.constant dense<0xFF800000> : vector<8xf32>
    %50 = vector.multi_reduction <maximumf>, %49, %cst_30 [1] : vector<8x8xf32> to vector<8xf32>
    %51 = vector.shape_cast %50 : vector<8xf32> to vector<8x1xf32>
    %52 = vector.broadcast %51 : vector<8x1xf32> to vector<8x8xf32>
    %53 = arith.subf %49, %52 : vector<8x8xf32>
    %54 = math.exp %53 : vector<8x8xf32>
    %cst_31 = arith.constant dense<0.000000e+00> : vector<8xf32>
    %55 = vector.multi_reduction <add>, %54, %cst_31 [1] : vector<8x8xf32> to vector<8xf32>
    %56 = vector.shape_cast %55 : vector<8xf32> to vector<8x1xf32>
    %57 = tpu.reciprocal %56 {approx = true} : vector<8x1xf32> -> vector<8x1xf32>
    %58 = vector.broadcast %57 : vector<8x1xf32> to vector<8x8xf32>
    %59 = arith.mulf %54, %58 : vector<8x8xf32>
    %cst_32 = arith.constant dense<0.000000e+00> : vector<8x32xf32>
    %60 = tpu.matmul %59, %45, %cst_32 {dimension_numbers = #tpu.dot_dimension_numbers<[1], [0], [0], [1], [0, 0, 1, 1], [], []>} : vector<8x8xf32>, vector<8x32xf32>, vector<8x32xf32> -> vector<8x32xf32>
    %c0_33 = arith.constant 0 : index
    %c0_34 = arith.constant 0 : index
    %61 = vector.load %arg9[%c0_33, %c0_34] : memref<128x128xf32, #tpu.memory_space<vmem>>, vector<32x128xf32>
    %cst_35 = arith.constant dense<0.000000e+00> : vector<8x128xf32>
    %62 = tpu.matmul %60, %61, %cst_35 {dimension_numbers = #tpu.dot_dimension_numbers<[1], [0], [0], [1], [0, 0, 1, 1], [], []>} : vector<8x32xf32>, vector<32x128xf32>, vector<8x128xf32> -> vector<8x128xf32>
    %63 = arith.addf %42, %62 : vector<8x128xf32>
    %64 = vector.extract_strided_slice %39 {offsets = [0, 32], sizes = [8, 32], strides = [1, 1]} : vector<8x128xf32> to vector<8x32xf32>
    %65 = vector.extract_strided_slice %40 {offsets = [0, 32], sizes = [8, 32], strides = [1, 1]} : vector<8x128xf32> to vector<8x32xf32>
    %66 = vector.extract_strided_slice %41 {offsets = [0, 32], sizes = [8, 32], strides = [1, 1]} : vector<8x128xf32> to vector<8x32xf32>
    %cst_36 = arith.constant dense<0.000000e+00> : vector<8x8xf32>
    %67 = tpu.matmul %64, %65, %cst_36 {dimension_numbers = #tpu.dot_dimension_numbers<[1], [1], [0], [0], [0, 0, 1, 0], [], []>} : vector<8x32xf32>, vector<8x32xf32>, vector<8x8xf32> -> vector<8x8xf32>
    %cst_37 = arith.constant 0.176776692 : f32
    %68 = vector.broadcast %cst_37 : f32 to vector<8x8xf32>
    %69 = arith.mulf %67, %68 : vector<8x8xf32>
    %70 = arith.addf %69, %5 : vector<8x8xf32>
    %cst_38 = arith.constant dense<0xFF800000> : vector<8xf32>
    %71 = vector.multi_reduction <maximumf>, %70, %cst_38 [1] : vector<8x8xf32> to vector<8xf32>
    %72 = vector.shape_cast %71 : vector<8xf32> to vector<8x1xf32>
    %73 = vector.broadcast %72 : vector<8x1xf32> to vector<8x8xf32>
    %74 = arith.subf %70, %73 : vector<8x8xf32>
    %75 = math.exp %74 : vector<8x8xf32>
    %cst_39 = arith.constant dense<0.000000e+00> : vector<8xf32>
    %76 = vector.multi_reduction <add>, %75, %cst_39 [1] : vector<8x8xf32> to vector<8xf32>
    %77 = vector.shape_cast %76 : vector<8xf32> to vector<8x1xf32>
    %78 = tpu.reciprocal %77 {approx = true} : vector<8x1xf32> -> vector<8x1xf32>
    %79 = vector.broadcast %78 : vector<8x1xf32> to vector<8x8xf32>
    %80 = arith.mulf %75, %79 : vector<8x8xf32>
    %cst_40 = arith.constant dense<0.000000e+00> : vector<8x32xf32>
    %81 = tpu.matmul %80, %66, %cst_40 {dimension_numbers = #tpu.dot_dimension_numbers<[1], [0], [0], [1], [0, 0, 1, 1], [], []>} : vector<8x8xf32>, vector<8x32xf32>, vector<8x32xf32> -> vector<8x32xf32>
    %c32 = arith.constant 32 : index
    %c0_41 = arith.constant 0 : index
    %82 = vector.load %arg9[%c32, %c0_41] : memref<128x128xf32, #tpu.memory_space<vmem>>, vector<32x128xf32>
    %cst_42 = arith.constant dense<0.000000e+00> : vector<8x128xf32>
    %83 = tpu.matmul %81, %82, %cst_42 {dimension_numbers = #tpu.dot_dimension_numbers<[1], [0], [0], [1], [0, 0, 1, 1], [], []>} : vector<8x32xf32>, vector<32x128xf32>, vector<8x128xf32> -> vector<8x128xf32>
    %84 = arith.addf %63, %83 : vector<8x128xf32>
    %85 = vector.extract_strided_slice %39 {offsets = [0, 64], sizes = [8, 32], strides = [1, 1]} : vector<8x128xf32> to vector<8x32xf32>
    %86 = vector.extract_strided_slice %40 {offsets = [0, 64], sizes = [8, 32], strides = [1, 1]} : vector<8x128xf32> to vector<8x32xf32>
    %87 = vector.extract_strided_slice %41 {offsets = [0, 64], sizes = [8, 32], strides = [1, 1]} : vector<8x128xf32> to vector<8x32xf32>
    %cst_43 = arith.constant dense<0.000000e+00> : vector<8x8xf32>
    %88 = tpu.matmul %85, %86, %cst_43 {dimension_numbers = #tpu.dot_dimension_numbers<[1], [1], [0], [0], [0, 0, 1, 0], [], []>} : vector<8x32xf32>, vector<8x32xf32>, vector<8x8xf32> -> vector<8x8xf32>
    %cst_44 = arith.constant 0.176776692 : f32
    %89 = vector.broadcast %cst_44 : f32 to vector<8x8xf32>
    %90 = arith.mulf %88, %89 : vector<8x8xf32>
    %91 = arith.addf %90, %5 : vector<8x8xf32>
    %cst_45 = arith.constant dense<0xFF800000> : vector<8xf32>
    %92 = vector.multi_reduction <maximumf>, %91, %cst_45 [1] : vector<8x8xf32> to vector<8xf32>
    %93 = vector.shape_cast %92 : vector<8xf32> to vector<8x1xf32>
    %94 = vector.broadcast %93 : vector<8x1xf32> to vector<8x8xf32>
    %95 = arith.subf %91, %94 : vector<8x8xf32>
    %96 = math.exp %95 : vector<8x8xf32>
    %cst_46 = arith.constant dense<0.000000e+00> : vector<8xf32>
    %97 = vector.multi_reduction <add>, %96, %cst_46 [1] : vector<8x8xf32> to vector<8xf32>
    %98 = vector.shape_cast %97 : vector<8xf32> to vector<8x1xf32>
    %99 = tpu.reciprocal %98 {approx = true} : vector<8x1xf32> -> vector<8x1xf32>
    %100 = vector.broadcast %99 : vector<8x1xf32> to vector<8x8xf32>
    %101 = arith.mulf %96, %100 : vector<8x8xf32>
    %cst_47 = arith.constant dense<0.000000e+00> : vector<8x32xf32>
    %102 = tpu.matmul %101, %87, %cst_47 {dimension_numbers = #tpu.dot_dimension_numbers<[1], [0], [0], [1], [0, 0, 1, 1], [], []>} : vector<8x8xf32>, vector<8x32xf32>, vector<8x32xf32> -> vector<8x32xf32>
    %c64 = arith.constant 64 : index
    %c0_48 = arith.constant 0 : index
    %103 = vector.load %arg9[%c64, %c0_48] : memref<128x128xf32, #tpu.memory_space<vmem>>, vector<32x128xf32>
    %cst_49 = arith.constant dense<0.000000e+00> : vector<8x128xf32>
    %104 = tpu.matmul %102, %103, %cst_49 {dimension_numbers = #tpu.dot_dimension_numbers<[1], [0], [0], [1], [0, 0, 1, 1], [], []>} : vector<8x32xf32>, vector<32x128xf32>, vector<8x128xf32> -> vector<8x128xf32>
    %105 = arith.addf %84, %104 : vector<8x128xf32>
    %106 = vector.extract_strided_slice %39 {offsets = [0, 96], sizes = [8, 32], strides = [1, 1]} : vector<8x128xf32> to vector<8x32xf32>
    %107 = vector.extract_strided_slice %40 {offsets = [0, 96], sizes = [8, 32], strides = [1, 1]} : vector<8x128xf32> to vector<8x32xf32>
    %108 = vector.extract_strided_slice %41 {offsets = [0, 96], sizes = [8, 32], strides = [1, 1]} : vector<8x128xf32> to vector<8x32xf32>
    %cst_50 = arith.constant dense<0.000000e+00> : vector<8x8xf32>
    %109 = tpu.matmul %106, %107, %cst_50 {dimension_numbers = #tpu.dot_dimension_numbers<[1], [1], [0], [0], [0, 0, 1, 0], [], []>} : vector<8x32xf32>, vector<8x32xf32>, vector<8x8xf32> -> vector<8x8xf32>
    %cst_51 = arith.constant 0.176776692 : f32
    %110 = vector.broadcast %cst_51 : f32 to vector<8x8xf32>
    %111 = arith.mulf %109, %110 : vector<8x8xf32>
    %112 = arith.addf %111, %5 : vector<8x8xf32>
    %cst_52 = arith.constant dense<0xFF800000> : vector<8xf32>
    %113 = vector.multi_reduction <maximumf>, %112, %cst_52 [1] : vector<8x8xf32> to vector<8xf32>
    %114 = vector.shape_cast %113 : vector<8xf32> to vector<8x1xf32>
    %115 = vector.broadcast %114 : vector<8x1xf32> to vector<8x8xf32>
    %116 = arith.subf %112, %115 : vector<8x8xf32>
    %117 = math.exp %116 : vector<8x8xf32>
    %cst_53 = arith.constant dense<0.000000e+00> : vector<8xf32>
    %118 = vector.multi_reduction <add>, %117, %cst_53 [1] : vector<8x8xf32> to vector<8xf32>
    %119 = vector.shape_cast %118 : vector<8xf32> to vector<8x1xf32>
    %120 = tpu.reciprocal %119 {approx = true} : vector<8x1xf32> -> vector<8x1xf32>
    %121 = vector.broadcast %120 : vector<8x1xf32> to vector<8x8xf32>
    %122 = arith.mulf %117, %121 : vector<8x8xf32>
    %cst_54 = arith.constant dense<0.000000e+00> : vector<8x32xf32>
    %123 = tpu.matmul %122, %108, %cst_54 {dimension_numbers = #tpu.dot_dimension_numbers<[1], [0], [0], [1], [0, 0, 1, 1], [], []>} : vector<8x8xf32>, vector<8x32xf32>, vector<8x32xf32> -> vector<8x32xf32>
    %c96 = arith.constant 96 : index
    %c0_55 = arith.constant 0 : index
    %124 = vector.load %arg9[%c96, %c0_55] : memref<128x128xf32, #tpu.memory_space<vmem>>, vector<32x128xf32>
    %cst_56 = arith.constant dense<0.000000e+00> : vector<8x128xf32>
    %125 = tpu.matmul %123, %124, %cst_56 {dimension_numbers = #tpu.dot_dimension_numbers<[1], [0], [0], [1], [0, 0, 1, 1], [], []>} : vector<8x32xf32>, vector<32x128xf32>, vector<8x128xf32> -> vector<8x128xf32>
    %126 = arith.addf %105, %125 : vector<8x128xf32>
    %c0_57 = arith.constant 0 : index
    %c0_58 = arith.constant 0 : index
    %127 = vector.load %arg10[%c0_57, %c0_58] : memref<1x128xf32, #tpu.memory_space<vmem>>, vector<1x128xf32>
    %128 = vector.broadcast %127 : vector<1x128xf32> to vector<8x128xf32>
    %129 = arith.addf %126, %128 : vector<8x128xf32>
    %130 = arith.addf %1, %129 : vector<8x128xf32>
    %cst_59 = arith.constant dense<0.000000e+00> : vector<8xf32>
    %131 = vector.multi_reduction <add>, %130, %cst_59 [1] : vector<8x128xf32> to vector<8xf32>
    %132 = vector.shape_cast %131 : vector<8xf32> to vector<8x1xf32>
    %cst_60 = arith.constant 1.280000e+02 : f32
    %133 = vector.broadcast %cst_60 : f32 to vector<8x1xf32>
    %134 = arith.divf %132, %133 : vector<8x1xf32>
    %135 = vector.broadcast %134 : vector<8x1xf32> to vector<8x128xf32>
    %136 = arith.subf %130, %135 : vector<8x128xf32>
    %137 = arith.mulf %136, %136 : vector<8x128xf32>
    %cst_61 = arith.constant dense<0.000000e+00> : vector<8xf32>
    %138 = vector.multi_reduction <add>, %137, %cst_61 [1] : vector<8x128xf32> to vector<8xf32>
    %139 = vector.shape_cast %138 : vector<8xf32> to vector<8x1xf32>
    %cst_62 = arith.constant 1.270000e+02 : f32
    %140 = vector.broadcast %cst_62 : f32 to vector<8x1xf32>
    %141 = arith.divf %139, %140 : vector<8x1xf32>
    %142 = math.sqrt %141 : vector<8x1xf32>
    %cst_63 = arith.constant 9.99999997E-7 : f32
    %143 = vector.broadcast %cst_63 : f32 to vector<8x1xf32>
    %144 = arith.addf %142, %143 : vector<8x1xf32>
    %cst_64 = arith.constant 1.000000e+00 : f32
    %145 = vector.broadcast %cst_64 : f32 to vector<8x1xf32>
    %146 = arith.divf %145, %144 : vector<8x1xf32>
    %c1 = arith.constant 1 : index
    %c0_65 = arith.constant 0 : index
    %c0_66 = arith.constant 0 : index
    %147 = vector.load %arg5[%c1, %c0_65, %c0_66] : memref<3x1x128xf32, #tpu.memory_space<vmem>>, vector<1x1x128xf32>
    %148 = vector.shape_cast %147 : vector<1x1x128xf32> to vector<1x128xf32>
    %149 = vector.broadcast %146 : vector<8x1xf32> to vector<8x128xf32>
    %150 = arith.mulf %136, %149 : vector<8x128xf32>
    %151 = vector.broadcast %148 : vector<1x128xf32> to vector<8x128xf32>
    %152 = arith.mulf %151, %150 : vector<8x128xf32>
    %c1_67 = arith.constant 1 : index
    %c0_68 = arith.constant 0 : index
    %c0_69 = arith.constant 0 : index
    %153 = vector.load %arg6[%c1_67, %c0_68, %c0_69] : memref<3x1x128xf32, #tpu.memory_space<vmem>>, vector<1x1x128xf32>
    %154 = vector.shape_cast %153 : vector<1x1x128xf32> to vector<1x128xf32>
    %155 = vector.broadcast %154 : vector<1x128xf32> to vector<8x128xf32>
    %156 = arith.addf %152, %155 : vector<8x128xf32>
    %c0_70 = arith.constant 0 : index
    %c0_71 = arith.constant 0 : index
    %157 = vector.load %arg11[%c0_70, %c0_71] : memref<128x128xf32, #tpu.memory_space<vmem>>, vector<128x128xf32>
    %cst_72 = arith.constant dense<0.000000e+00> : vector<8x128xf32>
    %158 = tpu.matmul %156, %157, %cst_72 {dimension_numbers = #tpu.dot_dimension_numbers<[1], [0], [0], [1], [0, 0, 1, 1], [], []>} : vector<8x128xf32>, vector<128x128xf32>, vector<8x128xf32> -> vector<8x128xf32>
    %c0_73 = arith.constant 0 : index
    %c0_74 = arith.constant 0 : index
    %159 = vector.load %arg12[%c0_73, %c0_74] : memref<1x128xf32, #tpu.memory_space<vmem>>, vector<1x128xf32>
    %160 = vector.broadcast %159 : vector<1x128xf32> to vector<8x128xf32>
    %161 = arith.addf %158, %160 : vector<8x128xf32>
    %c0_75 = arith.constant 0 : index
    %c0_76 = arith.constant 0 : index
    %162 = vector.load %arg13[%c0_75, %c0_76] : memref<128x256xf32, #tpu.memory_space<vmem>>, vector<128x256xf32>
    %cst_77 = arith.constant dense<0.000000e+00> : vector<16x256xf32>
    %163 = tpu.matmul %3, %162, %cst_77 {dimension_numbers = #tpu.dot_dimension_numbers<[1], [0], [0], [1], [0, 0, 1, 1], [], []>} : vector<16x128xf32>, vector<128x256xf32>, vector<16x256xf32> -> vector<16x256xf32>
    %c0_78 = arith.constant 0 : index
    %c0_79 = arith.constant 0 : index
    %164 = vector.load %arg14[%c0_78, %c0_79] : memref<1x256xf32, #tpu.memory_space<vmem>>, vector<1x256xf32>
    %165 = vector.broadcast %164 : vector<1x256xf32> to vector<16x256xf32>
    %166 = arith.addf %163, %165 : vector<16x256xf32>
    %167 = vector.extract_strided_slice %166 {offsets = [0, 0], sizes = [16, 128], strides = [1, 1]} : vector<16x256xf32> to vector<16x128xf32>
    %168 = vector.extract_strided_slice %166 {offsets = [0, 128], sizes = [16, 128], strides = [1, 1]} : vector<16x256xf32> to vector<16x128xf32>
    %cst_80 = arith.constant 0.000000e+00 : f32
    %169 = vector.broadcast %cst_80 : f32 to vector<8x128xf32>
    %170 = vector.extract_strided_slice %161 {offsets = [0, 0], sizes = [8, 32], strides = [1, 1]} : vector<8x128xf32> to vector<8x32xf32>
    %171 = vector.extract_strided_slice %167 {offsets = [0, 0], sizes = [16, 32], strides = [1, 1]} : vector<16x128xf32> to vector<16x32xf32>
    %172 = vector.extract_strided_slice %168 {offsets = [0, 0], sizes = [16, 32], strides = [1, 1]} : vector<16x128xf32> to vector<16x32xf32>
    %cst_81 = arith.constant dense<0.000000e+00> : vector<8x16xf32>
    %173 = tpu.matmul %170, %171, %cst_81 {dimension_numbers = #tpu.dot_dimension_numbers<[1], [1], [0], [0], [0, 0, 1, 0], [], []>} : vector<8x32xf32>, vector<16x32xf32>, vector<8x16xf32> -> vector<8x16xf32>
    %cst_82 = arith.constant 0.176776692 : f32
    %174 = vector.broadcast %cst_82 : f32 to vector<8x16xf32>
    %175 = arith.mulf %173, %174 : vector<8x16xf32>
    %176 = arith.addf %175, %7 : vector<8x16xf32>
    %cst_83 = arith.constant dense<0xFF800000> : vector<8xf32>
    %177 = vector.multi_reduction <maximumf>, %176, %cst_83 [1] : vector<8x16xf32> to vector<8xf32>
    %178 = vector.shape_cast %177 : vector<8xf32> to vector<8x1xf32>
    %179 = vector.broadcast %178 : vector<8x1xf32> to vector<8x16xf32>
    %180 = arith.subf %176, %179 : vector<8x16xf32>
    %181 = math.exp %180 : vector<8x16xf32>
    %cst_84 = arith.constant dense<0.000000e+00> : vector<8xf32>
    %182 = vector.multi_reduction <add>, %181, %cst_84 [1] : vector<8x16xf32> to vector<8xf32>
    %183 = vector.shape_cast %182 : vector<8xf32> to vector<8x1xf32>
    %184 = tpu.reciprocal %183 {approx = true} : vector<8x1xf32> -> vector<8x1xf32>
    %185 = vector.broadcast %184 : vector<8x1xf32> to vector<8x16xf32>
    %186 = arith.mulf %181, %185 : vector<8x16xf32>
    %cst_85 = arith.constant dense<0.000000e+00> : vector<8x32xf32>
    %187 = tpu.matmul %186, %172, %cst_85 {dimension_numbers = #tpu.dot_dimension_numbers<[1], [0], [0], [1], [0, 0, 1, 1], [], []>} : vector<8x16xf32>, vector<16x32xf32>, vector<8x32xf32> -> vector<8x32xf32>
    %c0_86 = arith.constant 0 : index
    %c0_87 = arith.constant 0 : index
    %188 = vector.load %arg15[%c0_86, %c0_87] : memref<128x128xf32, #tpu.memory_space<vmem>>, vector<32x128xf32>
    %cst_88 = arith.constant dense<0.000000e+00> : vector<8x128xf32>
    %189 = tpu.matmul %187, %188, %cst_88 {dimension_numbers = #tpu.dot_dimension_numbers<[1], [0], [0], [1], [0, 0, 1, 1], [], []>} : vector<8x32xf32>, vector<32x128xf32>, vector<8x128xf32> -> vector<8x128xf32>
    %190 = arith.addf %169, %189 : vector<8x128xf32>
    %191 = vector.extract_strided_slice %161 {offsets = [0, 32], sizes = [8, 32], strides = [1, 1]} : vector<8x128xf32> to vector<8x32xf32>
    %192 = vector.extract_strided_slice %167 {offsets = [0, 32], sizes = [16, 32], strides = [1, 1]} : vector<16x128xf32> to vector<16x32xf32>
    %193 = vector.extract_strided_slice %168 {offsets = [0, 32], sizes = [16, 32], strides = [1, 1]} : vector<16x128xf32> to vector<16x32xf32>
    %cst_89 = arith.constant dense<0.000000e+00> : vector<8x16xf32>
    %194 = tpu.matmul %191, %192, %cst_89 {dimension_numbers = #tpu.dot_dimension_numbers<[1], [1], [0], [0], [0, 0, 1, 0], [], []>} : vector<8x32xf32>, vector<16x32xf32>, vector<8x16xf32> -> vector<8x16xf32>
    %cst_90 = arith.constant 0.176776692 : f32
    %195 = vector.broadcast %cst_90 : f32 to vector<8x16xf32>
    %196 = arith.mulf %194, %195 : vector<8x16xf32>
    %197 = arith.addf %196, %7 : vector<8x16xf32>
    %cst_91 = arith.constant dense<0xFF800000> : vector<8xf32>
    %198 = vector.multi_reduction <maximumf>, %197, %cst_91 [1] : vector<8x16xf32> to vector<8xf32>
    %199 = vector.shape_cast %198 : vector<8xf32> to vector<8x1xf32>
    %200 = vector.broadcast %199 : vector<8x1xf32> to vector<8x16xf32>
    %201 = arith.subf %197, %200 : vector<8x16xf32>
    %202 = math.exp %201 : vector<8x16xf32>
    %cst_92 = arith.constant dense<0.000000e+00> : vector<8xf32>
    %203 = vector.multi_reduction <add>, %202, %cst_92 [1] : vector<8x16xf32> to vector<8xf32>
    %204 = vector.shape_cast %203 : vector<8xf32> to vector<8x1xf32>
    %205 = tpu.reciprocal %204 {approx = true} : vector<8x1xf32> -> vector<8x1xf32>
    %206 = vector.broadcast %205 : vector<8x1xf32> to vector<8x16xf32>
    %207 = arith.mulf %202, %206 : vector<8x16xf32>
    %cst_93 = arith.constant dense<0.000000e+00> : vector<8x32xf32>
    %208 = tpu.matmul %207, %193, %cst_93 {dimension_numbers = #tpu.dot_dimension_numbers<[1], [0], [0], [1], [0, 0, 1, 1], [], []>} : vector<8x16xf32>, vector<16x32xf32>, vector<8x32xf32> -> vector<8x32xf32>
    %c32_94 = arith.constant 32 : index
    %c0_95 = arith.constant 0 : index
    %209 = vector.load %arg15[%c32_94, %c0_95] : memref<128x128xf32, #tpu.memory_space<vmem>>, vector<32x128xf32>
    %cst_96 = arith.constant dense<0.000000e+00> : vector<8x128xf32>
    %210 = tpu.matmul %208, %209, %cst_96 {dimension_numbers = #tpu.dot_dimension_numbers<[1], [0], [0], [1], [0, 0, 1, 1], [], []>} : vector<8x32xf32>, vector<32x128xf32>, vector<8x128xf32> -> vector<8x128xf32>
    %211 = arith.addf %190, %210 : vector<8x128xf32>
    %212 = vector.extract_strided_slice %161 {offsets = [0, 64], sizes = [8, 32], strides = [1, 1]} : vector<8x128xf32> to vector<8x32xf32>
    %213 = vector.extract_strided_slice %167 {offsets = [0, 64], sizes = [16, 32], strides = [1, 1]} : vector<16x128xf32> to vector<16x32xf32>
    %214 = vector.extract_strided_slice %168 {offsets = [0, 64], sizes = [16, 32], strides = [1, 1]} : vector<16x128xf32> to vector<16x32xf32>
    %cst_97 = arith.constant dense<0.000000e+00> : vector<8x16xf32>
    %215 = tpu.matmul %212, %213, %cst_97 {dimension_numbers = #tpu.dot_dimension_numbers<[1], [1], [0], [0], [0, 0, 1, 0], [], []>} : vector<8x32xf32>, vector<16x32xf32>, vector<8x16xf32> -> vector<8x16xf32>
    %cst_98 = arith.constant 0.176776692 : f32
    %216 = vector.broadcast %cst_98 : f32 to vector<8x16xf32>
    %217 = arith.mulf %215, %216 : vector<8x16xf32>
    %218 = arith.addf %217, %7 : vector<8x16xf32>
    %cst_99 = arith.constant dense<0xFF800000> : vector<8xf32>
    %219 = vector.multi_reduction <maximumf>, %218, %cst_99 [1] : vector<8x16xf32> to vector<8xf32>
    %220 = vector.shape_cast %219 : vector<8xf32> to vector<8x1xf32>
    %221 = vector.broadcast %220 : vector<8x1xf32> to vector<8x16xf32>
    %222 = arith.subf %218, %221 : vector<8x16xf32>
    %223 = math.exp %222 : vector<8x16xf32>
    %cst_100 = arith.constant dense<0.000000e+00> : vector<8xf32>
    %224 = vector.multi_reduction <add>, %223, %cst_100 [1] : vector<8x16xf32> to vector<8xf32>
    %225 = vector.shape_cast %224 : vector<8xf32> to vector<8x1xf32>
    %226 = tpu.reciprocal %225 {approx = true} : vector<8x1xf32> -> vector<8x1xf32>
    %227 = vector.broadcast %226 : vector<8x1xf32> to vector<8x16xf32>
    %228 = arith.mulf %223, %227 : vector<8x16xf32>
    %cst_101 = arith.constant dense<0.000000e+00> : vector<8x32xf32>
    %229 = tpu.matmul %228, %214, %cst_101 {dimension_numbers = #tpu.dot_dimension_numbers<[1], [0], [0], [1], [0, 0, 1, 1], [], []>} : vector<8x16xf32>, vector<16x32xf32>, vector<8x32xf32> -> vector<8x32xf32>
    %c64_102 = arith.constant 64 : index
    %c0_103 = arith.constant 0 : index
    %230 = vector.load %arg15[%c64_102, %c0_103] : memref<128x128xf32, #tpu.memory_space<vmem>>, vector<32x128xf32>
    %cst_104 = arith.constant dense<0.000000e+00> : vector<8x128xf32>
    %231 = tpu.matmul %229, %230, %cst_104 {dimension_numbers = #tpu.dot_dimension_numbers<[1], [0], [0], [1], [0, 0, 1, 1], [], []>} : vector<8x32xf32>, vector<32x128xf32>, vector<8x128xf32> -> vector<8x128xf32>
    %232 = arith.addf %211, %231 : vector<8x128xf32>
    %233 = vector.extract_strided_slice %161 {offsets = [0, 96], sizes = [8, 32], strides = [1, 1]} : vector<8x128xf32> to vector<8x32xf32>
    %234 = vector.extract_strided_slice %167 {offsets = [0, 96], sizes = [16, 32], strides = [1, 1]} : vector<16x128xf32> to vector<16x32xf32>
    %235 = vector.extract_strided_slice %168 {offsets = [0, 96], sizes = [16, 32], strides = [1, 1]} : vector<16x128xf32> to vector<16x32xf32>
    %cst_105 = arith.constant dense<0.000000e+00> : vector<8x16xf32>
    %236 = tpu.matmul %233, %234, %cst_105 {dimension_numbers = #tpu.dot_dimension_numbers<[1], [1], [0], [0], [0, 0, 1, 0], [], []>} : vector<8x32xf32>, vector<16x32xf32>, vector<8x16xf32> -> vector<8x16xf32>
    %cst_106 = arith.constant 0.176776692 : f32
    %237 = vector.broadcast %cst_106 : f32 to vector<8x16xf32>
    %238 = arith.mulf %236, %237 : vector<8x16xf32>
    %239 = arith.addf %238, %7 : vector<8x16xf32>
    %cst_107 = arith.constant dense<0xFF800000> : vector<8xf32>
    %240 = vector.multi_reduction <maximumf>, %239, %cst_107 [1] : vector<8x16xf32> to vector<8xf32>
    %241 = vector.shape_cast %240 : vector<8xf32> to vector<8x1xf32>
    %242 = vector.broadcast %241 : vector<8x1xf32> to vector<8x16xf32>
    %243 = arith.subf %239, %242 : vector<8x16xf32>
    %244 = math.exp %243 : vector<8x16xf32>
    %cst_108 = arith.constant dense<0.000000e+00> : vector<8xf32>
    %245 = vector.multi_reduction <add>, %244, %cst_108 [1] : vector<8x16xf32> to vector<8xf32>
    %246 = vector.shape_cast %245 : vector<8xf32> to vector<8x1xf32>
    %247 = tpu.reciprocal %246 {approx = true} : vector<8x1xf32> -> vector<8x1xf32>
    %248 = vector.broadcast %247 : vector<8x1xf32> to vector<8x16xf32>
    %249 = arith.mulf %244, %248 : vector<8x16xf32>
    %cst_109 = arith.constant dense<0.000000e+00> : vector<8x32xf32>
    %250 = tpu.matmul %249, %235, %cst_109 {dimension_numbers = #tpu.dot_dimension_numbers<[1], [0], [0], [1], [0, 0, 1, 1], [], []>} : vector<8x16xf32>, vector<16x32xf32>, vector<8x32xf32> -> vector<8x32xf32>
    %c96_110 = arith.constant 96 : index
    %c0_111 = arith.constant 0 : index
    %251 = vector.load %arg15[%c96_110, %c0_111] : memref<128x128xf32, #tpu.memory_space<vmem>>, vector<32x128xf32>
    %cst_112 = arith.constant dense<0.000000e+00> : vector<8x128xf32>
    %252 = tpu.matmul %250, %251, %cst_112 {dimension_numbers = #tpu.dot_dimension_numbers<[1], [0], [0], [1], [0, 0, 1, 1], [], []>} : vector<8x32xf32>, vector<32x128xf32>, vector<8x128xf32> -> vector<8x128xf32>
    %253 = arith.addf %232, %252 : vector<8x128xf32>
    %c0_113 = arith.constant 0 : index
    %c0_114 = arith.constant 0 : index
    %254 = vector.load %arg16[%c0_113, %c0_114] : memref<1x128xf32, #tpu.memory_space<vmem>>, vector<1x128xf32>
    %255 = vector.broadcast %254 : vector<1x128xf32> to vector<8x128xf32>
    %256 = arith.addf %253, %255 : vector<8x128xf32>
    %257 = arith.addf %130, %256 : vector<8x128xf32>
    %cst_115 = arith.constant dense<0.000000e+00> : vector<8xf32>
    %258 = vector.multi_reduction <add>, %257, %cst_115 [1] : vector<8x128xf32> to vector<8xf32>
    %259 = vector.shape_cast %258 : vector<8xf32> to vector<8x1xf32>
    %cst_116 = arith.constant 1.280000e+02 : f32
    %260 = vector.broadcast %cst_116 : f32 to vector<8x1xf32>
    %261 = arith.divf %259, %260 : vector<8x1xf32>
    %262 = vector.broadcast %261 : vector<8x1xf32> to vector<8x128xf32>
    %263 = arith.subf %257, %262 : vector<8x128xf32>
    %264 = arith.mulf %263, %263 : vector<8x128xf32>
    %cst_117 = arith.constant dense<0.000000e+00> : vector<8xf32>
    %265 = vector.multi_reduction <add>, %264, %cst_117 [1] : vector<8x128xf32> to vector<8xf32>
    %266 = vector.shape_cast %265 : vector<8xf32> to vector<8x1xf32>
    %cst_118 = arith.constant 1.270000e+02 : f32
    %267 = vector.broadcast %cst_118 : f32 to vector<8x1xf32>
    %268 = arith.divf %266, %267 : vector<8x1xf32>
    %269 = math.sqrt %268 : vector<8x1xf32>
    %cst_119 = arith.constant 9.99999997E-7 : f32
    %270 = vector.broadcast %cst_119 : f32 to vector<8x1xf32>
    %271 = arith.addf %269, %270 : vector<8x1xf32>
    %cst_120 = arith.constant 1.000000e+00 : f32
    %272 = vector.broadcast %cst_120 : f32 to vector<8x1xf32>
    %273 = arith.divf %272, %271 : vector<8x1xf32>
    %c2 = arith.constant 2 : index
    %c0_121 = arith.constant 0 : index
    %c0_122 = arith.constant 0 : index
    %274 = vector.load %arg5[%c2, %c0_121, %c0_122] : memref<3x1x128xf32, #tpu.memory_space<vmem>>, vector<1x1x128xf32>
    %275 = vector.shape_cast %274 : vector<1x1x128xf32> to vector<1x128xf32>
    %276 = vector.broadcast %273 : vector<8x1xf32> to vector<8x128xf32>
    %277 = arith.mulf %263, %276 : vector<8x128xf32>
    %278 = vector.broadcast %275 : vector<1x128xf32> to vector<8x128xf32>
    %279 = arith.mulf %278, %277 : vector<8x128xf32>
    %c2_123 = arith.constant 2 : index
    %c0_124 = arith.constant 0 : index
    %c0_125 = arith.constant 0 : index
    %280 = vector.load %arg6[%c2_123, %c0_124, %c0_125] : memref<3x1x128xf32, #tpu.memory_space<vmem>>, vector<1x1x128xf32>
    %281 = vector.shape_cast %280 : vector<1x1x128xf32> to vector<1x128xf32>
    %282 = vector.broadcast %281 : vector<1x128xf32> to vector<8x128xf32>
    %283 = arith.addf %279, %282 : vector<8x128xf32>
    %c0_126 = arith.constant 0 : index
    %c0_127 = arith.constant 0 : index
    %284 = vector.load %arg17[%c0_126, %c0_127] : memref<128x256xf32, #tpu.memory_space<vmem>>, vector<128x256xf32>
    %cst_128 = arith.constant dense<0.000000e+00> : vector<8x256xf32>
    %285 = tpu.matmul %283, %284, %cst_128 {dimension_numbers = #tpu.dot_dimension_numbers<[1], [0], [0], [1], [0, 0, 1, 1], [], []>} : vector<8x128xf32>, vector<128x256xf32>, vector<8x256xf32> -> vector<8x256xf32>
    %c0_129 = arith.constant 0 : index
    %c0_130 = arith.constant 0 : index
    %286 = vector.load %arg18[%c0_129, %c0_130] : memref<1x256xf32, #tpu.memory_space<vmem>>, vector<1x256xf32>
    %287 = vector.broadcast %286 : vector<1x256xf32> to vector<8x256xf32>
    %288 = arith.addf %285, %287 : vector<8x256xf32>
    %cst_131 = arith.constant 0.000000e+00 : f32
    %289 = vector.broadcast %cst_131 : f32 to vector<8x256xf32>
    %290 = arith.maximumf %288, %289 : vector<8x256xf32>
    %c0_132 = arith.constant 0 : index
    %c0_133 = arith.constant 0 : index
    %291 = vector.load %arg19[%c0_132, %c0_133] : memref<256x128xf32, #tpu.memory_space<vmem>>, vector<256x128xf32>
    %cst_134 = arith.constant dense<0.000000e+00> : vector<8x128xf32>
    %292 = tpu.matmul %290, %291, %cst_134 {dimension_numbers = #tpu.dot_dimension_numbers<[1], [0], [0], [1], [0, 0, 1, 1], [], []>} : vector<8x256xf32>, vector<256x128xf32>, vector<8x128xf32> -> vector<8x128xf32>
    %293 = arith.addf %257, %292 : vector<8x128xf32>
    %c0_135 = arith.constant 0 : index
    %c0_136 = arith.constant 0 : index
    %294 = vector.load %arg20[%c0_135, %c0_136] : memref<1x128xf32, #tpu.memory_space<vmem>>, vector<1x128xf32>
    %295 = vector.broadcast %294 : vector<1x128xf32> to vector<8x128xf32>
    %296 = arith.addf %293, %295 : vector<8x128xf32>
    %c0_137 = arith.constant 0 : index
    %c0_138 = arith.constant 0 : index
    %c0_139 = arith.constant 0 : index
    %297 = vector.load %arg21[%c0_137, %c0_138, %c0_139] : memref<1x8x128xf32, #tpu.memory_space<vmem>>, vector<1x8x128xf32>
    %298 = vector.shape_cast %297 : vector<1x8x128xf32> to vector<8x128xf32>
    %299 = vector.shape_cast %296 : vector<8x128xf32> to vector<1x8x128xf32>
    tpu.vector_store %arg21[%c0_137, %c0_138, %c0_139], %299 {strides = array<i32>} : memref<1x8x128xf32, #tpu.memory_space<vmem>>, vector<1x8x128xf32>,
    return
  }
  func.func @transform_0(%arg0: i32) -> (i32, i32, i32) {
    %c0_i32 = arith.constant 0 : i32
    %c0_i32_0 = arith.constant 0 : i32
    %c0_i32_1 = arith.constant 0 : i32
    return %arg0, %c0_i32, %c0_i32_0 : i32, i32, i32
  }
  func.func @transform_1(%arg0: i32) -> (i32, i32, i32) {
    %c0_i32 = arith.constant 0 : i32
    %c0_i32_0 = arith.constant 0 : i32
    %c0_i32_1 = arith.constant 0 : i32
    return %arg0, %c0_i32, %c0_i32_0 : i32, i32, i32
  }
  func.func @transform_2(%arg0: i32) -> (i32, i32, i32) {
    %c0_i32 = arith.constant 0 : i32
    %c0_i32_0 = arith.constant 0 : i32
    %c0_i32_1 = arith.constant 0 : i32
    return %arg0, %c0_i32, %c0_i32_0 : i32, i32, i32
  }
  func.func @transform_3(%arg0: i32) -> (i32, i32, i32) {
    %c0_i32 = arith.constant 0 : i32
    %c0_i32_0 = arith.constant 0 : i32
    %c0_i32_1 = arith.constant 0 : i32
    return %arg0, %c0_i32, %c0_i32_0 : i32, i32, i32
  }
  func.func @transform_4(%arg0: i32) -> (i32, i32, i32) {
    %c0_i32 = arith.constant 0 : i32
    %c0_i32_0 = arith.constant 0 : i32
    %c0_i32_1 = arith.constant 0 : i32
    %c0_i32_2 = arith.constant 0 : i32
    return %c0_i32, %c0_i32_0, %c0_i32_1 : i32, i32, i32
  }
  func.func @transform_5(%arg0: i32) -> (i32, i32, i32) {
    %c0_i32 = arith.constant 0 : i32
    %c0_i32_0 = arith.constant 0 : i32
    %c0_i32_1 = arith.constant 0 : i32
    %c0_i32_2 = arith.constant 0 : i32
    return %c0_i32, %c0_i32_0, %c0_i32_1 : i32, i32, i32
  }
  func.func @transform_6(%arg0: i32) -> (i32, i32) {
    %c0_i32 = arith.constant 0 : i32
    %c0_i32_0 = arith.constant 0 : i32
    %c0_i32_1 = arith.constant 0 : i32
    return %c0_i32, %c0_i32_0 : i32, i32
  }
  func.func @transform_7(%arg0: i32) -> (i32, i32) {
    %c0_i32 = arith.constant 0 : i32
    %c0_i32_0 = arith.constant 0 : i32
    %c0_i32_1 = arith.constant 0 : i32
    return %c0_i32, %c0_i32_0 : i32, i32
  }
  func.func @transform_8(%arg0: i32) -> (i32, i32) {
    %c0_i32 = arith.constant 0 : i32
    %c0_i32_0 = arith.constant 0 : i32
    %c0_i32_1 = arith.constant 0 : i32
    return %c0_i32, %c0_i32_0 : i32, i32
  }
  func.func @transform_9(%arg0: i32) -> (i32, i32) {
    %c0_i32 = arith.constant 0 : i32
    %c0_i32_0 = arith.constant 0 : i32
    %c0_i32_1 = arith.constant 0 : i32
    return %c0_i32, %c0_i32_0 : i32, i32
  }
  func.func @transform_10(%arg0: i32) -> (i32, i32) {
    %c0_i32 = arith.constant 0 : i32
    %c0_i32_0 = arith.constant 0 : i32
    %c0_i32_1 = arith.constant 0 : i32
    return %c0_i32, %c0_i32_0 : i32, i32
  }
  func.func @transform_11(%arg0: i32) -> (i32, i32) {
    %c0_i32 = arith.constant 0 : i32
    %c0_i32_0 = arith.constant 0 : i32
    %c0_i32_1 = arith.constant 0 : i32
    return %c0_i32, %c0_i32_0 : i32, i32
  }
  func.func @transform_12(%arg0: i32) -> (i32, i32) {
    %c0_i32 = arith.constant 0 : i32
    %c0_i32_0 = arith.constant 0 : i32
    %c0_i32_1 = arith.constant 0 : i32
    return %c0_i32, %c0_i32_0 : i32, i32
  }
  func.func @transform_13(%arg0: i32) -> (i32, i32) {
    %c0_i32 = arith.constant 0 : i32
    %c0_i32_0 = arith.constant 0 : i32
    %c0_i32_1 = arith.constant 0 : i32
    return %c0_i32, %c0_i32_0 : i32, i32
  }
  func.func @transform_14(%arg0: i32) -> (i32, i32) {
    %c0_i32 = arith.constant 0 : i32
    %c0_i32_0 = arith.constant 0 : i32
    %c0_i32_1 = arith.constant 0 : i32
    return %c0_i32, %c0_i32_0 : i32, i32
  }
  func.func @transform_15(%arg0: i32) -> (i32, i32) {
    %c0_i32 = arith.constant 0 : i32
    %c0_i32_0 = arith.constant 0 : i32
    %c0_i32_1 = arith.constant 0 : i32
    return %c0_i32, %c0_i32_0 : i32, i32
  }
  func.func @transform_16(%arg0: i32) -> (i32, i32) {
    %c0_i32 = arith.constant 0 : i32
    %c0_i32_0 = arith.constant 0 : i32
    %c0_i32_1 = arith.constant 0 : i32
    return %c0_i32, %c0_i32_0 : i32, i32
  }
  func.func @transform_17(%arg0: i32) -> (i32, i32) {
    %c0_i32 = arith.constant 0 : i32
    %c0_i32_0 = arith.constant 0 : i32
    %c0_i32_1 = arith.constant 0 : i32
    return %c0_i32, %c0_i32_0 : i32, i32
  }
  func.func @transform_18(%arg0: i32) -> (i32, i32) {
    %c0_i32 = arith.constant 0 : i32
    %c0_i32_0 = arith.constant 0 : i32
    %c0_i32_1 = arith.constant 0 : i32
    return %c0_i32, %c0_i32_0 : i32, i32
  }
  func.func @transform_19(%arg0: i32) -> (i32, i32) {
    %c0_i32 = arith.constant 0 : i32
    %c0_i32_0 = arith.constant 0 : i32
    %c0_i32_1 = arith.constant 0 : i32
    return %c0_i32, %c0_i32_0 : i32, i32
  }
  func.func @transform_20(%arg0: i32) -> (i32, i32, i32) {
    %c0_i32 = arith.constant 0 : i32
    %c0_i32_0 = arith.constant 0 : i32
    %c0_i32_1 = arith.constant 0 : i32
    return %arg0, %c0_i32, %c0_i32_0 : i32, i32, i32
  }
}

</mosaic_0001>

<llo_original>
// kernel: tpu_custom_call.1
$region0: #{tpu_custom_call.1}
  #allocation0 [shape = 'u32[]', space=smem, size = 0x4, offset = 0x4, fixed_abs, tag = 'smem constant byte address 0x4 - core index']
  #allocation1 [shape = 'u32[144,128]{1,0:T(1,128)}', space=vmem, size = 0x12000, scoped, tag = 'internal scratch']
  %s0 = inlined_call_operand.hbm [shape: f32[2,8,128], index: 0, kind: input, shape index: {}]
  %s1 = inlined_call_operand.hbm [shape: f32[2,16,128], index: 1, kind: input, shape index: {}]
  %s2 = inlined_call_operand.hbm [shape: f32[2,8,8], index: 2, kind: input, shape index: {}]
  %s3 = inlined_call_operand.hbm [shape: f32[2,8,16], index: 3, kind: input, shape index: {}]
  %s4 = inlined_call_operand.vmem [shape: f32[3,1,128], index: 4, kind: input, shape index: {}]
  %s5 = inlined_call_operand.vmem [shape: f32[3,1,128], index: 5, kind: input, shape index: {}]
  %s6 = inlined_call_operand.hbm [shape: f32[128,384], index: 6, kind: input, shape index: {}]
  %s7 = inlined_call_operand.vmem [shape: f32[1,384], index: 7, kind: input, shape index: {}]
  %s8 = inlined_call_operand.hbm [shape: f32[128,128], index: 8, kind: input, shape index: {}]
  %s9 = inlined_call_operand.vmem [shape: f32[1,128], index: 9, kind: input, shape index: {}]
  %s10 = inlined_call_operand.hbm [shape: f32[128,128], index: 10, kind: input, shape index: {}]
  %s11 = inlined_call_operand.vmem [shape: f32[1,128], index: 11, kind: input, shape index: {}]
  %s12 = inlined_call_operand.hbm [shape: f32[128,256], index: 12, kind: input, shape index: {}]
  %s13 = inlined_call_operand.vmem [shape: f32[1,256], index: 13, kind: input, shape index: {}]
  %s14 = inlined_call_operand.hbm [shape: f32[128,128], index: 14, kind: input, shape index: {}]
  %s15 = inlined_call_operand.vmem [shape: f32[1,128], index: 15, kind: input, shape index: {}]
  %s16 = inlined_call_operand.hbm [shape: f32[128,256], index: 16, kind: input, shape index: {}]
  %s17 = inlined_call_operand.vmem [shape: f32[1,256], index: 17, kind: input, shape index: {}]
  %s18 = inlined_call_operand.hbm [shape: f32[256,128], index: 18, kind: input, shape index: {}]
  %s19 = inlined_call_operand.vmem [shape: f32[1,128], index: 19, kind: input, shape index: {}]
  %s20 = inlined_call_operand.hbm [shape: f32[2,8,128], index: 20, kind: output, shape index: {}]
  %s21 = sld [smem:[#allocation0]]
  $region157: #{tpu_custom_call.1} parent=0
    _
  %s23 = ssub.s32 1, %s21
  %s24 = scalar_select 0, %s23, %s21
  $region1: #{tpu_custom_call.1} parent=0
    #allocation2 [shape = 'u8[8192]{0}', space=vmem, size = 0x2000, scoped, tag = 'input window, operand 0']
    #allocation3 [shape = 's32[2]{0}', space=sflag, size = 0x8, scoped, tag = 'scoped memory for tpu_custom_call.1']
    #allocation4 [shape = 's32[2]{0}', space=sflag, size = 0x8, scoped, tag = 'scoped memory for tpu_custom_call.1']
    #allocation5 [shape = 'u8[16384]{0}', space=vmem, size = 0x4000, scoped, tag = 'input window, operand 1']
    #allocation6 [shape = 's32[2]{0}', space=sflag, size = 0x8, scoped, tag = 'scoped memory for tpu_custom_call.1']
    #allocation7 [shape = 'u8[8192]{0}', space=vmem, size = 0x2000, scoped, tag = 'input window, operand 2']
    #allocation8 [shape = 'u8[8192]{0}', space=vmem, size = 0x2000, scoped, tag = 'input window, operand 3']
    #allocation9 [shape = 's32[2]{0}', space=sflag, size = 0x8, scoped, tag = 'scoped memory for tpu_custom_call.1']
    #allocation10 [shape = 'u8[196608]{0}', space=vmem, size = 0x30000, scoped, tag = 'input window, operand 6, single buffered']
    #allocation11 [shape = 'u8[65536]{0}', space=vmem, size = 0x10000, scoped, tag = 'input window, operand 8, single buffered']
    #allocation12 [shape = 's32[1]{0}', space=sflag, size = 0x4, scoped, tag = 'scoped memory for tpu_custom_call.1']
    #allocation13 [shape = 'u8[65536]{0}', space=vmem, size = 0x10000, scoped, tag = 'input window, operand 10, single buffered']
    #allocation14 [shape = 'u8[131072]{0}', space=vmem, size = 0x20000, scoped, tag = 'input window, operand 12, single buffered']
    #allocation15 [shape = 's32[1]{0}', space=sflag, size = 0x4, scoped, tag = 'scoped memory for tpu_custom_call.1']
    #allocation16 [shape = 'u8[65536]{0}', space=vmem, size = 0x10000, scoped, tag = 'input window, operand 14, single buffered']
    #allocation17 [shape = 'u8[131072]{0}', space=vmem, size = 0x20000, scoped, tag = 'input window, operand 16, single buffered']
    #allocation18 [shape = 's32[1]{0}', space=sflag, size = 0x4, scoped, tag = 'scoped memory for tpu_custom_call.1']
    #allocation19 [shape = 'u8[131072]{0}', space=vmem, size = 0x20000, scoped, tag = 'input window, operand 18, single buffered']
    #allocation20 [shape = 'u8[8192]{0}', space=vmem, size = 0x2000, scoped, tag = 'output window, operand 0']
    %25 = vsyncpa [#allocation3], 0
    %s26 = scalar_lea.sflag [#allocation3], 1
    %27 = vsyncpa %s26, 0
    %28 = vsyncpa [#allocation6], 0
    %s29 = scalar_lea.sflag [#allocation6], 1
    %30 = vsyncpa %s29, 0
    %31 = vsyncpa [#allocation9], 0
    %s32 = scalar_lea.sflag [#allocation9], 1
    %33 = vsyncpa %s32, 0
    %34 = vsyncpa [#allocation12], 0
    %35 = vsyncpa [#allocation15], 0
    %36 = vsyncpa [#allocation18], 0
    %37 = vsyncpa [#allocation4], 0
    %s38 = scalar_lea.sflag [#allocation4], 1
    %39 = vsyncpa %s38, 0
    loop: start=0, step=1, limit=4
    $region2: #{tpu_custom_call.1} parent=1 // loop_pre_header
      _
    $region3: #{tpu_custom_call.1} parent=1 // loop_header
      %s41 = sphi 0, %s45
      %p42 = scmp.ge.s32.totalorder %s41, 4
      %s51 = sphi 0, %s53
      %s54 = sphi 0, %s51
      %s55 = sphi 0, %s54
      %s71 = sphi 0, %s55
      %s77 = sphi 0, %s79
      %s80 = sphi 0, %s77
      %s81 = sphi 0, %s80
      %s97 = sphi 0, %s81
      %s103 = sphi 0, %s105
      %s106 = sphi 0, %s103
      %s107 = sphi 0, %s106
      %s123 = sphi 0, %s107
      %s129 = sphi 0, %s131
      %s132 = sphi 0, %s129
      %s133 = sphi 0, %s132
      %s149 = sphi 0, %s133
      %s153 = sphi 0, %s153
      %s155 = sphi 0, %s153
      %s156 = sphi 0, %s155
      %s170 = sphi 0, %s156
      %s174 = sphi 0, %s174
      %s176 = sphi 0, %s174
      %s177 = sphi 0, %s176
      %s191 = sphi 0, %s177
      %s195 = sphi 0, %s195
      %s197 = sphi 0, %s195
      %s198 = sphi 0, %s197
      %s212 = sphi 0, %s198
      %s216 = sphi 0, %s216
      %s218 = sphi 0, %s216
      %s219 = sphi 0, %s218
      %s233 = sphi 0, %s219
      %s237 = sphi 0, %s237
      %s239 = sphi 0, %s237
      %s240 = sphi 0, %s239
      %s254 = sphi 0, %s240
      %s258 = sphi 0, %s258
      %s260 = sphi 0, %s258
      %s261 = sphi 0, %s260
      %s275 = sphi 0, %s261
      %s279 = sphi 0, %s279
      %s281 = sphi 0, %s279
      %s282 = sphi 0, %s281
      %s296 = sphi 0, %s282
      %s300 = sphi 0, %s300
      %s302 = sphi 0, %s300
      %s303 = sphi 0, %s302
      %s317 = sphi 0, %s303
      %s321 = sphi 0, %s321
      %s323 = sphi 0, %s321
      %s324 = sphi 0, %s323
      %s338 = sphi 0, %s324
      %s342 = sphi 0, %s342
      %s344 = sphi 0, %s342
      %s345 = sphi 0, %s344
      %s359 = sphi 0, %s345
      %s363 = sphi 0, %s363
      %s365 = sphi 0, %s363
      %s366 = sphi 0, %s365
      %s380 = sphi 0, %s366
      %s384 = sphi 0, %s384
      %s386 = sphi 0, %s384
      %s387 = sphi 0, %s386
      %s401 = sphi 0, %s387
      %s405 = sphi 0, %s405
      %s407 = sphi 0, %s405
      %s408 = sphi 0, %s407
      %s422 = sphi 0, %s408
      %s426 = sphi 0, %s426
      %s428 = sphi 0, %s426
      %s429 = sphi 0, %s428
      %s443 = sphi 0, %s429
      %s447 = sphi 0, %s447
      %s449 = sphi 0, %s447
      %s450 = sphi 0, %s449
      %s464 = sphi 0, %s450
      %s468 = sphi 0, %s468
      %s470 = sphi 0, %s468
      %s471 = sphi 0, %s470
      %s485 = sphi 0, %s471
      %s491 = sphi 0, %s493
      %s494 = sphi 0, %s491
      %s495 = sphi 0, %s494
      %s511 = sphi 0, %s495
    $region4: #{tpu_custom_call.1} parent=1 // loop_header_branch
      %44 = sbr.rel (%p42) target = $region8
    $region5: #{tpu_custom_call.1} parent=1 // loop_body
      %s46 = ssub.s32 %s41, 1
      %s47 = ssub.s32 %s41, 2
      %s48 = sadd.s32 %s41, 1
      %s49 = ssub.s32 %s41, %s48
      %p50 = scmp.eq.s32.totalorder %s49, 0
      %s52 = sadd.s32 %s51, 1
      %s53 = scalar_select %p50, %s51, %s52
      %p56 = pneg %p50
      %p57 = scmp.eq.s32.totalorder %s41, 1
      %p58 = por %p56, %p57
      %p59 = scmp.ne.s32.totalorder %s51, %s54
      %p60 = scmp.eq.s32.totalorder %s41, 0
      %p61 = por %p59, %p60
      %p62 = scmp.ne.s32.totalorder %s51, %s54
      %p63 = scmp.eq.s32.totalorder %s46, 1
      %p64 = por %p62, %p63
      %p65 = scmp.ne.s32.totalorder %s54, %s55
      %p66 = scmp.eq.s32.totalorder %s46, 0
      %p67 = por %p65, %p66
      %p68 = scmp.ne.s32.totalorder %s54, %s55
      %p69 = scmp.eq.s32.totalorder %s47, 1
      %p70 = por %p68, %p69
      %p72 = scmp.ne.s32.totalorder %s55, %s71
      %p73 = scmp.eq.s32.totalorder %s47, 0
      %p74 = por %p72, %p73
      %s75 = ssub.s32 %s41, %s48
      %p76 = scmp.eq.s32.totalorder %s75, 0
      %s78 = sadd.s32 %s77, 1
      %s79 = scalar_select %p76, %s77, %s78
      %p82 = pneg %p76
      %p83 = scmp.eq.s32.totalorder %s41, 1
      %p84 = por %p82, %p83
      %p85 = scmp.ne.s32.totalorder %s77, %s80
      %p86 = scmp.eq.s32.totalorder %s41, 0
      %p87 = por %p85, %p86
      %p88 = scmp.ne.s32.totalorder %s77, %s80
      %p89 = scmp.eq.s32.totalorder %s46, 1
      %p90 = por %p88, %p89
      %p91 = scmp.ne.s32.totalorder %s80, %s81
      %p92 = scmp.eq.s32.totalorder %s46, 0
      %p93 = por %p91, %p92
      %p94 = scmp.ne.s32.totalorder %s80, %s81
      %p95 = scmp.eq.s32.totalorder %s47, 1
      %p96 = por %p94, %p95
      %p98 = scmp.ne.s32.totalorder %s81, %s97
      %p99 = scmp.eq.s32.totalorder %s47, 0
      %p100 = por %p98, %p99
      %s101 = ssub.s32 %s41, %s48
      %p102 = scmp.eq.s32.totalorder %s101, 0
      %s104 = sadd.s32 %s103, 1
      %s105 = scalar_select %p102, %s103, %s104
      %p108 = pneg %p102
      %p109 = scmp.eq.s32.totalorder %s41, 1
      %p110 = por %p108, %p109
      %p111 = scmp.ne.s32.totalorder %s103, %s106
      %p112 = scmp.eq.s32.totalorder %s41, 0
      %p113 = por %p111, %p112
      %p114 = scmp.ne.s32.totalorder %s103, %s106
      %p115 = scmp.eq.s32.totalorder %s46, 1
      %p116 = por %p114, %p115
      %p117 = scmp.ne.s32.totalorder %s106, %s107
      %p118 = scmp.eq.s32.totalorder %s46, 0
      %p119 = por %p117, %p118
      %p120 = scmp.ne.s32.totalorder %s106, %s107
      %p121 = scmp.eq.s32.totalorder %s47, 1
      %p122 = por %p120, %p121
      %p124 = scmp.ne.s32.totalorder %s107, %s123
      %p125 = scmp.eq.s32.totalorder %s47, 0
      %p126 = por %p124, %p125
      %s127 = ssub.s32 %s41, %s48
      %p128 = scmp.eq.s32.totalorder %s127, 0
      %s130 = sadd.s32 %s129, 1
      %s131 = scalar_select %p128, %s129, %s130
      %p134 = pneg %p128
      %p135 = scmp.eq.s32.totalorder %s41, 1
      %p136 = por %p134, %p135
      %p137 = scmp.ne.s32.totalorder %s129, %s132
      %p138 = scmp.eq.s32.totalorder %s41, 0
      %p139 = por %p137, %p138
      %p140 = scmp.ne.s32.totalorder %s129, %s132
      %p141 = scmp.eq.s32.totalorder %s46, 1
      %p142 = por %p140, %p141
      %p143 = scmp.ne.s32.totalorder %s132, %s133
      %p144 = scmp.eq.s32.totalorder %s46, 0
      %p145 = por %p143, %p144
      %p146 = scmp.ne.s32.totalorder %s132, %s133
      %p147 = scmp.eq.s32.totalorder %s47, 1
      %p148 = por %p146, %p147
      %p150 = scmp.ne.s32.totalorder %s133, %s149
      %p151 = scmp.eq.s32.totalorder %s47, 0
      %p152 = por %p150, %p151
      %s154 = sadd.s32 %s153, 1
      %p157 = scmp.eq.s32.totalorder %s41, 1
      %p158 = scmp.ne.s32.totalorder %s153, %s155
      %p159 = scmp.eq.s32.totalorder %s41, 0
      %p160 = por %p158, %p159
      %p161 = scmp.ne.s32.totalorder %s153, %s155
      %p162 = scmp.eq.s32.totalorder %s46, 1
      %p163 = por %p161, %p162
      %p164 = scmp.ne.s32.totalorder %s155, %s156
      %p165 = scmp.eq.s32.totalorder %s46, 0
      %p166 = por %p164, %p165
      %p167 = scmp.ne.s32.totalorder %s155, %s156
      %p168 = scmp.eq.s32.totalorder %s47, 1
      %p169 = por %p167, %p168
      %p171 = scmp.ne.s32.totalorder %s156, %s170
      %p172 = scmp.eq.s32.totalorder %s47, 0
      %p173 = por %p171, %p172
      %s175 = sadd.s32 %s174, 1
      %p178 = scmp.eq.s32.totalorder %s41, 1
      %p179 = scmp.ne.s32.totalorder %s174, %s176
      %p180 = scmp.eq.s32.totalorder %s41, 0
      %p181 = por %p179, %p180
      %p182 = scmp.ne.s32.totalorder %s174, %s176
      %p183 = scmp.eq.s32.totalorder %s46, 1
      %p184 = por %p182, %p183
      %p185 = scmp.ne.s32.totalorder %s176, %s177
      %p186 = scmp.eq.s32.totalorder %s46, 0
      %p187 = por %p185, %p186
      %p188 = scmp.ne.s32.totalorder %s176, %s177
      %p189 = scmp.eq.s32.totalorder %s47, 1
      %p190 = por %p188, %p189
      %p192 = scmp.ne.s32.totalorder %s177, %s191
      %p193 = scmp.eq.s32.totalorder %s47, 0
      %p194 = por %p192, %p193
      %s196 = sadd.s32 %s195, 1
      %p199 = scmp.eq.s32.totalorder %s41, 1
      %p200 = scmp.ne.s32.totalorder %s195, %s197
      %p201 = scmp.eq.s32.totalorder %s41, 0
      %p202 = por %p200, %p201
      %p203 = scmp.ne.s32.totalorder %s195, %s197
      %p204 = scmp.eq.s32.totalorder %s46, 1
      %p205 = por %p203, %p204
      %p206 = scmp.ne.s32.totalorder %s197, %s198
      %p207 = scmp.eq.s32.totalorder %s46, 0
      %p208 = por %p206, %p207
      %p209 = scmp.ne.s32.totalorder %s197, %s198
      %p210 = scmp.eq.s32.totalorder %s47, 1
      %p211 = por %p209, %p210
      %p213 = scmp.ne.s32.totalorder %s198, %s212
      %p214 = scmp.eq.s32.totalorder %s47, 0
      %p215 = por %p213, %p214
      %s217 = sadd.s32 %s216, 1
      %p220 = scmp.eq.s32.totalorder %s41, 1
      %p221 = scmp.ne.s32.totalorder %s216, %s218
      %p222 = scmp.eq.s32.totalorder %s41, 0
      %p223 = por %p221, %p222
      %p224 = scmp.ne.s32.totalorder %s216, %s218
      %p225 = scmp.eq.s32.totalorder %s46, 1
      %p226 = por %p224, %p225
      %p227 = scmp.ne.s32.totalorder %s218, %s219
      %p228 = scmp.eq.s32.totalorder %s46, 0
      %p229 = por %p227, %p228
      %p230 = scmp.ne.s32.totalorder %s218, %s219
      %p231 = scmp.eq.s32.totalorder %s47, 1
      %p232 = por %p230, %p231
      %p234 = scmp.ne.s32.totalorder %s219, %s233
      %p235 = scmp.eq.s32.totalorder %s47, 0
      %p236 = por %p234, %p235
      %s238 = sadd.s32 %s237, 1
      %p241 = scmp.eq.s32.totalorder %s41, 1
      %p242 = scmp.ne.s32.totalorder %s237, %s239
      %p243 = scmp.eq.s32.totalorder %s41, 0
      %p244 = por %p242, %p243
      %p245 = scmp.ne.s32.totalorder %s237, %s239
      %p246 = scmp.eq.s32.totalorder %s46, 1
      %p247 = por %p245, %p246
      %p248 = scmp.ne.s32.totalorder %s239, %s240
      %p249 = scmp.eq.s32.totalorder %s46, 0
      %p250 = por %p248, %p249
      %p251 = scmp.ne.s32.totalorder %s239, %s240
      %p252 = scmp.eq.s32.totalorder %s47, 1
      %p253 = por %p251, %p252
      %p255 = scmp.ne.s32.totalorder %s240, %s254
      %p256 = scmp.eq.s32.totalorder %s47, 0
      %p257 = por %p255, %p256
      %s259 = sadd.s32 %s258, 1
      %p262 = scmp.eq.s32.totalorder %s41, 1
      %p263 = scmp.ne.s32.totalorder %s258, %s260
      %p264 = scmp.eq.s32.totalorder %s41, 0
      %p265 = por %p263, %p264
      %p266 = scmp.ne.s32.totalorder %s258, %s260
      %p267 = scmp.eq.s32.totalorder %s46, 1
      %p268 = por %p266, %p267
      %p269 = scmp.ne.s32.totalorder %s260, %s261
      %p270 = scmp.eq.s32.totalorder %s46, 0
      %p271 = por %p269, %p270
      %p272 = scmp.ne.s32.totalorder %s260, %s261
      %p273 = scmp.eq.s32.totalorder %s47, 1
      %p274 = por %p272, %p273
      %p276 = scmp.ne.s32.totalorder %s261, %s275
      %p277 = scmp.eq.s32.totalorder %s47, 0
      %p278 = por %p276, %p277
      %s280 = sadd.s32 %s279, 1
      %p283 = scmp.eq.s32.totalorder %s41, 1
      %p284 = scmp.ne.s32.totalorder %s279, %s281
      %p285 = scmp.eq.s32.totalorder %s41, 0
      %p286 = por %p284, %p285
      %p287 = scmp.ne.s32.totalorder %s279, %s281
      %p288 = scmp.eq.s32.totalorder %s46, 1
      %p289 = por %p287, %p288
      %p290 = scmp.ne.s32.totalorder %s281, %s282
      %p291 = scmp.eq.s32.totalorder %s46, 0
      %p292 = por %p290, %p291
      %p293 = scmp.ne.s32.totalorder %s281, %s282
      %p294 = scmp.eq.s32.totalorder %s47, 1
      %p295 = por %p293, %p294
      %p297 = scmp.ne.s32.totalorder %s282, %s296
      %p298 = scmp.eq.s32.totalorder %s47, 0
      %p299 = por %p297, %p298
      %s301 = sadd.s32 %s300, 1
      %p304 = scmp.eq.s32.totalorder %s41, 1
      %p305 = scmp.ne.s32.totalorder %s300, %s302
      %p306 = scmp.eq.s32.totalorder %s41, 0
      %p307 = por %p305, %p306
      %p308 = scmp.ne.s32.totalorder %s300, %s302
      %p309 = scmp.eq.s32.totalorder %s46, 1
      %p310 = por %p308, %p309
      %p311 = scmp.ne.s32.totalorder %s302, %s303
      %p312 = scmp.eq.s32.totalorder %s46, 0
      %p313 = por %p311, %p312
      %p314 = scmp.ne.s32.totalorder %s302, %s303
      %p315 = scmp.eq.s32.totalorder %s47, 1
      %p316 = por %p314, %p315
      %p318 = scmp.ne.s32.totalorder %s303, %s317
      %p319 = scmp.eq.s32.totalorder %s47, 0
      %p320 = por %p318, %p319
      %s322 = sadd.s32 %s321, 1
      %p325 = scmp.eq.s32.totalorder %s41, 1
      %p326 = scmp.ne.s32.totalorder %s321, %s323
      %p327 = scmp.eq.s32.totalorder %s41, 0
      %p328 = por %p326, %p327
      %p329 = scmp.ne.s32.totalorder %s321, %s323
      %p330 = scmp.eq.s32.totalorder %s46, 1
      %p331 = por %p329, %p330
      %p332 = scmp.ne.s32.totalorder %s323, %s324
      %p333 = scmp.eq.s32.totalorder %s46, 0
      %p334 = por %p332, %p333
      %p335 = scmp.ne.s32.totalorder %s323, %s324
      %p336 = scmp.eq.s32.totalorder %s47, 1
      %p337 = por %p335, %p336
      %p339 = scmp.ne.s32.totalorder %s324, %s338
      %p340 = scmp.eq.s32.totalorder %s47, 0
      %p341 = por %p339, %p340
      %s343 = sadd.s32 %s342, 1
      %p346 = scmp.eq.s32.totalorder %s41, 1
      %p347 = scmp.ne.s32.totalorder %s342, %s344
      %p348 = scmp.eq.s32.totalorder %s41, 0
      %p349 = por %p347, %p348
      %p350 = scmp.ne.s32.totalorder %s342, %s344
      %p351 = scmp.eq.s32.totalorder %s46, 1
      %p352 = por %p350, %p351
      %p353 = scmp.ne.s32.totalorder %s344, %s345
      %p354 = scmp.eq.s32.totalorder %s46, 0
      %p355 = por %p353, %p354
      %p356 = scmp.ne.s32.totalorder %s344, %s345
      %p357 = scmp.eq.s32.totalorder %s47, 1
      %p358 = por %p356, %p357
      %p360 = scmp.ne.s32.totalorder %s345, %s359
      %p361 = scmp.eq.s32.totalorder %s47, 0
      %p362 = por %p360, %p361
      %s364 = sadd.s32 %s363, 1
      %p367 = scmp.eq.s32.totalorder %s41, 1
      %p368 = scmp.ne.s32.totalorder %s363, %s365
      %p369 = scmp.eq.s32.totalorder %s41, 0
      %p370 = por %p368, %p369
      %p371 = scmp.ne.s32.totalorder %s363, %s365
      %p372 = scmp.eq.s32.totalorder %s46, 1
      %p373 = por %p371, %p372
      %p374 = scmp.ne.s32.totalorder %s365, %s366
      %p375 = scmp.eq.s32.totalorder %s46, 0
      %p376 = por %p374, %p375
      %p377 = scmp.ne.s32.totalorder %s365, %s366
      %p378 = scmp.eq.s32.totalorder %s47, 1
      %p379 = por %p377, %p378
      %p381 = scmp.ne.s32.totalorder %s366, %s380
      %p382 = scmp.eq.s32.totalorder %s47, 0
      %p383 = por %p381, %p382
      %s385 = sadd.s32 %s384, 1
      %p388 = scmp.eq.s32.totalorder %s41, 1
      %p389 = scmp.ne.s32.totalorder %s384, %s386
      %p390 = scmp.eq.s32.totalorder %s41, 0
      %p391 = por %p389, %p390
      %p392 = scmp.ne.s32.totalorder %s384, %s386
      %p393 = scmp.eq.s32.totalorder %s46, 1
      %p394 = por %p392, %p393
      %p395 = scmp.ne.s32.totalorder %s386, %s387
      %p396 = scmp.eq.s32.totalorder %s46, 0
      %p397 = por %p395, %p396
      %p398 = scmp.ne.s32.totalorder %s386, %s387
      %p399 = scmp.eq.s32.totalorder %s47, 1
      %p400 = por %p398, %p399
      %p402 = scmp.ne.s32.totalorder %s387, %s401
      %p403 = scmp.eq.s32.totalorder %s47, 0
      %p404 = por %p402, %p403
      %s406 = sadd.s32 %s405, 1
      %p409 = scmp.eq.s32.totalorder %s41, 1
      %p410 = scmp.ne.s32.totalorder %s405, %s407
      %p411 = scmp.eq.s32.totalorder %s41, 0
      %p412 = por %p410, %p411
      %p413 = scmp.ne.s32.totalorder %s405, %s407
      %p414 = scmp.eq.s32.totalorder %s46, 1
      %p415 = por %p413, %p414
      %p416 = scmp.ne.s32.totalorder %s407, %s408
      %p417 = scmp.eq.s32.totalorder %s46, 0
      %p418 = por %p416, %p417
      %p419 = scmp.ne.s32.totalorder %s407, %s408
      %p420 = scmp.eq.s32.totalorder %s47, 1
      %p421 = por %p419, %p420
      %p423 = scmp.ne.s32.totalorder %s408, %s422
      %p424 = scmp.eq.s32.totalorder %s47, 0
      %p425 = por %p423, %p424
      %s427 = sadd.s32 %s426, 1
      %p430 = scmp.eq.s32.totalorder %s41, 1
      %p431 = scmp.ne.s32.totalorder %s426, %s428
      %p432 = scmp.eq.s32.totalorder %s41, 0
      %p433 = por %p431, %p432
      %p434 = scmp.ne.s32.totalorder %s426, %s428
      %p435 = scmp.eq.s32.totalorder %s46, 1
      %p436 = por %p434, %p435
      %p437 = scmp.ne.s32.totalorder %s428, %s429
      %p438 = scmp.eq.s32.totalorder %s46, 0
      %p439 = por %p437, %p438
      %p440 = scmp.ne.s32.totalorder %s428, %s429
      %p441 = scmp.eq.s32.totalorder %s47, 1
      %p442 = por %p440, %p441
      %p444 = scmp.ne.s32.totalorder %s429, %s443
      %p445 = scmp.eq.s32.totalorder %s47, 0
      %p446 = por %p444, %p445
      %s448 = sadd.s32 %s447, 1
      %p451 = scmp.eq.s32.totalorder %s41, 1
      %p452 = scmp.ne.s32.totalorder %s447, %s449
      %p453 = scmp.eq.s32.totalorder %s41, 0
      %p454 = por %p452, %p453
      %p455 = scmp.ne.s32.totalorder %s447, %s449
      %p456 = scmp.eq.s32.totalorder %s46, 1
      %p457 = por %p455, %p456
      %p458 = scmp.ne.s32.totalorder %s449, %s450
      %p459 = scmp.eq.s32.totalorder %s46, 0
      %p460 = por %p458, %p459
      %p461 = scmp.ne.s32.totalorder %s449, %s450
      %p462 = scmp.eq.s32.totalorder %s47, 1
      %p463 = por %p461, %p462
      %p465 = scmp.ne.s32.totalorder %s450, %s464
      %p466 = scmp.eq.s32.totalorder %s47, 0
      %p467 = por %p465, %p466
      %s469 = sadd.s32 %s468, 1
      %p472 = scmp.eq.s32.totalorder %s41, 1
      %p473 = scmp.ne.s32.totalorder %s468, %s470
      %p474 = scmp.eq.s32.totalorder %s41, 0
      %p475 = por %p473, %p474
      %p476 = scmp.ne.s32.totalorder %s468, %s470
      %p477 = scmp.eq.s32.totalorder %s46, 1
      %p478 = por %p476, %p477
      %p479 = scmp.ne.s32.totalorder %s470, %s471
      %p480 = scmp.eq.s32.totalorder %s46, 0
      %p481 = por %p479, %p480
      %p482 = scmp.ne.s32.totalorder %s470, %s471
      %p483 = scmp.eq.s32.totalorder %s47, 1
      %p484 = por %p482, %p483
      %p486 = scmp.ne.s32.totalorder %s471, %s485
      %p487 = scmp.eq.s32.totalorder %s47, 0
      %p488 = por %p486, %p487
      %s489 = ssub.s32 %s41, %s48
      %p490 = scmp.eq.s32.totalorder %s489, 0
      %s492 = sadd.s32 %s491, 1
      %s493 = scalar_select %p490, %s491, %s492
      %p496 = pneg %p490
      %p497 = scmp.eq.s32.totalorder %s41, 1
      %p498 = por %p496, %p497
      %p499 = scmp.ne.s32.totalorder %s491, %s494
      %p500 = scmp.eq.s32.totalorder %s41, 0
      %p501 = por %p499, %p500
      %p502 = scmp.ne.s32.totalorder %s491, %s494
      %p503 = scmp.eq.s32.totalorder %s46, 1
      %p504 = por %p502, %p503
      %p505 = scmp.ne.s32.totalorder %s494, %s495
      %p506 = scmp.eq.s32.totalorder %s46, 0
      %p507 = por %p505, %p506
      %p508 = scmp.ne.s32.totalorder %s494, %s495
      %p509 = scmp.eq.s32.totalorder %s47, 1
      %p510 = por %p508, %p509
      %p512 = scmp.ne.s32.totalorder %s495, %s511
      %p513 = scmp.eq.s32.totalorder %s47, 0
      %p514 = por %p512, %p513
      %p515 = scmp.le.s32.totalorder 1, %s41
      %p516 = scmp.lt.s32.totalorder %s41, 3
      %p517 = pnand %p515, %p516
      %p518 = pneg %p517
      // Predicated region
      $region9: #{tpu_custom_call.1} parent=5 // pred_check
        _
      $region10: #{tpu_custom_call.1} parent=5 // pred_check_branch
        %520 = sbr.rel (%p517) target = $region12
      $region11: #{tpu_custom_call.1} parent=5 // pred_region
        %s521 = ssub.s32 %s41, 1
        // Predicated region
        $region13: #{tpu_custom_call.1} parent=11 // pred_check
          %p522 = pneg %p166
        $region14: #{tpu_custom_call.1} parent=11 // pred_check_branch
          %524 = sbr.rel (%p522) target = $region16
        $region15: #{tpu_custom_call.1} parent=11 // pred_region
          _
        $region16: #{tpu_custom_call.1} parent=11 // pred_fallthru
          _
        // Predicated region
        $region17: #{tpu_custom_call.1} parent=11 // pred_check
          %p525 = pneg %p187
        $region18: #{tpu_custom_call.1} parent=11 // pred_check_branch
          %527 = sbr.rel (%p525) target = $region20
        $region19: #{tpu_custom_call.1} parent=11 // pred_region
          _
        $region20: #{tpu_custom_call.1} parent=11 // pred_fallthru
          _
        // Predicated region
        $region21: #{tpu_custom_call.1} parent=11 // pred_check
          %p528 = pneg %p208
        $region22: #{tpu_custom_call.1} parent=11 // pred_check_branch
          %530 = sbr.rel (%p528) target = $region24
        $region23: #{tpu_custom_call.1} parent=11 // pred_region
          %s532 = ssub.s32 6144, 6144
          %533 = vsyncadd [#allocation9], %s532
          %s534 = sshll.u32 [#allocation10], 4
          %s535 = int_to_ptr.vmem [resolvable:$true] %s534
          %540 = dma.hbm_to_vmem [thread:$0]  %s6, 6144, %s535, [#allocation9], 384, 384, 24
        $region24: #{tpu_custom_call.1} parent=11 // pred_fallthru
          _
        // Predicated region
        $region25: #{tpu_custom_call.1} parent=11 // pred_check
          %p541 = pneg %p229
        $region26: #{tpu_custom_call.1} parent=11 // pred_check_branch
          %543 = sbr.rel (%p541) target = $region28
        $region27: #{tpu_custom_call.1} parent=11 // pred_region
          _
        $region28: #{tpu_custom_call.1} parent=11 // pred_fallthru
          _
        // Predicated region
        $region29: #{tpu_custom_call.1} parent=11 // pred_check
          %p544 = pneg %p250
        $region30: #{tpu_custom_call.1} parent=11 // pred_check_branch
          %546 = sbr.rel (%p544) target = $region32
        $region31: #{tpu_custom_call.1} parent=11 // pred_region
          %s548 = ssub.s32 2048, 2048
          %549 = vsyncadd [#allocation12], %s548
          %s550 = sshll.u32 [#allocation11], 4
          %s551 = int_to_ptr.vmem [resolvable:$true] %s550
          %556 = dma.hbm_to_vmem [thread:$0]  %s8, 2048, %s551, [#allocation12], 128, 128, 8
        $region32: #{tpu_custom_call.1} parent=11 // pred_fallthru
          _
        // Predicated region
        $region33: #{tpu_custom_call.1} parent=11 // pred_check
          %p557 = pneg %p271
        $region34: #{tpu_custom_call.1} parent=11 // pred_check_branch
          %559 = sbr.rel (%p557) target = $region36
        $region35: #{tpu_custom_call.1} parent=11 // pred_region
          _
        $region36: #{tpu_custom_call.1} parent=11 // pred_fallthru
          _
        // Predicated region
        $region37: #{tpu_custom_call.1} parent=11 // pred_check
          %p560 = pneg %p292
        $region38: #{tpu_custom_call.1} parent=11 // pred_check_branch
          %562 = sbr.rel (%p560) target = $region40
        $region39: #{tpu_custom_call.1} parent=11 // pred_region
          %s564 = ssub.s32 2048, 2048
          %565 = vsyncadd [#allocation12], %s564
          %s566 = sshll.u32 [#allocation13], 4
          %s567 = int_to_ptr.vmem [resolvable:$true] %s566
          %572 = dma.hbm_to_vmem [thread:$0]  %s10, 2048, %s567, [#allocation12], 128, 128, 8
        $region40: #{tpu_custom_call.1} parent=11 // pred_fallthru
          _
        // Predicated region
        $region41: #{tpu_custom_call.1} parent=11 // pred_check
          %p573 = pneg %p313
        $region42: #{tpu_custom_call.1} parent=11 // pred_check_branch
          %575 = sbr.rel (%p573) target = $region44
        $region43: #{tpu_custom_call.1} parent=11 // pred_region
          _
        $region44: #{tpu_custom_call.1} parent=11 // pred_fallthru
          _
        // Predicated region
        $region45: #{tpu_custom_call.1} parent=11 // pred_check
          %p576 = pneg %p334
        $region46: #{tpu_custom_call.1} parent=11 // pred_check_branch
          %578 = sbr.rel (%p576) target = $region48
        $region47: #{tpu_custom_call.1} parent=11 // pred_region
          %s580 = ssub.s32 4096, 4096
          %581 = vsyncadd [#allocation15], %s580
          %s582 = sshll.u32 [#allocation14], 4
          %s583 = int_to_ptr.vmem [resolvable:$true] %s582
          %588 = dma.hbm_to_vmem [thread:$0]  %s12, 4096, %s583, [#allocation15], 256, 256, 16
        $region48: #{tpu_custom_call.1} parent=11 // pred_fallthru
          _
        // Predicated region
        $region49: #{tpu_custom_call.1} parent=11 // pred_check
          %p589 = pneg %p355
        $region50: #{tpu_custom_call.1} parent=11 // pred_check_branch
          %591 = sbr.rel (%p589) target = $region52
        $region51: #{tpu_custom_call.1} parent=11 // pred_region
          _
        $region52: #{tpu_custom_call.1} parent=11 // pred_fallthru
          _
        // Predicated region
        $region53: #{tpu_custom_call.1} parent=11 // pred_check
          %p592 = pneg %p376
        $region54: #{tpu_custom_call.1} parent=11 // pred_check_branch
          %594 = sbr.rel (%p592) target = $region56
        $region55: #{tpu_custom_call.1} parent=11 // pred_region
          %s596 = ssub.s32 2048, 2048
          %597 = vsyncadd [#allocation15], %s596
          %s598 = sshll.u32 [#allocation16], 4
          %s599 = int_to_ptr.vmem [resolvable:$true] %s598
          %604 = dma.hbm_to_vmem [thread:$0]  %s14, 2048, %s599, [#allocation15], 128, 128, 8
        $region56: #{tpu_custom_call.1} parent=11 // pred_fallthru
          _
        // Predicated region
        $region57: #{tpu_custom_call.1} parent=11 // pred_check
          %p605 = pneg %p397
        $region58: #{tpu_custom_call.1} parent=11 // pred_check_branch
          %607 = sbr.rel (%p605) target = $region60
        $region59: #{tpu_custom_call.1} parent=11 // pred_region
          _
        $region60: #{tpu_custom_call.1} parent=11 // pred_fallthru
          _
        // Predicated region
        $region61: #{tpu_custom_call.1} parent=11 // pred_check
          %p608 = pneg %p418
        $region62: #{tpu_custom_call.1} parent=11 // pred_check_branch
          %610 = sbr.rel (%p608) target = $region64
        $region63: #{tpu_custom_call.1} parent=11 // pred_region
          %s612 = ssub.s32 4096, 4096
          %613 = vsyncadd [#allocation18], %s612
          %s614 = sshll.u32 [#allocation17], 4
          %s615 = int_to_ptr.vmem [resolvable:$true] %s614
          %620 = dma.hbm_to_vmem [thread:$0]  %s16, 4096, %s615, [#allocation18], 256, 256, 16
        $region64: #{tpu_custom_call.1} parent=11 // pred_fallthru
          _
        // Predicated region
        $region65: #{tpu_custom_call.1} parent=11 // pred_check
          %p621 = pneg %p439
        $region66: #{tpu_custom_call.1} parent=11 // pred_check_branch
          %623 = sbr.rel (%p621) target = $region68
        $region67: #{tpu_custom_call.1} parent=11 // pred_region
          _
        $region68: #{tpu_custom_call.1} parent=11 // pred_fallthru
          _
        // Predicated region
        $region69: #{tpu_custom_call.1} parent=11 // pred_check
          %p624 = pneg %p460
        $region70: #{tpu_custom_call.1} parent=11 // pred_check_branch
          %626 = sbr.rel (%p624) target = $region72
        $region71: #{tpu_custom_call.1} parent=11 // pred_region
          %s628 = ssub.s32 4096, 4096
          %629 = vsyncadd [#allocation18], %s628
          %s630 = sshll.u32 [#allocation19], 4
          %s631 = int_to_ptr.vmem [resolvable:$true] %s630
          %636 = dma.hbm_to_vmem [thread:$0]  %s18, 4096, %s631, [#allocation18], 128, 128, 8
        $region72: #{tpu_custom_call.1} parent=11 // pred_fallthru
          _
        // Predicated region
        $region73: #{tpu_custom_call.1} parent=11 // pred_check
          %p637 = pneg %p481
        $region74: #{tpu_custom_call.1} parent=11 // pred_check_branch
          %639 = sbr.rel (%p637) target = $region76
        $region75: #{tpu_custom_call.1} parent=11 // pred_region
          _
        $region76: #{tpu_custom_call.1} parent=11 // pred_fallthru
          _
      $region12: #{tpu_custom_call.1} parent=5 // pred_fallthru
        _
      %p640 = scmp.lt.s32.totalorder %s41, 2
      // Predicated region
      $region77: #{tpu_custom_call.1} parent=5 // pred_check
        %p641 = pneg %p640
      $region78: #{tpu_custom_call.1} parent=5 // pred_check_branch
        %643 = sbr.rel (%p641) target = $region80
      $region79: #{tpu_custom_call.1} parent=5 // pred_region
        // Predicated region
        $region81: #{tpu_custom_call.1} parent=79 // pred_check
          %p644 = pneg %p61
        $region82: #{tpu_custom_call.1} parent=79 // pred_check_branch
          %646 = sbr.rel (%p644) target = $region84
        $region83: #{tpu_custom_call.1} parent=79 // pred_region
          %s647 = sand.u32 %s51, 1
          %s648 = scalar_lea.sflag [#allocation3], %s647
          %s649 = sand.u32 %s51, 1
          %s650 = smul.addr %s649, 8
          %s651 = scalar_lea.vmem [#allocation2], %s650
          %s653 = ssub.s32 128, 128
          %654 = vsyncadd %s648, %s653
          %s655 = smul.addr %s41, 128
          %s656 = scalar_lea.hbm %s0, %s655
          %s658 = sshll.u32 %s651, 4
          %s659 = int_to_ptr.vmem [resolvable:$true] %s658
          %661 = dma.hbm_to_vmem [thread:$0]  %s656, 128, %s659, %s648
        $region84: #{tpu_custom_call.1} parent=79 // pred_fallthru
          _
        // Predicated region
        $region85: #{tpu_custom_call.1} parent=79 // pred_check
          %p662 = pneg %p87
        $region86: #{tpu_custom_call.1} parent=79 // pred_check_branch
          %664 = sbr.rel (%p662) target = $region88
        $region87: #{tpu_custom_call.1} parent=79 // pred_region
          %s665 = sand.u32 %s41, 1
          %s666 = scalar_lea.sflag [#allocation6], %s665
          %s667 = sand.u32 %s77, 1
          %s668 = smul.addr %s667, 16
          %s669 = scalar_lea.vmem [#allocation5], %s668
          %s671 = ssub.s32 256, 256
          %672 = vsyncadd %s666, %s671
          %s673 = smul.addr %s41, 2
          %s674 = smul.addr %s673, 128
          %s675 = scalar_lea.hbm %s1, %s674
          %s676 = sshll.u32 %s669, 4
          %s677 = int_to_ptr.vmem [resolvable:$true] %s676
          %682 = dma.hbm_to_vmem [thread:$0]  %s675, 256, %s677, %s666, 128, 128, 8
        $region88: #{tpu_custom_call.1} parent=79 // pred_fallthru
          _
        // Predicated region
        $region89: #{tpu_custom_call.1} parent=79 // pred_check
          %p683 = pneg %p113
        $region90: #{tpu_custom_call.1} parent=79 // pred_check_branch
          %685 = sbr.rel (%p683) target = $region92
        $region91: #{tpu_custom_call.1} parent=79 // pred_region
          %s686 = sand.u32 %s41, 1
          %s687 = scalar_lea.sflag [#allocation6], %s686
          %s688 = sand.u32 %s103, 1
          %s689 = smul.addr %s688, 8
          %s690 = scalar_lea.vmem [#allocation7], %s689
          %s692 = ssub.s32 128, 128
          %693 = vsyncadd %s687, %s692
          %s694 = smul.addr %s41, 128
          %s695 = scalar_lea.hbm %s2, %s694
          %s697 = sshll.u32 %s690, 4
          %s698 = int_to_ptr.vmem [resolvable:$true] %s697
          %700 = dma.hbm_to_vmem [thread:$0]  %s695, 128, %s698, %s687
        $region92: #{tpu_custom_call.1} parent=79 // pred_fallthru
          _
        // Predicated region
        $region93: #{tpu_custom_call.1} parent=79 // pred_check
          %p701 = pneg %p139
        $region94: #{tpu_custom_call.1} parent=79 // pred_check_branch
          %703 = sbr.rel (%p701) target = $region96
        $region95: #{tpu_custom_call.1} parent=79 // pred_region
          %s704 = sand.u32 %s41, 1
          %s705 = scalar_lea.sflag [#allocation9], %s704
          %s706 = sand.u32 %s129, 1
          %s707 = smul.addr %s706, 8
          %s708 = scalar_lea.vmem [#allocation8], %s707
          %s710 = ssub.s32 128, 128
          %711 = vsyncadd %s705, %s710
          %s712 = smul.addr %s41, 128
          %s713 = scalar_lea.hbm %s3, %s712
          %s715 = sshll.u32 %s708, 4
          %s716 = int_to_ptr.vmem [resolvable:$true] %s715
          %718 = dma.hbm_to_vmem [thread:$0]  %s713, 128, %s716, %s705
        $region96: #{tpu_custom_call.1} parent=79 // pred_fallthru
          _
      $region80: #{tpu_custom_call.1} parent=5 // pred_fallthru
        _
      %p719 = scmp.le.s32.totalorder 1, %s41
      %p720 = scmp.lt.s32.totalorder %s41, 3
      %p721 = pnand %p719, %p720
      %p722 = pneg %p721
      // Predicated region
      $region97: #{tpu_custom_call.1} parent=5 // pred_check
        _
      $region98: #{tpu_custom_call.1} parent=5 // pred_check_branch
        %724 = sbr.rel (%p721) target = $region100
      $region99: #{tpu_custom_call.1} parent=5 // pred_region
        %s725 = ssub.s32 %s41, 1
        %s726 = sand.u32 %s54, 1
        %s727 = scalar_lea.sflag [#allocation3], %s726
        %s728 = sand.u32 %s54, 1
        %s729 = smul.addr %s728, 8
        %s730 = scalar_lea.vmem [#allocation2], %s729
        // Predicated region
        $region101: #{tpu_custom_call.1} parent=99 // pred_check
          %p731 = pneg %p67
        $region102: #{tpu_custom_call.1} parent=99 // pred_check_branch
          %733 = sbr.rel (%p731) target = $region104
        $region103: #{tpu_custom_call.1} parent=99 // pred_region
          %734 = dma.done %s727, 128
        $region104: #{tpu_custom_call.1} parent=99 // pred_fallthru
          _
        %s735 = sand.u32 %s46, 1
        %s736 = scalar_lea.sflag [#allocation6], %s735
        %s737 = sand.u32 %s80, 1
        %s738 = smul.addr %s737, 16
        %s739 = scalar_lea.vmem [#allocation5], %s738
        // Predicated region
        $region105: #{tpu_custom_call.1} parent=99 // pred_check
          %p740 = pneg %p93
        $region106: #{tpu_custom_call.1} parent=99 // pred_check_branch
          %742 = sbr.rel (%p740) target = $region108
        $region107: #{tpu_custom_call.1} parent=99 // pred_region
          %743 = dma.done %s736, 256
        $region108: #{tpu_custom_call.1} parent=99 // pred_fallthru
          _
        %s744 = sand.u32 %s46, 1
        %s745 = scalar_lea.sflag [#allocation6], %s744
        %s746 = sand.u32 %s106, 1
        %s747 = smul.addr %s746, 8
        %s748 = scalar_lea.vmem [#allocation7], %s747
        // Predicated region
        $region109: #{tpu_custom_call.1} parent=99 // pred_check
          %p749 = pneg %p119
        $region110: #{tpu_custom_call.1} parent=99 // pred_check_branch
          %751 = sbr.rel (%p749) target = $region112
        $region111: #{tpu_custom_call.1} parent=99 // pred_region
          %752 = dma.done %s745, 128
        $region112: #{tpu_custom_call.1} parent=99 // pred_fallthru
          _
        %s753 = sand.u32 %s46, 1
        %s754 = scalar_lea.sflag [#allocation9], %s753
        %s755 = sand.u32 %s132, 1
        %s756 = smul.addr %s755, 8
        %s757 = scalar_lea.vmem [#allocation8], %s756
        // Predicated region
        $region113: #{tpu_custom_call.1} parent=99 // pred_check
          %p758 = pneg %p145
        $region114: #{tpu_custom_call.1} parent=99 // pred_check_branch
          %760 = sbr.rel (%p758) target = $region116
        $region115: #{tpu_custom_call.1} parent=99 // pred_region
          %761 = dma.done %s754, 128
        $region116: #{tpu_custom_call.1} parent=99 // pred_fallthru
          _
        // Predicated region
        $region117: #{tpu_custom_call.1} parent=99 // pred_check
          %p762 = pneg %p208
        $region118: #{tpu_custom_call.1} parent=99 // pred_check_branch
          %764 = sbr.rel (%p762) target = $region120
        $region119: #{tpu_custom_call.1} parent=99 // pred_region
          %765 = dma.done [#allocation9], 6144
        $region120: #{tpu_custom_call.1} parent=99 // pred_fallthru
          _
        // Predicated region
        $region121: #{tpu_custom_call.1} parent=99 // pred_check
          %p766 = pneg %p250
        $region122: #{tpu_custom_call.1} parent=99 // pred_check_branch
          %768 = sbr.rel (%p766) target = $region124
        $region123: #{tpu_custom_call.1} parent=99 // pred_region
          %769 = dma.done [#allocation12], 2048
        $region124: #{tpu_custom_call.1} parent=99 // pred_fallthru
          _
        // Predicated region
        $region125: #{tpu_custom_call.1} parent=99 // pred_check
          %p770 = pneg %p292
        $region126: #{tpu_custom_call.1} parent=99 // pred_check_branch
          %772 = sbr.rel (%p770) target = $region128
        $region127: #{tpu_custom_call.1} parent=99 // pred_region
          %773 = dma.done [#allocation12], 2048
        $region128: #{tpu_custom_call.1} parent=99 // pred_fallthru
          _
        // Predicated region
        $region129: #{tpu_custom_call.1} parent=99 // pred_check
          %p774 = pneg %p334
        $region130: #{tpu_custom_call.1} parent=99 // pred_check_branch
          %776 = sbr.rel (%p774) target = $region132
        $region131: #{tpu_custom_call.1} parent=99 // pred_region
          %777 = dma.done [#allocation15], 4096
        $region132: #{tpu_custom_call.1} parent=99 // pred_fallthru
          _
        // Predicated region
        $region133: #{tpu_custom_call.1} parent=99 // pred_check
          %p778 = pneg %p376
        $region134: #{tpu_custom_call.1} parent=99 // pred_check_branch
          %780 = sbr.rel (%p778) target = $region136
        $region135: #{tpu_custom_call.1} parent=99 // pred_region
          %781 = dma.done [#allocation15], 2048
        $region136: #{tpu_custom_call.1} parent=99 // pred_fallthru
          _
        // Predicated region
        $region137: #{tpu_custom_call.1} parent=99 // pred_check
          %p782 = pneg %p418
        $region138: #{tpu_custom_call.1} parent=99 // pred_check_branch
          %784 = sbr.rel (%p782) target = $region140
        $region139: #{tpu_custom_call.1} parent=99 // pred_region
          %785 = dma.done [#allocation18], 4096
        $region140: #{tpu_custom_call.1} parent=99 // pred_fallthru
          _
        // Predicated region
        $region141: #{tpu_custom_call.1} parent=99 // pred_check
          %p786 = pneg %p460
        $region142: #{tpu_custom_call.1} parent=99 // pred_check_branch
          %788 = sbr.rel (%p786) target = $region144
        $region143: #{tpu_custom_call.1} parent=99 // pred_region
          %789 = dma.done [#allocation18], 4096
        $region144: #{tpu_custom_call.1} parent=99 // pred_fallthru
          _
        %s790 = sand.u32 %s54, 1
        %s791 = scalar_lea.sflag [#allocation3], %s790
        %s792 = sand.u32 %s54, 1
        %s793 = smul.addr %s792, 8
        %s794 = scalar_lea.vmem [#allocation2], %s793
        %p795 = pneg %p67
        %p796 = pneg %p64
        %s797 = sand.u32 %s46, 1
        %s798 = scalar_lea.sflag [#allocation6], %s797
        %s799 = sand.u32 %s80, 1
        %s800 = smul.addr %s799, 16
        %s801 = scalar_lea.vmem [#allocation5], %s800
        %p802 = pneg %p93
        %p803 = pneg %p90
        %s804 = sand.u32 %s46, 1
        %s805 = scalar_lea.sflag [#allocation6], %s804
        %s806 = sand.u32 %s106, 1
        %s807 = smul.addr %s806, 8
        %s808 = scalar_lea.vmem [#allocation7], %s807
        %p809 = pneg %p119
        %p810 = pneg %p116
        %s811 = sand.u32 %s46, 1
        %s812 = scalar_lea.sflag [#allocation9], %s811
        %s813 = sand.u32 %s132, 1
        %s814 = smul.addr %s813, 8
        %s815 = scalar_lea.vmem [#allocation8], %s814
        %p816 = pneg %p145
        %p817 = pneg %p142
        %p818 = pneg %p166
        %p819 = pneg %p163
        %p820 = pneg %p187
        %p821 = pneg %p184
        %p822 = pneg %p208
        %p823 = pneg %p205
        %p824 = pneg %p229
        %p825 = pneg %p226
        %p826 = pneg %p250
        %p827 = pneg %p247
        %p828 = pneg %p271
        %p829 = pneg %p268
        %p830 = pneg %p292
        %p831 = pneg %p289
        %p832 = pneg %p313
        %p833 = pneg %p310
        %p834 = pneg %p334
        %p835 = pneg %p331
        %p836 = pneg %p355
        %p837 = pneg %p352
        %p838 = pneg %p376
        %p839 = pneg %p373
        %p840 = pneg %p397
        %p841 = pneg %p394
        %p842 = pneg %p418
        %p843 = pneg %p415
        %p844 = pneg %p439
        %p845 = pneg %p436
        %p846 = pneg %p460
        %p847 = pneg %p457
        %p848 = pneg %p481
        %p849 = pneg %p478
        %p850 = pneg %p507
        %p851 = pneg %p504
        %s852 = sand.u32 %s494, 1
        %s853 = scalar_lea.sflag [#allocation4], %s852
        %s854 = sand.u32 %s494, 1
        %s855 = smul.addr %s854, 8
        %s856 = scalar_lea.vmem [#allocation20], %s855
        %v857 = vld [vmem:[%s730] sm:$0xff]
        %v858 = vld [vmem:[%s739] sm:$0xff]
        %v859 = vld [vmem:[%s739 + $0x8] sm:$0xff]
        %v860 = vld [vmem:[%s748] sm:$0xff]
        %v861 = vld [vmem:[%s757] sm:$0xff]
        %862 = vadd.xlane.f32.xlu0 %v857
        %v863 = vpop.xlane.xlu0 %862
        %v864 = vrcp.pop 128.0
        %v865 = vmul.f32 %v863, %v864
        %v866 = vsub.f32 %v857, %v865
        %v867 = vmul.f32 %v866, %v866
        %868 = vadd.xlane.f32.xlu0 %v867
        %v869 = vpop.xlane.xlu0 %868
        %v870 = vrcp.pop 127.0
        %v871 = vmul.f32 %v869, %v870
        %v872 = vrsqrt.pop %v871
        %v873 = vmul.f32 %v871, %v872
        %vm874 = vcmp.eq.f32.partialorder %v871, inf
        %v875 = vsel %vm874, %v871, %v873
        %vm876 = vcmp.eq.f32.partialorder %v871, 0.0
        %v877 = vand.u32 %v871, 2147483648
        %v878 = vsel %vm876, %v877, %v875
        %v879 = vadd.f32 %v878, 1e-06
        %v880 = vrcp.pop %v879
        %v881 = vmul.f32 1.0, %v880
        %v882 = vld [vmem:[%s4] sm:$0x1]
        %v883 = vmul.f32 %v866, %v881
        %v885 = vlaneseq
        %v886 = vshrl.u32 %v885, 7
        %v887 = vsub.s32 0, %v886
        %v888 = vrot.slane %v882, %v887
        %v890 = vmul.f32 %v888, %v883
        %v891 = vld [vmem:[%s5] sm:$0x1]
        %v893 = vlaneseq
        %v894 = vshrl.u32 %v893, 7
        %v895 = vsub.s32 0, %v894
        %v896 = vrot.slane %v891, %v895
        %v898 = vadd.f32 %v890, %v896
        %v899 = vld [vmem:[#allocation10] sm:$0xff]
        %v900 = vld [vmem:[#allocation10 + $0x8] sm:$0xff]
        %v901 = vld [vmem:[#allocation10 + $0x10] sm:$0xff]
        %v902 = vld [vmem:[#allocation10 + $0x18] sm:$0xff]
        %v903 = vld [vmem:[#allocation10 + $0x20] sm:$0xff]
        %v904 = vld [vmem:[#allocation10 + $0x28] sm:$0xff]
        %v905 = vld [vmem:[#allocation10 + $0x30] sm:$0xff]
        %v906 = vld [vmem:[#allocation10 + $0x38] sm:$0xff]
        %v907 = vld [vmem:[#allocation10 + $0x40] sm:$0xff]
        %v908 = vld [vmem:[#allocation10 + $0x48] sm:$0xff]
        %v909 = vld [vmem:[#allocation10 + $0x50] sm:$0xff]
        %v910 = vld [vmem:[#allocation10 + $0x58] sm:$0xff]
        %v911 = vld [vmem:[#allocation10 + $0x60] sm:$0xff]
        %v912 = vld [vmem:[#allocation10 + $0x68] sm:$0xff]
        %v913 = vld [vmem:[#allocation10 + $0x70] sm:$0xff]
        %v914 = vld [vmem:[#allocation10 + $0x78] sm:$0xff]
        %v915 = vld [vmem:[#allocation10 + $0x80] sm:$0xff]
        %v916 = vld [vmem:[#allocation10 + $0x88] sm:$0xff]
        %v917 = vld [vmem:[#allocation10 + $0x90] sm:$0xff]
        %v918 = vld [vmem:[#allocation10 + $0x98] sm:$0xff]
        %v919 = vld [vmem:[#allocation10 + $0xa0] sm:$0xff]
        %v920 = vld [vmem:[#allocation10 + $0xa8] sm:$0xff]
        %v921 = vld [vmem:[#allocation10 + $0xb0] sm:$0xff]
        %v922 = vld [vmem:[#allocation10 + $0xb8] sm:$0xff]
        %v923 = vld [vmem:[#allocation10 + $0xc0] sm:$0xff]
        %v924 = vld [vmem:[#allocation10 + $0xc8] sm:$0xff]
        %v925 = vld [vmem:[#allocation10 + $0xd0] sm:$0xff]
        %v926 = vld [vmem:[#allocation10 + $0xd8] sm:$0xff]
        %v927 = vld [vmem:[#allocation10 + $0xe0] sm:$0xff]
        %v928 = vld [vmem:[#allocation10 + $0xe8] sm:$0xff]
        %v929 = vld [vmem:[#allocation10 + $0xf0] sm:$0xff]
        %v930 = vld [vmem:[#allocation10 + $0xf8] sm:$0xff]
        %v931 = vld [vmem:[#allocation10 + $0x100] sm:$0xff]
        %v932 = vld [vmem:[#allocation10 + $0x108] sm:$0xff]
        %v933 = vld [vmem:[#allocation10 + $0x110] sm:$0xff]
        %v934 = vld [vmem:[#allocation10 + $0x118] sm:$0xff]
        %v935 = vld [vmem:[#allocation10 + $0x120] sm:$0xff]
        %v936 = vld [vmem:[#allocation10 + $0x128] sm:$0xff]
        %v937 = vld [vmem:[#allocation10 + $0x130] sm:$0xff]
        %v938 = vld [vmem:[#allocation10 + $0x138] sm:$0xff]
        %v939 = vld [vmem:[#allocation10 + $0x140] sm:$0xff]
        %v940 = vld [vmem:[#allocation10 + $0x148] sm:$0xff]
        %v941 = vld [vmem:[#allocation10 + $0x150] sm:$0xff]
        %v942 = vld [vmem:[#allocation10 + $0x158] sm:$0xff]
        %v943 = vld [vmem:[#allocation10 + $0x160] sm:$0xff]
        %v944 = vld [vmem:[#allocation10 + $0x168] sm:$0xff]
        %v945 = vld [vmem:[#allocation10 + $0x170] sm:$0xff]
        %v946 = vld [vmem:[#allocation10 + $0x178] sm:$0xff]
        %v947 = vld [vmem:[%s7] sm:$0x7]
        %v949 = vlaneseq
        %v950 = vshrl.u32 %v949, 7
        %v951 = vsub.s32 0, %v950
        %v952 = vrot.slane %v947, %v951
        %v953 = vlaneseq
        %v954 = vshrl.u32 %v953, 7
        %v955 = vsub.s32 1, %v954
        %v956 = vrot.slane %v947, %v955
        %v957 = vlaneseq
        %v958 = vshrl.u32 %v957, 7
        %v959 = vsub.s32 2, %v958
        %v960 = vrot.slane %v947, %v959
        %964 = vmatprep.subr.mxu0 %v900
        %965 = vmatpush1.msra.mxu0 %v899
        %966 = vmatprep.subr.mxu0 %v903
        %967 = vmatpush1.msra.mxu0 %v902
        %968 = vmatprep.subr.mxu0 %v906
        %969 = vmatpush1.msra.mxu0 %v905
        %970 = vmatprep.subr.mxu0 %v909
        %971 = vmatpush1.msra.mxu0 %v908
        %972 = vmatprep.subr.mxu0 %v912
        %973 = vmatpush1.msra.mxu0 %v911
        %974 = vmatprep.subr.mxu0 %v915
        %975 = vmatpush1.msra.mxu0 %v914
        %976 = vmatprep.subr.mxu0 %v918
        %977 = vmatpush1.msra.mxu0 %v917
        %978 = vmatprep.subr.mxu0 %v921
        %979 = vmatpush1.msra.mxu0 %v920
        %980 = vmatprep.subr.mxu0 %v924
        %981 = vmatpush1.msra.mxu0 %v923
        %982 = vmatprep.subr.mxu0 %v927
        %983 = vmatpush1.msra.mxu0 %v926
        %984 = vmatprep.subr.mxu0 %v930
        %985 = vmatpush1.msra.mxu0 %v929
        %986 = vmatprep.subr.mxu0 %v933
        %987 = vmatpush1.msra.mxu0 %v932
        %988 = vmatprep.subr.mxu0 %v936
        %989 = vmatpush1.msra.mxu0 %v935
        %990 = vmatprep.subr.mxu0 %v939
        %991 = vmatpush1.msra.mxu0 %v938
        %992 = vmatprep.subr.mxu0 %v942
        %993 = vmatpush1.msra.mxu0 %v941
        %994 = vmatprep.subr.mxu0 %v945
        %995 = vmatpush1.msra.mxu0 %v944
        %996 = vmatprep.subr.mxu0 0.0
        %997 = vmatpush1.msra.mxu0 0.0
        %998 = vmatprep.subr.mxu0 0.0
        %999 = vmatpush1.msra.mxu0 0.0
        %1000 = vmatprep.subr.mxu0 0.0
        %1001 = vmatpush1.msra.mxu0 0.0
        %1002 = vmatprep.subr.mxu0 0.0
        %1003 = vmatpush1.msra.mxu0 0.0
        %1004 = vmatprep.subr.mxu0 0.0
        %1005 = vmatpush1.msra.mxu0 0.0
        %1006 = vmatprep.subr.mxu0 0.0
        %1007 = vmatpush1.msra.mxu0 0.0
        %1008 = vmatprep.subr.mxu0 0.0
        %1009 = vmatpush1.msra.mxu0 0.0
        %1010 = vmatprep.subr.mxu0 0.0
        %1011 = vmatpush1.msra.mxu0 0.0
        %1012 = vmatprep.subr.mxu0 0.0
        %1013 = vmatpush1.msra.mxu0 0.0
        %1014 = vmatprep.subr.mxu0 0.0
        %1015 = vmatpush1.msra.mxu0 0.0
        %1016 = vmatprep.subr.mxu0 0.0
        %1017 = vmatpush1.msra.mxu0 0.0
        %1018 = vmatprep.subr.mxu0 0.0
        %1019 = vmatpush1.msra.mxu0 0.0
        %1020 = vmatprep.subr.mxu0 0.0
        %1021 = vmatpush1.msra.mxu0 0.0
        %1022 = vmatprep.subr.mxu0 0.0
        %1023 = vmatpush1.msra.mxu0 0.0
        %1024 = vmatprep.subr.mxu0 0.0
        %1025 = vmatpush1.msra.mxu0 0.0
        %1026 = vmatprep.subr.mxu0 0.0
        %1027 = vmatpush1.msra.mxu0 0.0
        %1028 = vmatprep.mubr.f32.mxu0 0.0
        %1029 = vmatmul.mubr.f32.gmra.mrb[0].mxu0 %v898
        %v1030 = vpop.f32.mrb[0].mxu0
        %v1031 = vadd.f32 %v952, %v1030
        %v1032 = vpop.f32.mrb[0].mxu0
        %v1033 = vadd.f32 %v956, %v1032
        %1034 = vdwg.mxu0
        %1035 = vmatprep.subr.mxu0 0.0
        %1036 = vmatpush1.msra.mxu0 %v901
        %1037 = vmatprep.subr.mxu0 0.0
        %1038 = vmatpush1.msra.mxu0 %v904
        %1039 = vmatprep.subr.mxu0 0.0
        %1040 = vmatpush1.msra.mxu0 %v907
        %1041 = vmatprep.subr.mxu0 0.0
        %1042 = vmatpush1.msra.mxu0 %v910
        %1043 = vmatprep.subr.mxu0 0.0
        %1044 = vmatpush1.msra.mxu0 %v913
        %1045 = vmatprep.subr.mxu0 0.0
        %1046 = vmatpush1.msra.mxu0 %v916
        %1047 = vmatprep.subr.mxu0 0.0
        %1048 = vmatpush1.msra.mxu0 %v919
        %1049 = vmatprep.subr.mxu0 0.0
        %1050 = vmatpush1.msra.mxu0 %v922
        %1051 = vmatprep.subr.mxu0 0.0
        %1052 = vmatpush1.msra.mxu0 %v925
        %1053 = vmatprep.subr.mxu0 0.0
        %1054 = vmatpush1.msra.mxu0 %v928
        %1055 = vmatprep.subr.mxu0 0.0
        %1056 = vmatpush1.msra.mxu0 %v931
        %1057 = vmatprep.subr.mxu0 0.0
        %1058 = vmatpush1.msra.mxu0 %v934
        %1059 = vmatprep.subr.mxu0 0.0
        %1060 = vmatpush1.msra.mxu0 %v937
        %1061 = vmatprep.subr.mxu0 0.0
        %1062 = vmatpush1.msra.mxu0 %v940
        %1063 = vmatprep.subr.mxu0 0.0
        %1064 = vmatpush1.msra.mxu0 %v943
        %1065 = vmatprep.subr.mxu0 0.0
        %1066 = vmatpush1.msra.mxu0 %v946
        %1067 = vmatprep.subr.mxu0 0.0
        %1068 = vmatpush1.msra.mxu0 0.0
        %1069 = vmatprep.subr.mxu0 0.0
        %1070 = vmatpush1.msra.mxu0 0.0
        %1071 = vmatprep.subr.mxu0 0.0
        %1072 = vmatpush1.msra.mxu0 0.0
        %1073 = vmatprep.subr.mxu0 0.0
        %1074 = vmatpush1.msra.mxu0 0.0
        %1075 = vmatprep.subr.mxu0 0.0
        %1076 = vmatpush1.msra.mxu0 0.0
        %1077 = vmatprep.subr.mxu0 0.0
        %1078 = vmatpush1.msra.mxu0 0.0
        %1079 = vmatprep.subr.mxu0 0.0
        %1080 = vmatpush1.msra.mxu0 0.0
        %1081 = vmatprep.subr.mxu0 0.0
        %1082 = vmatpush1.msra.mxu0 0.0
        %1083 = vmatprep.subr.mxu0 0.0
        %1084 = vmatpush1.msra.mxu0 0.0
        %1085 = vmatprep.subr.mxu0 0.0
        %1086 = vmatpush1.msra.mxu0 0.0
        %1087 = vmatprep.subr.mxu0 0.0
        %1088 = vmatpush1.msra.mxu0 0.0
        %1089 = vmatprep.subr.mxu0 0.0
        %1090 = vmatpush1.msra.mxu0 0.0
        %1091 = vmatprep.subr.mxu0 0.0
        %1092 = vmatpush1.msra.mxu0 0.0
        %1093 = vmatprep.subr.mxu0 0.0
        %1094 = vmatpush1.msra.mxu0 0.0
        %1095 = vmatprep.subr.mxu0 0.0
        %1096 = vmatpush1.msra.mxu0 0.0
        %1097 = vmatprep.subr.mxu0 0.0
        %1098 = vmatpush1.msra.mxu0 0.0
        %1099 = vmatprep.mubr.f32.mxu0 0.0
        %1100 = vmatmul.mubr.f32.gmra.mrb[0].mxu0 %v898
        %v1101 = vpop.f32.mrb[0].mxu0
        %v1102 = vadd.f32 %v960, %v1101
        %v1103 = vpop.f32.mrb[0].mxu0
        %1104 = vdwg.mxu0
        %vm1105 = vcmask 261120
        %v1107 = vsel %vm1105, %v1031, 0
        %v1110 = vsel %vm1105, %v1033, 0
        %1112 = vmatprep.subr.mxu0 0.0
        %1113 = vmatpush1.xpose.msra.mxu0 %v1110
        %1114 = vmatprep.subr.mxu0 0.0
        %1115 = vmatpush1.xpose.msra.mxu0 0.0
        %1116 = vmatprep.subr.mxu0 0.0
        %1117 = vmatpush1.xpose.msra.mxu0 0.0
        %1118 = vmatprep.subr.mxu0 0.0
        %1119 = vmatpush1.xpose.msra.mxu0 0.0
        %1120 = vmatprep.subr.mxu0 0.0
        %1121 = vmatpush1.xpose.msra.mxu0 0.0
        %1122 = vmatprep.subr.mxu0 0.0
        %1123 = vmatpush1.xpose.msra.mxu0 0.0
        %1124 = vmatprep.subr.mxu0 0.0
        %1125 = vmatpush1.xpose.msra.mxu0 0.0
        %1126 = vmatprep.subr.mxu0 0.0
        %1127 = vmatpush1.xpose.msra.mxu0 0.0
        %1128 = vmatprep.subr.mxu0 0.0
        %1129 = vmatpush1.xpose.msra.mxu0 0.0
        %1130 = vmatprep.subr.mxu0 0.0
        %1131 = vmatpush1.xpose.msra.mxu0 0.0
        %1132 = vmatprep.subr.mxu0 0.0
        %1133 = vmatpush1.xpose.msra.mxu0 0.0
        %1134 = vmatprep.subr.mxu0 0.0
        %1135 = vmatpush1.xpose.msra.mxu0 0.0
        %1136 = vmatprep.subr.mxu0 0.0
        %1137 = vmatpush1.xpose.msra.mxu0 0.0
        %1138 = vmatprep.subr.mxu0 0.0
        %1139 = vmatpush1.xpose.msra.mxu0 0.0
        %1140 = vmatprep.subr.mxu0 0.0
        %1141 = vmatpush1.xpose.msra.mxu0 0.0
        %1142 = vmatprep.subr.mxu0 0.0
        %1143 = vmatpush1.xpose.msra.mxu0 0.0
        %1144 = vmatprep.subr.mxu0 0.0
        %1145 = vmatpush1.xpose.msra.mxu0 0.0
        %1146 = vmatprep.subr.mxu0 0.0
        %1147 = vmatpush1.xpose.msra.mxu0 0.0
        %1148 = vmatprep.subr.mxu0 0.0
        %1149 = vmatpush1.xpose.msra.mxu0 0.0
        %1150 = vmatprep.subr.mxu0 0.0
        %1151 = vmatpush1.xpose.msra.mxu0 0.0
        %1152 = vmatprep.subr.mxu0 0.0
        %1153 = vmatpush1.xpose.msra.mxu0 0.0
        %1154 = vmatprep.subr.mxu0 0.0
        %1155 = vmatpush1.xpose.msra.mxu0 0.0
        %1156 = vmatprep.subr.mxu0 0.0
        %1157 = vmatpush1.xpose.msra.mxu0 0.0
        %1158 = vmatprep.subr.mxu0 0.0
        %1159 = vmatpush1.xpose.msra.mxu0 0.0
        %1160 = vmatprep.subr.mxu0 0.0
        %1161 = vmatpush1.xpose.msra.mxu0 0.0
        %1162 = vmatprep.subr.mxu0 0.0
        %1163 = vmatpush1.xpose.msra.mxu0 0.0
        %1164 = vmatprep.subr.mxu0 0.0
        %1165 = vmatpush1.xpose.msra.mxu0 0.0
        %1166 = vmatprep.subr.mxu0 0.0
        %1167 = vmatpush1.xpose.msra.mxu0 0.0
        %1168 = vmatprep.subr.mxu0 0.0
        %1169 = vmatpush1.xpose.msra.mxu0 0.0
        %1170 = vmatprep.subr.mxu0 0.0
        %1171 = vmatpush1.xpose.msra.mxu0 0.0
        %1172 = vmatprep.subr.mxu0 0.0
        %1173 = vmatpush1.xpose.msra.mxu0 0.0
        %1174 = vmatprep.subr.mxu0 0.0
        %1175 = vmatpush1.xpose.msra.mxu0 0.0
        %1176 = vmatprep.mubr.f32.mxu0 0.0
        %1177 = vmatmul.mubr.f32.gmra.mrb[0].mxu0 %v1107
        %v1178 = vpop.f32.mrb[0].mxu0
        %v1179 = vadd.f32 0.0, %v1178
        %v1180 = vpop.f32.mrb[0].mxu0
        %1181 = vdwg.mxu0
        %v1182 = vmul.f32 %v1179, 0.17677669
        %v1183 = vadd.f32 %v1182, %v860
        %vm1184 = vcmask 64512
        %v1185 = vsel %vm1184, %v1183, -inf
        %1186 = vmax.xlane.f32.xlu0 %v1185
        %v1187 = vpop.xlane.xlu0 %1186
        %v1188 = vsub.f32 %v1183, %v1187
        %v1189 = vmul.f32 %v1188, 1.442695
        %v1190 = vpow.pop %v1189
        %v1191 = vsel %vm1184, %v1190, 0.0
        %1192 = vadd.xlane.f32.xlu0 %v1191
        %v1193 = vpop.xlane.xlu0 %1192
        %v1194 = vrcp.pop %v1193
        %v1195 = vmul.f32 %v1190, %v1194
        %v1197 = vsel %vm1184, %v1195, 0
        %1199 = vmatprep.subr.mxu0 0.0
        %1200 = vmatpush1.msra.mxu0 %v1102
        %1201 = vmatprep.subr.mxu0 0.0
        %1202 = vmatpush1.msra.mxu0 0.0
        %1203 = vmatprep.subr.mxu0 0.0
        %1204 = vmatpush1.msra.mxu0 0.0
        %1205 = vmatprep.subr.mxu0 0.0
        %1206 = vmatpush1.msra.mxu0 0.0
        %1207 = vmatprep.subr.mxu0 0.0
        %1208 = vmatpush1.msra.mxu0 0.0
        %1209 = vmatprep.subr.mxu0 0.0
        %1210 = vmatpush1.msra.mxu0 0.0
        %1211 = vmatprep.subr.mxu0 0.0
        %1212 = vmatpush1.msra.mxu0 0.0
        %1213 = vmatprep.subr.mxu0 0.0
        %1214 = vmatpush1.msra.mxu0 0.0
        %1215 = vmatprep.subr.mxu0 0.0
        %1216 = vmatpush1.msra.mxu0 0.0
        %1217 = vmatprep.subr.mxu0 0.0
        %1218 = vmatpush1.msra.mxu0 0.0
        %1219 = vmatprep.subr.mxu0 0.0
        %1220 = vmatpush1.msra.mxu0 0.0
        %1221 = vmatprep.subr.mxu0 0.0
        %1222 = vmatpush1.msra.mxu0 0.0
        %1223 = vmatprep.subr.mxu0 0.0
        %1224 = vmatpush1.msra.mxu0 0.0
        %1225 = vmatprep.subr.mxu0 0.0
        %1226 = vmatpush1.msra.mxu0 0.0
        %1227 = vmatprep.subr.mxu0 0.0
        %1228 = vmatpush1.msra.mxu0 0.0
        %1229 = vmatprep.subr.mxu0 0.0
        %1230 = vmatpush1.msra.mxu0 0.0
        %1231 = vmatprep.subr.mxu0 0.0
        %1232 = vmatpush1.msra.mxu0 0.0
        %1233 = vmatprep.subr.mxu0 0.0
        %1234 = vmatpush1.msra.mxu0 0.0
        %1235 = vmatprep.subr.mxu0 0.0
        %1236 = vmatpush1.msra.mxu0 0.0
        %1237 = vmatprep.subr.mxu0 0.0
        %1238 = vmatpush1.msra.mxu0 0.0
        %1239 = vmatprep.subr.mxu0 0.0
        %1240 = vmatpush1.msra.mxu0 0.0
        %1241 = vmatprep.subr.mxu0 0.0
        %1242 = vmatpush1.msra.mxu0 0.0
        %1243 = vmatprep.subr.mxu0 0.0
        %1244 = vmatpush1.msra.mxu0 0.0
        %1245 = vmatprep.subr.mxu0 0.0
        %1246 = vmatpush1.msra.mxu0 0.0
        %1247 = vmatprep.subr.mxu0 0.0
        %1248 = vmatpush1.msra.mxu0 0.0
        %1249 = vmatprep.subr.mxu0 0.0
        %1250 = vmatpush1.msra.mxu0 0.0
        %1251 = vmatprep.subr.mxu0 0.0
        %1252 = vmatpush1.msra.mxu0 0.0
        %1253 = vmatprep.subr.mxu0 0.0
        %1254 = vmatpush1.msra.mxu0 0.0
        %1255 = vmatprep.subr.mxu0 0.0
        %1256 = vmatpush1.msra.mxu0 0.0
        %1257 = vmatprep.subr.mxu0 0.0
        %1258 = vmatpush1.msra.mxu0 0.0
        %1259 = vmatprep.subr.mxu0 0.0
        %1260 = vmatpush1.msra.mxu0 0.0
        %1261 = vmatprep.subr.mxu0 0.0
        %1262 = vmatpush1.msra.mxu0 0.0
        %1263 = vmatprep.mubr.f32.mxu0 0.0
        %1264 = vmatmul.mubr.f32.gmra.mrb[0].mxu0 %v1197
        %v1265 = vpop.f32.mrb[0].mxu0
        %v1266 = vadd.f32 0.0, %v1265
        %v1267 = vpop.f32.mrb[0].mxu0
        %1268 = vdwg.mxu0
        %v1269 = vld [vmem:[#allocation11] sm:$0xff]
        %v1270 = vld [vmem:[#allocation11 + $0x8] sm:$0xff]
        %v1271 = vld [vmem:[#allocation11 + $0x10] sm:$0xff]
        %v1272 = vld [vmem:[#allocation11 + $0x18] sm:$0xff]
        %1273 = vrot.lane.b32.xlu0 %v1031, 96
        %v1274 = vpop.permute.xlu0 %1273
        %1275 = vrot.lane.b32.xlu0 %v1033, 96
        %v1276 = vpop.permute.xlu0 %1275
        %v1277 = vsel %vm1105, %v1274, 0
        %v1279 = vsel %vm1105, %v1276, 0
        %1281 = vmatprep.subr.mxu0 0.0
        %1282 = vmatpush1.xpose.msra.mxu0 %v1279
        %1283 = vmatprep.subr.mxu0 0.0
        %1284 = vmatpush1.xpose.msra.mxu0 0.0
        %1285 = vmatprep.subr.mxu0 0.0
        %1286 = vmatpush1.xpose.msra.mxu0 0.0
        %1287 = vmatprep.subr.mxu0 0.0
        %1288 = vmatpush1.xpose.msra.mxu0 0.0
        %1289 = vmatprep.subr.mxu0 0.0
        %1290 = vmatpush1.xpose.msra.mxu0 0.0
        %1291 = vmatprep.subr.mxu0 0.0
        %1292 = vmatpush1.xpose.msra.mxu0 0.0
        %1293 = vmatprep.subr.mxu0 0.0
        %1294 = vmatpush1.xpose.msra.mxu0 0.0
        %1295 = vmatprep.subr.mxu0 0.0
        %1296 = vmatpush1.xpose.msra.mxu0 0.0
        %1297 = vmatprep.subr.mxu0 0.0
        %1298 = vmatpush1.xpose.msra.mxu0 0.0
        %1299 = vmatprep.subr.mxu0 0.0
        %1300 = vmatpush1.xpose.msra.mxu0 0.0
        %1301 = vmatprep.subr.mxu0 0.0
        %1302 = vmatpush1.xpose.msra.mxu0 0.0
        %1303 = vmatprep.subr.mxu0 0.0
        %1304 = vmatpush1.xpose.msra.mxu0 0.0
        %1305 = vmatprep.subr.mxu0 0.0
        %1306 = vmatpush1.xpose.msra.mxu0 0.0
        %1307 = vmatprep.subr.mxu0 0.0
        %1308 = vmatpush1.xpose.msra.mxu0 0.0
        %1309 = vmatprep.subr.mxu0 0.0
        %1310 = vmatpush1.xpose.msra.mxu0 0.0
        %1311 = vmatprep.subr.mxu0 0.0
        %1312 = vmatpush1.xpose.msra.mxu0 0.0
        %1313 = vmatprep.subr.mxu0 0.0
        %1314 = vmatpush1.xpose.msra.mxu0 0.0
        %1315 = vmatprep.subr.mxu0 0.0
        %1316 = vmatpush1.xpose.msra.mxu0 0.0
        %1317 = vmatprep.subr.mxu0 0.0
        %1318 = vmatpush1.xpose.msra.mxu0 0.0
        %1319 = vmatprep.subr.mxu0 0.0
        %1320 = vmatpush1.xpose.msra.mxu0 0.0
        %1321 = vmatprep.subr.mxu0 0.0
        %1322 = vmatpush1.xpose.msra.mxu0 0.0
        %1323 = vmatprep.subr.mxu0 0.0
        %1324 = vmatpush1.xpose.msra.mxu0 0.0
        %1325 = vmatprep.subr.mxu0 0.0
        %1326 = vmatpush1.xpose.msra.mxu0 0.0
        %1327 = vmatprep.subr.mxu0 0.0
        %1328 = vmatpush1.xpose.msra.mxu0 0.0
        %1329 = vmatprep.subr.mxu0 0.0
        %1330 = vmatpush1.xpose.msra.mxu0 0.0
        %1331 = vmatprep.subr.mxu0 0.0
        %1332 = vmatpush1.xpose.msra.mxu0 0.0
        %1333 = vmatprep.subr.mxu0 0.0
        %1334 = vmatpush1.xpose.msra.mxu0 0.0
        %1335 = vmatprep.subr.mxu0 0.0
        %1336 = vmatpush1.xpose.msra.mxu0 0.0
        %1337 = vmatprep.subr.mxu0 0.0
        %1338 = vmatpush1.xpose.msra.mxu0 0.0
        %1339 = vmatprep.subr.mxu0 0.0
        %1340 = vmatpush1.xpose.msra.mxu0 0.0
        %1341 = vmatprep.subr.mxu0 0.0
        %1342 = vmatpush1.xpose.msra.mxu0 0.0
        %1343 = vmatprep.subr.mxu0 0.0
        %1344 = vmatpush1.xpose.msra.mxu0 0.0
        %1345 = vmatprep.mubr.f32.mxu0 0.0
        %1346 = vmatmul.mubr.f32.gmra.mrb[0].mxu0 %v1277
        %v1347 = vpop.f32.mrb[0].mxu0
        %v1348 = vadd.f32 0.0, %v1347
        %v1349 = vpop.f32.mrb[0].mxu0
        %1350 = vdwg.mxu0
        %v1351 = vmul.f32 %v1348, 0.17677669
        %v1352 = vadd.f32 %v1351, %v860
        %v1353 = vsel %vm1184, %v1352, -inf
        %1354 = vmax.xlane.f32.xlu0 %v1353
        %v1355 = vpop.xlane.xlu0 %1354
        %v1356 = vsub.f32 %v1352, %v1355
        %v1357 = vmul.f32 %v1356, 1.442695
        %v1358 = vpow.pop %v1357
        %v1359 = vsel %vm1184, %v1358, 0.0
        %1360 = vadd.xlane.f32.xlu0 %v1359
        %v1361 = vpop.xlane.xlu0 %1360
        %v1362 = vrcp.pop %v1361
        %v1363 = vmul.f32 %v1358, %v1362
        %1365 = vrot.lane.b32.xlu0 %v1102, 96
        %v1366 = vpop.permute.xlu0 %1365
        %v1369 = vsel %vm1184, %v1363, 0
        %1371 = vmatprep.subr.mxu0 0.0
        %1372 = vmatpush1.msra.mxu0 %v1366
        %1373 = vmatprep.subr.mxu0 0.0
        %1374 = vmatpush1.msra.mxu0 0.0
        %1375 = vmatprep.subr.mxu0 0.0
        %1376 = vmatpush1.msra.mxu0 0.0
        %1377 = vmatprep.subr.mxu0 0.0
        %1378 = vmatpush1.msra.mxu0 0.0
        %1379 = vmatprep.subr.mxu0 0.0
        %1380 = vmatpush1.msra.mxu0 0.0
        %1381 = vmatprep.subr.mxu0 0.0
        %1382 = vmatpush1.msra.mxu0 0.0
        %1383 = vmatprep.subr.mxu0 0.0
        %1384 = vmatpush1.msra.mxu0 0.0
        %1385 = vmatprep.subr.mxu0 0.0
        %1386 = vmatpush1.msra.mxu0 0.0
        %1387 = vmatprep.subr.mxu0 0.0
        %1388 = vmatpush1.msra.mxu0 0.0
        %1389 = vmatprep.subr.mxu0 0.0
        %1390 = vmatpush1.msra.mxu0 0.0
        %1391 = vmatprep.subr.mxu0 0.0
        %1392 = vmatpush1.msra.mxu0 0.0
        %1393 = vmatprep.subr.mxu0 0.0
        %1394 = vmatpush1.msra.mxu0 0.0
        %1395 = vmatprep.subr.mxu0 0.0
        %1396 = vmatpush1.msra.mxu0 0.0
        %1397 = vmatprep.subr.mxu0 0.0
        %1398 = vmatpush1.msra.mxu0 0.0
        %1399 = vmatprep.subr.mxu0 0.0
        %1400 = vmatpush1.msra.mxu0 0.0
        %1401 = vmatprep.subr.mxu0 0.0
        %1402 = vmatpush1.msra.mxu0 0.0
        %1403 = vmatprep.subr.mxu0 0.0
        %1404 = vmatpush1.msra.mxu0 0.0
        %1405 = vmatprep.subr.mxu0 0.0
        %1406 = vmatpush1.msra.mxu0 0.0
        %1407 = vmatprep.subr.mxu0 0.0
        %1408 = vmatpush1.msra.mxu0 0.0
        %1409 = vmatprep.subr.mxu0 0.0
        %1410 = vmatpush1.msra.mxu0 0.0
        %1411 = vmatprep.subr.mxu0 0.0
        %1412 = vmatpush1.msra.mxu0 0.0
        %1413 = vmatprep.subr.mxu0 0.0
        %1414 = vmatpush1.msra.mxu0 0.0
        %1415 = vmatprep.subr.mxu0 0.0
        %1416 = vmatpush1.msra.mxu0 0.0
        %1417 = vmatprep.subr.mxu0 0.0
        %1418 = vmatpush1.msra.mxu0 0.0
        %1419 = vmatprep.subr.mxu0 0.0
        %1420 = vmatpush1.msra.mxu0 0.0
        %1421 = vmatprep.subr.mxu0 0.0
        %1422 = vmatpush1.msra.mxu0 0.0
        %1423 = vmatprep.subr.mxu0 0.0
        %1424 = vmatpush1.msra.mxu0 0.0
        %1425 = vmatprep.subr.mxu0 0.0
        %1426 = vmatpush1.msra.mxu0 0.0
        %1427 = vmatprep.subr.mxu0 0.0
        %1428 = vmatpush1.msra.mxu0 0.0
        %1429 = vmatprep.subr.mxu0 0.0
        %1430 = vmatpush1.msra.mxu0 0.0
        %1431 = vmatprep.subr.mxu0 0.0
        %1432 = vmatpush1.msra.mxu0 0.0
        %1433 = vmatprep.subr.mxu0 0.0
        %1434 = vmatpush1.msra.mxu0 0.0
        %1435 = vmatprep.mubr.f32.mxu0 0.0
        %1436 = vmatmul.mubr.f32.gmra.mrb[0].mxu0 %v1369
        %v1437 = vpop.f32.mrb[0].mxu0
        %v1438 = vadd.f32 0.0, %v1437
        %v1439 = vpop.f32.mrb[0].mxu0
        %1440 = vdwg.mxu0
        %v1441 = vld [vmem:[#allocation11 + $0x20] sm:$0xff]
        %v1442 = vld [vmem:[#allocation11 + $0x28] sm:$0xff]
        %v1443 = vld [vmem:[#allocation11 + $0x30] sm:$0xff]
        %v1444 = vld [vmem:[#allocation11 + $0x38] sm:$0xff]
        %v1446 = vsel %vm1105, %v1438, 0
        %1448 = vmatprep.subr.mxu0 0.0
        %1449 = vmatpush1.msra.mxu0 %v1441
        %1450 = vmatprep.subr.mxu0 0.0
        %1451 = vmatpush1.msra.mxu0 %v1442
        %1452 = vmatprep.subr.mxu0 0.0
        %1453 = vmatpush1.msra.mxu0 %v1443
        %1454 = vmatprep.subr.mxu0 0.0
        %1455 = vmatpush1.msra.mxu0 %v1444
        %1456 = vmatprep.subr.mxu0 0.0
        %1457 = vmatpush1.msra.mxu0 0.0
        %1458 = vmatprep.subr.mxu0 0.0
        %1459 = vmatpush1.msra.mxu0 0.0
        %1460 = vmatprep.subr.mxu0 0.0
        %1461 = vmatpush1.msra.mxu0 0.0
        %1462 = vmatprep.subr.mxu0 0.0
        %1463 = vmatpush1.msra.mxu0 0.0
        %1464 = vmatprep.subr.mxu0 0.0
        %1465 = vmatpush1.msra.mxu0 0.0
        %1466 = vmatprep.subr.mxu0 0.0
        %1467 = vmatpush1.msra.mxu0 0.0
        %1468 = vmatprep.subr.mxu0 0.0
        %1469 = vmatpush1.msra.mxu0 0.0
        %1470 = vmatprep.subr.mxu0 0.0
        %1471 = vmatpush1.msra.mxu0 0.0
        %1472 = vmatprep.subr.mxu0 0.0
        %1473 = vmatpush1.msra.mxu0 0.0
        %1474 = vmatprep.subr.mxu0 0.0
        %1475 = vmatpush1.msra.mxu0 0.0
        %1476 = vmatprep.subr.mxu0 0.0
        %1477 = vmatpush1.msra.mxu0 0.0
        %1478 = vmatprep.subr.mxu0 0.0
        %1479 = vmatpush1.msra.mxu0 0.0
        %1480 = vmatprep.subr.mxu0 0.0
        %1481 = vmatpush1.msra.mxu0 0.0
        %1482 = vmatprep.subr.mxu0 0.0
        %1483 = vmatpush1.msra.mxu0 0.0
        %1484 = vmatprep.subr.mxu0 0.0
        %1485 = vmatpush1.msra.mxu0 0.0
        %1486 = vmatprep.subr.mxu0 0.0
        %1487 = vmatpush1.msra.mxu0 0.0
        %1488 = vmatprep.subr.mxu0 0.0
        %1489 = vmatpush1.msra.mxu0 0.0
        %1490 = vmatprep.subr.mxu0 0.0
        %1491 = vmatpush1.msra.mxu0 0.0
        %1492 = vmatprep.subr.mxu0 0.0
        %1493 = vmatpush1.msra.mxu0 0.0
        %1494 = vmatprep.subr.mxu0 0.0
        %1495 = vmatpush1.msra.mxu0 0.0
        %1496 = vmatprep.subr.mxu0 0.0
        %1497 = vmatpush1.msra.mxu0 0.0
        %1498 = vmatprep.subr.mxu0 0.0
        %1499 = vmatpush1.msra.mxu0 0.0
        %1500 = vmatprep.subr.mxu0 0.0
        %1501 = vmatpush1.msra.mxu0 0.0
        %1502 = vmatprep.subr.mxu0 0.0
        %1503 = vmatpush1.msra.mxu0 0.0
        %1504 = vmatprep.subr.mxu0 0.0
        %1505 = vmatpush1.msra.mxu0 0.0
        %1506 = vmatprep.subr.mxu0 0.0
        %1507 = vmatpush1.msra.mxu0 0.0
        %1508 = vmatprep.subr.mxu0 0.0
        %1509 = vmatpush1.msra.mxu0 0.0
        %1510 = vmatprep.subr.mxu0 0.0
        %1511 = vmatpush1.msra.mxu0 0.0
        %1512 = vmatprep.mubr.f32.mxu0 0.0
        %1513 = vmatmul.mubr.f32.gmra.mrb[0].mxu0 %v1446
        %v1514 = vpop.f32.mrb[0].mxu0
        %v1515 = vadd.f32 0.0, %v1514
        %v1516 = vpop.f32.mrb[0].mxu0
        %1517 = vdwg.mxu0
        %v1519 = vsel %vm1105, %v1266, 0
        %1521 = vmatprep.subr.mxu0 0.0
        %1522 = vmatpush1.msra.mxu0 %v1269
        %1523 = vmatprep.subr.mxu0 0.0
        %1524 = vmatpush1.msra.mxu0 %v1270
        %1525 = vmatprep.subr.mxu0 0.0
        %1526 = vmatpush1.msra.mxu0 %v1271
        %1527 = vmatprep.subr.mxu0 0.0
        %1528 = vmatpush1.msra.mxu0 %v1272
        %1529 = vmatprep.subr.mxu0 0.0
        %1530 = vmatpush1.msra.mxu0 0.0
        %1531 = vmatprep.subr.mxu0 0.0
        %1532 = vmatpush1.msra.mxu0 0.0
        %1533 = vmatprep.subr.mxu0 0.0
        %1534 = vmatpush1.msra.mxu0 0.0
        %1535 = vmatprep.subr.mxu0 0.0
        %1536 = vmatpush1.msra.mxu0 0.0
        %1537 = vmatprep.subr.mxu0 0.0
        %1538 = vmatpush1.msra.mxu0 0.0
        %1539 = vmatprep.subr.mxu0 0.0
        %1540 = vmatpush1.msra.mxu0 0.0
        %1541 = vmatprep.subr.mxu0 0.0
        %1542 = vmatpush1.msra.mxu0 0.0
        %1543 = vmatprep.subr.mxu0 0.0
        %1544 = vmatpush1.msra.mxu0 0.0
        %1545 = vmatprep.subr.mxu0 0.0
        %1546 = vmatpush1.msra.mxu0 0.0
        %1547 = vmatprep.subr.mxu0 0.0
        %1548 = vmatpush1.msra.mxu0 0.0
        %1549 = vmatprep.subr.mxu0 0.0
        %1550 = vmatpush1.msra.mxu0 0.0
        %1551 = vmatprep.subr.mxu0 0.0
        %1552 = vmatpush1.msra.mxu0 0.0
        %1553 = vmatprep.subr.mxu0 0.0
        %1554 = vmatpush1.msra.mxu0 0.0
        %1555 = vmatprep.subr.mxu0 0.0
        %1556 = vmatpush1.msra.mxu0 0.0
        %1557 = vmatprep.subr.mxu0 0.0
        %1558 = vmatpush1.msra.mxu0 0.0
        %1559 = vmatprep.subr.mxu0 0.0
        %1560 = vmatpush1.msra.mxu0 0.0
        %1561 = vmatprep.subr.mxu0 0.0
        %1562 = vmatpush1.msra.mxu0 0.0
        %1563 = vmatprep.subr.mxu0 0.0
        %1564 = vmatpush1.msra.mxu0 0.0
        %1565 = vmatprep.subr.mxu0 0.0
        %1566 = vmatpush1.msra.mxu0 0.0
        %1567 = vmatprep.subr.mxu0 0.0
        %1568 = vmatpush1.msra.mxu0 0.0
        %1569 = vmatprep.subr.mxu0 0.0
        %1570 = vmatpush1.msra.mxu0 0.0
        %1571 = vmatprep.subr.mxu0 0.0
        %1572 = vmatpush1.msra.mxu0 0.0
        %1573 = vmatprep.subr.mxu0 0.0
        %1574 = vmatpush1.msra.mxu0 0.0
        %1575 = vmatprep.subr.mxu0 0.0
        %1576 = vmatpush1.msra.mxu0 0.0
        %1577 = vmatprep.subr.mxu0 0.0
        %1578 = vmatpush1.msra.mxu0 0.0
        %1579 = vmatprep.subr.mxu0 0.0
        %1580 = vmatpush1.msra.mxu0 0.0
        %1581 = vmatprep.subr.mxu0 0.0
        %1582 = vmatpush1.msra.mxu0 0.0
        %1583 = vmatprep.subr.mxu0 0.0
        %1584 = vmatpush1.msra.mxu0 0.0
        %1585 = vmatprep.mubr.f32.mxu0 0.0
        %1586 = vmatmul.mubr.f32.gmra.mrb[0].mxu0 %v1519
        %v1587 = vpop.f32.mrb[0].mxu0
        %v1588 = vadd.f32 %v1515, %v1587
        %v1589 = vpop.f32.mrb[0].mxu0
        %1590 = vdwg.mxu0
        %1591 = vrot.lane.b32.xlu0 %v1031, 64
        %v1592 = vpop.permute.xlu0 %1591
        %1593 = vrot.lane.b32.xlu0 %v1033, 64
        %v1594 = vpop.permute.xlu0 %1593
        %v1595 = vsel %vm1105, %v1592, 0
        %v1597 = vsel %vm1105, %v1594, 0
        %1599 = vmatprep.subr.mxu0 0.0
        %1600 = vmatpush1.xpose.msra.mxu0 %v1597
        %1601 = vmatprep.subr.mxu0 0.0
        %1602 = vmatpush1.xpose.msra.mxu0 0.0
        %1603 = vmatprep.subr.mxu0 0.0
        %1604 = vmatpush1.xpose.msra.mxu0 0.0
        %1605 = vmatprep.subr.mxu0 0.0
        %1606 = vmatpush1.xpose.msra.mxu0 0.0
        %1607 = vmatprep.subr.mxu0 0.0
        %1608 = vmatpush1.xpose.msra.mxu0 0.0
        %1609 = vmatprep.subr.mxu0 0.0
        %1610 = vmatpush1.xpose.msra.mxu0 0.0
        %1611 = vmatprep.subr.mxu0 0.0
        %1612 = vmatpush1.xpose.msra.mxu0 0.0
        %1613 = vmatprep.subr.mxu0 0.0
        %1614 = vmatpush1.xpose.msra.mxu0 0.0
        %1615 = vmatprep.subr.mxu0 0.0
        %1616 = vmatpush1.xpose.msra.mxu0 0.0
        %1617 = vmatprep.subr.mxu0 0.0
        %1618 = vmatpush1.xpose.msra.mxu0 0.0
        %1619 = vmatprep.subr.mxu0 0.0
        %1620 = vmatpush1.xpose.msra.mxu0 0.0
        %1621 = vmatprep.subr.mxu0 0.0
        %1622 = vmatpush1.xpose.msra.mxu0 0.0
        %1623 = vmatprep.subr.mxu0 0.0
        %1624 = vmatpush1.xpose.msra.mxu0 0.0
        %1625 = vmatprep.subr.mxu0 0.0
        %1626 = vmatpush1.xpose.msra.mxu0 0.0
        %1627 = vmatprep.subr.mxu0 0.0
        %1628 = vmatpush1.xpose.msra.mxu0 0.0
        %1629 = vmatprep.subr.mxu0 0.0
        %1630 = vmatpush1.xpose.msra.mxu0 0.0
        %1631 = vmatprep.subr.mxu0 0.0
        %1632 = vmatpush1.xpose.msra.mxu0 0.0
        %1633 = vmatprep.subr.mxu0 0.0
        %1634 = vmatpush1.xpose.msra.mxu0 0.0
        %1635 = vmatprep.subr.mxu0 0.0
        %1636 = vmatpush1.xpose.msra.mxu0 0.0
        %1637 = vmatprep.subr.mxu0 0.0
        %1638 = vmatpush1.xpose.msra.mxu0 0.0
        %1639 = vmatprep.subr.mxu0 0.0
        %1640 = vmatpush1.xpose.msra.mxu0 0.0
        %1641 = vmatprep.subr.mxu0 0.0
        %1642 = vmatpush1.xpose.msra.mxu0 0.0
        %1643 = vmatprep.subr.mxu0 0.0
        %1644 = vmatpush1.xpose.msra.mxu0 0.0
        %1645 = vmatprep.subr.mxu0 0.0
        %1646 = vmatpush1.xpose.msra.mxu0 0.0
        %1647 = vmatprep.subr.mxu0 0.0
        %1648 = vmatpush1.xpose.msra.mxu0 0.0
        %1649 = vmatprep.subr.mxu0 0.0
        %1650 = vmatpush1.xpose.msra.mxu0 0.0
        %1651 = vmatprep.subr.mxu0 0.0
        %1652 = vmatpush1.xpose.msra.mxu0 0.0
        %1653 = vmatprep.subr.mxu0 0.0
        %1654 = vmatpush1.xpose.msra.mxu0 0.0
        %1655 = vmatprep.subr.mxu0 0.0
        %1656 = vmatpush1.xpose.msra.mxu0 0.0
        %1657 = vmatprep.subr.mxu0 0.0
        %1658 = vmatpush1.xpose.msra.mxu0 0.0
        %1659 = vmatprep.subr.mxu0 0.0
        %1660 = vmatpush1.xpose.msra.mxu0 0.0
        %1661 = vmatprep.subr.mxu0 0.0
        %1662 = vmatpush1.xpose.msra.mxu0 0.0
        %1663 = vmatprep.mubr.f32.mxu0 0.0
        %1664 = vmatmul.mubr.f32.gmra.mrb[0].mxu0 %v1595
        %v1665 = vpop.f32.mrb[0].mxu0
        %v1666 = vadd.f32 0.0, %v1665
        %v1667 = vpop.f32.mrb[0].mxu0
        %1668 = vdwg.mxu0
        %v1669 = vmul.f32 %v1666, 0.17677669
        %v1670 = vadd.f32 %v1669, %v860
        %v1671 = vsel %vm1184, %v1670, -inf
        %1672 = vmax.xlane.f32.xlu0 %v1671
        %v1673 = vpop.xlane.xlu0 %1672
        %v1674 = vsub.f32 %v1670, %v1673
        %v1675 = vmul.f32 %v1674, 1.442695
        %v1676 = vpow.pop %v1675
        %v1677 = vsel %vm1184, %v1676, 0.0
        %1678 = vadd.xlane.f32.xlu0 %v1677
        %v1679 = vpop.xlane.xlu0 %1678
        %v1680 = vrcp.pop %v1679
        %v1681 = vmul.f32 %v1676, %v1680
        %1682 = vrot.lane.b32.xlu0 %v1102, 64
        %v1683 = vpop.permute.xlu0 %1682
        %v1686 = vsel %vm1184, %v1681, 0
        %1688 = vmatprep.subr.mxu0 0.0
        %1689 = vmatpush1.msra.mxu0 %v1683
        %1690 = vmatprep.subr.mxu0 0.0
        %1691 = vmatpush1.msra.mxu0 0.0
        %1692 = vmatprep.subr.mxu0 0.0
        %1693 = vmatpush1.msra.mxu0 0.0
        %1694 = vmatprep.subr.mxu0 0.0
        %1695 = vmatpush1.msra.mxu0 0.0
        %1696 = vmatprep.subr.mxu0 0.0
        %1697 = vmatpush1.msra.mxu0 0.0
        %1698 = vmatprep.subr.mxu0 0.0
        %1699 = vmatpush1.msra.mxu0 0.0
        %1700 = vmatprep.subr.mxu0 0.0
        %1701 = vmatpush1.msra.mxu0 0.0
        %1702 = vmatprep.subr.mxu0 0.0
        %1703 = vmatpush1.msra.mxu0 0.0
        %1704 = vmatprep.subr.mxu0 0.0
        %1705 = vmatpush1.msra.mxu0 0.0
        %1706 = vmatprep.subr.mxu0 0.0
        %1707 = vmatpush1.msra.mxu0 0.0
        %1708 = vmatprep.subr.mxu0 0.0
        %1709 = vmatpush1.msra.mxu0 0.0
        %1710 = vmatprep.subr.mxu0 0.0
        %1711 = vmatpush1.msra.mxu0 0.0
        %1712 = vmatprep.subr.mxu0 0.0
        %1713 = vmatpush1.msra.mxu0 0.0
        %1714 = vmatprep.subr.mxu0 0.0
        %1715 = vmatpush1.msra.mxu0 0.0
        %1716 = vmatprep.subr.mxu0 0.0
        %1717 = vmatpush1.msra.mxu0 0.0
        %1718 = vmatprep.subr.mxu0 0.0
        %1719 = vmatpush1.msra.mxu0 0.0
        %1720 = vmatprep.subr.mxu0 0.0
        %1721 = vmatpush1.msra.mxu0 0.0
        %1722 = vmatprep.subr.mxu0 0.0
        %1723 = vmatpush1.msra.mxu0 0.0
        %1724 = vmatprep.subr.mxu0 0.0
        %1725 = vmatpush1.msra.mxu0 0.0
        %1726 = vmatprep.subr.mxu0 0.0
        %1727 = vmatpush1.msra.mxu0 0.0
        %1728 = vmatprep.subr.mxu0 0.0
        %1729 = vmatpush1.msra.mxu0 0.0
        %1730 = vmatprep.subr.mxu0 0.0
        %1731 = vmatpush1.msra.mxu0 0.0
        %1732 = vmatprep.subr.mxu0 0.0
        %1733 = vmatpush1.msra.mxu0 0.0
        %1734 = vmatprep.subr.mxu0 0.0
        %1735 = vmatpush1.msra.mxu0 0.0
        %1736 = vmatprep.subr.mxu0 0.0
        %1737 = vmatpush1.msra.mxu0 0.0
        %1738 = vmatprep.subr.mxu0 0.0
        %1739 = vmatpush1.msra.mxu0 0.0
        %1740 = vmatprep.subr.mxu0 0.0
        %1741 = vmatpush1.msra.mxu0 0.0
        %1742 = vmatprep.subr.mxu0 0.0
        %1743 = vmatpush1.msra.mxu0 0.0
        %1744 = vmatprep.subr.mxu0 0.0
        %1745 = vmatpush1.msra.mxu0 0.0
        %1746 = vmatprep.subr.mxu0 0.0
        %1747 = vmatpush1.msra.mxu0 0.0
        %1748 = vmatprep.subr.mxu0 0.0
        %1749 = vmatpush1.msra.mxu0 0.0
        %1750 = vmatprep.subr.mxu0 0.0
        %1751 = vmatpush1.msra.mxu0 0.0
        %1752 = vmatprep.mubr.f32.mxu0 0.0
        %1753 = vmatmul.mubr.f32.gmra.mrb[0].mxu0 %v1686
        %v1754 = vpop.f32.mrb[0].mxu0
        %v1755 = vadd.f32 0.0, %v1754
        %v1756 = vpop.f32.mrb[0].mxu0
        %1757 = vdwg.mxu0
        %v1758 = vld [vmem:[#allocation11 + $0x40] sm:$0xff]
        %v1759 = vld [vmem:[#allocation11 + $0x48] sm:$0xff]
        %v1760 = vld [vmem:[#allocation11 + $0x50] sm:$0xff]
        %v1761 = vld [vmem:[#allocation11 + $0x58] sm:$0xff]
        %v1763 = vsel %vm1105, %v1755, 0
        %1765 = vmatprep.subr.mxu0 0.0
        %1766 = vmatpush1.msra.mxu0 %v1758
        %1767 = vmatprep.subr.mxu0 0.0
        %1768 = vmatpush1.msra.mxu0 %v1759
        %1769 = vmatprep.subr.mxu0 0.0
        %1770 = vmatpush1.msra.mxu0 %v1760
        %1771 = vmatprep.subr.mxu0 0.0
        %1772 = vmatpush1.msra.mxu0 %v1761
        %1773 = vmatprep.subr.mxu0 0.0
        %1774 = vmatpush1.msra.mxu0 0.0
        %1775 = vmatprep.subr.mxu0 0.0
        %1776 = vmatpush1.msra.mxu0 0.0
        %1777 = vmatprep.subr.mxu0 0.0
        %1778 = vmatpush1.msra.mxu0 0.0
        %1779 = vmatprep.subr.mxu0 0.0
        %1780 = vmatpush1.msra.mxu0 0.0
        %1781 = vmatprep.subr.mxu0 0.0
        %1782 = vmatpush1.msra.mxu0 0.0
        %1783 = vmatprep.subr.mxu0 0.0
        %1784 = vmatpush1.msra.mxu0 0.0
        %1785 = vmatprep.subr.mxu0 0.0
        %1786 = vmatpush1.msra.mxu0 0.0
        %1787 = vmatprep.subr.mxu0 0.0
        %1788 = vmatpush1.msra.mxu0 0.0
        %1789 = vmatprep.subr.mxu0 0.0
        %1790 = vmatpush1.msra.mxu0 0.0
        %1791 = vmatprep.subr.mxu0 0.0
        %1792 = vmatpush1.msra.mxu0 0.0
        %1793 = vmatprep.subr.mxu0 0.0
        %1794 = vmatpush1.msra.mxu0 0.0
        %1795 = vmatprep.subr.mxu0 0.0
        %1796 = vmatpush1.msra.mxu0 0.0
        %1797 = vmatprep.subr.mxu0 0.0
        %1798 = vmatpush1.msra.mxu0 0.0
        %1799 = vmatprep.subr.mxu0 0.0
        %1800 = vmatpush1.msra.mxu0 0.0
        %1801 = vmatprep.subr.mxu0 0.0
        %1802 = vmatpush1.msra.mxu0 0.0
        %1803 = vmatprep.subr.mxu0 0.0
        %1804 = vmatpush1.msra.mxu0 0.0
        %1805 = vmatprep.subr.mxu0 0.0
        %1806 = vmatpush1.msra.mxu0 0.0
        %1807 = vmatprep.subr.mxu0 0.0
        %1808 = vmatpush1.msra.mxu0 0.0
        %1809 = vmatprep.subr.mxu0 0.0
        %1810 = vmatpush1.msra.mxu0 0.0
        %1811 = vmatprep.subr.mxu0 0.0
        %1812 = vmatpush1.msra.mxu0 0.0
        %1813 = vmatprep.subr.mxu0 0.0
        %1814 = vmatpush1.msra.mxu0 0.0
        %1815 = vmatprep.subr.mxu0 0.0
        %1816 = vmatpush1.msra.mxu0 0.0
        %1817 = vmatprep.subr.mxu0 0.0
        %1818 = vmatpush1.msra.mxu0 0.0
        %1819 = vmatprep.subr.mxu0 0.0
        %1820 = vmatpush1.msra.mxu0 0.0
        %1821 = vmatprep.subr.mxu0 0.0
        %1822 = vmatpush1.msra.mxu0 0.0
        %1823 = vmatprep.subr.mxu0 0.0
        %1824 = vmatpush1.msra.mxu0 0.0
        %1825 = vmatprep.subr.mxu0 0.0
        %1826 = vmatpush1.msra.mxu0 0.0
        %1827 = vmatprep.subr.mxu0 0.0
        %1828 = vmatpush1.msra.mxu0 0.0
        %1829 = vmatprep.mubr.f32.mxu0 0.0
        %1830 = vmatmul.mubr.f32.gmra.mrb[0].mxu0 %v1763
        %v1831 = vpop.f32.mrb[0].mxu0
        %v1832 = vadd.f32 0.0, %v1831
        %v1833 = vpop.f32.mrb[0].mxu0
        %1834 = vdwg.mxu0
        %v1835 = vadd.f32 %v1588, %v1832
        %1836 = vrot.lane.b32.xlu0 %v1031, 32
        %v1837 = vpop.permute.xlu0 %1836
        %1838 = vrot.lane.b32.xlu0 %v1033, 32
        %v1839 = vpop.permute.xlu0 %1838
        %v1840 = vsel %vm1105, %v1837, 0
        %v1842 = vsel %vm1105, %v1839, 0
        %1844 = vmatprep.subr.mxu0 0.0
        %1845 = vmatpush1.xpose.msra.mxu0 %v1842
        %1846 = vmatprep.subr.mxu0 0.0
        %1847 = vmatpush1.xpose.msra.mxu0 0.0
        %1848 = vmatprep.subr.mxu0 0.0
        %1849 = vmatpush1.xpose.msra.mxu0 0.0
        %1850 = vmatprep.subr.mxu0 0.0
        %1851 = vmatpush1.xpose.msra.mxu0 0.0
        %1852 = vmatprep.subr.mxu0 0.0
        %1853 = vmatpush1.xpose.msra.mxu0 0.0
        %1854 = vmatprep.subr.mxu0 0.0
        %1855 = vmatpush1.xpose.msra.mxu0 0.0
        %1856 = vmatprep.subr.mxu0 0.0
        %1857 = vmatpush1.xpose.msra.mxu0 0.0
        %1858 = vmatprep.subr.mxu0 0.0
        %1859 = vmatpush1.xpose.msra.mxu0 0.0
        %1860 = vmatprep.subr.mxu0 0.0
        %1861 = vmatpush1.xpose.msra.mxu0 0.0
        %1862 = vmatprep.subr.mxu0 0.0
        %1863 = vmatpush1.xpose.msra.mxu0 0.0
        %1864 = vmatprep.subr.mxu0 0.0
        %1865 = vmatpush1.xpose.msra.mxu0 0.0
        %1866 = vmatprep.subr.mxu0 0.0
        %1867 = vmatpush1.xpose.msra.mxu0 0.0
        %1868 = vmatprep.subr.mxu0 0.0
        %1869 = vmatpush1.xpose.msra.mxu0 0.0
        %1870 = vmatprep.subr.mxu0 0.0
        %1871 = vmatpush1.xpose.msra.mxu0 0.0
        %1872 = vmatprep.subr.mxu0 0.0
        %1873 = vmatpush1.xpose.msra.mxu0 0.0
        %1874 = vmatprep.subr.mxu0 0.0
        %1875 = vmatpush1.xpose.msra.mxu0 0.0
        %1876 = vmatprep.subr.mxu0 0.0
        %1877 = vmatpush1.xpose.msra.mxu0 0.0
        %1878 = vmatprep.subr.mxu0 0.0
        %1879 = vmatpush1.xpose.msra.mxu0 0.0
        %1880 = vmatprep.subr.mxu0 0.0
        %1881 = vmatpush1.xpose.msra.mxu0 0.0
        %1882 = vmatprep.subr.mxu0 0.0
        %1883 = vmatpush1.xpose.msra.mxu0 0.0
        %1884 = vmatprep.subr.mxu0 0.0
        %1885 = vmatpush1.xpose.msra.mxu0 0.0
        %1886 = vmatprep.subr.mxu0 0.0
        %1887 = vmatpush1.xpose.msra.mxu0 0.0
        %1888 = vmatprep.subr.mxu0 0.0
        %1889 = vmatpush1.xpose.msra.mxu0 0.0
        %1890 = vmatprep.subr.mxu0 0.0
        %1891 = vmatpush1.xpose.msra.mxu0 0.0
        %1892 = vmatprep.subr.mxu0 0.0
        %1893 = vmatpush1.xpose.msra.mxu0 0.0
        %1894 = vmatprep.subr.mxu0 0.0
        %1895 = vmatpush1.xpose.msra.mxu0 0.0
        %1896 = vmatprep.subr.mxu0 0.0
        %1897 = vmatpush1.xpose.msra.mxu0 0.0
        %1898 = vmatprep.subr.mxu0 0.0
        %1899 = vmatpush1.xpose.msra.mxu0 0.0
        %1900 = vmatprep.subr.mxu0 0.0
        %1901 = vmatpush1.xpose.msra.mxu0 0.0
        %1902 = vmatprep.subr.mxu0 0.0
        %1903 = vmatpush1.xpose.msra.mxu0 0.0
        %1904 = vmatprep.subr.mxu0 0.0
        %1905 = vmatpush1.xpose.msra.mxu0 0.0
        %1906 = vmatprep.subr.mxu0 0.0
        %1907 = vmatpush1.xpose.msra.mxu0 0.0
        %1908 = vmatprep.mubr.f32.mxu0 0.0
        %1909 = vmatmul.mubr.f32.gmra.mrb[0].mxu0 %v1840
        %v1910 = vpop.f32.mrb[0].mxu0
        %v1911 = vadd.f32 0.0, %v1910
        %v1912 = vpop.f32.mrb[0].mxu0
        %1913 = vdwg.mxu0
        %v1914 = vmul.f32 %v1911, 0.17677669
        %v1915 = vadd.f32 %v1914, %v860
        %v1916 = vsel %vm1184, %v1915, -inf
        %1917 = vmax.xlane.f32.xlu0 %v1916
        %v1918 = vpop.xlane.xlu0 %1917
        %v1919 = vsub.f32 %v1915, %v1918
        %v1920 = vmul.f32 %v1919, 1.442695
        %v1921 = vpow.pop %v1920
        %v1922 = vsel %vm1184, %v1921, 0.0
        %1923 = vadd.xlane.f32.xlu0 %v1922
        %v1924 = vpop.xlane.xlu0 %1923
        %v1925 = vrcp.pop %v1924
        %v1926 = vmul.f32 %v1921, %v1925
        %1927 = vrot.lane.b32.xlu0 %v1102, 32
        %v1928 = vpop.permute.xlu0 %1927
        %v1931 = vsel %vm1184, %v1926, 0
        %1933 = vmatprep.subr.mxu0 0.0
        %1934 = vmatpush1.msra.mxu0 %v1928
        %1935 = vmatprep.subr.mxu0 0.0
        %1936 = vmatpush1.msra.mxu0 0.0
        %1937 = vmatprep.subr.mxu0 0.0
        %1938 = vmatpush1.msra.mxu0 0.0
        %1939 = vmatprep.subr.mxu0 0.0
        %1940 = vmatpush1.msra.mxu0 0.0
        %1941 = vmatprep.subr.mxu0 0.0
        %1942 = vmatpush1.msra.mxu0 0.0
        %1943 = vmatprep.subr.mxu0 0.0
        %1944 = vmatpush1.msra.mxu0 0.0
        %1945 = vmatprep.subr.mxu0 0.0
        %1946 = vmatpush1.msra.mxu0 0.0
        %1947 = vmatprep.subr.mxu0 0.0
        %1948 = vmatpush1.msra.mxu0 0.0
        %1949 = vmatprep.subr.mxu0 0.0
        %1950 = vmatpush1.msra.mxu0 0.0
        %1951 = vmatprep.subr.mxu0 0.0
        %1952 = vmatpush1.msra.mxu0 0.0
        %1953 = vmatprep.subr.mxu0 0.0
        %1954 = vmatpush1.msra.mxu0 0.0
        %1955 = vmatprep.subr.mxu0 0.0
        %1956 = vmatpush1.msra.mxu0 0.0
        %1957 = vmatprep.subr.mxu0 0.0
        %1958 = vmatpush1.msra.mxu0 0.0
        %1959 = vmatprep.subr.mxu0 0.0
        %1960 = vmatpush1.msra.mxu0 0.0
        %1961 = vmatprep.subr.mxu0 0.0
        %1962 = vmatpush1.msra.mxu0 0.0
        %1963 = vmatprep.subr.mxu0 0.0
        %1964 = vmatpush1.msra.mxu0 0.0
        %1965 = vmatprep.subr.mxu0 0.0
        %1966 = vmatpush1.msra.mxu0 0.0
        %1967 = vmatprep.subr.mxu0 0.0
        %1968 = vmatpush1.msra.mxu0 0.0
        %1969 = vmatprep.subr.mxu0 0.0
        %1970 = vmatpush1.msra.mxu0 0.0
        %1971 = vmatprep.subr.mxu0 0.0
        %1972 = vmatpush1.msra.mxu0 0.0
        %1973 = vmatprep.subr.mxu0 0.0
        %1974 = vmatpush1.msra.mxu0 0.0
        %1975 = vmatprep.subr.mxu0 0.0
        %1976 = vmatpush1.msra.mxu0 0.0
        %1977 = vmatprep.subr.mxu0 0.0
        %1978 = vmatpush1.msra.mxu0 0.0
        %1979 = vmatprep.subr.mxu0 0.0
        %1980 = vmatpush1.msra.mxu0 0.0
        %1981 = vmatprep.subr.mxu0 0.0
        %1982 = vmatpush1.msra.mxu0 0.0
        %1983 = vmatprep.subr.mxu0 0.0
        %1984 = vmatpush1.msra.mxu0 0.0
        %1985 = vmatprep.subr.mxu0 0.0
        %1986 = vmatpush1.msra.mxu0 0.0
        %1987 = vmatprep.subr.mxu0 0.0
        %1988 = vmatpush1.msra.mxu0 0.0
        %1989 = vmatprep.subr.mxu0 0.0
        %1990 = vmatpush1.msra.mxu0 0.0
        %1991 = vmatprep.subr.mxu0 0.0
        %1992 = vmatpush1.msra.mxu0 0.0
        %1993 = vmatprep.subr.mxu0 0.0
        %1994 = vmatpush1.msra.mxu0 0.0
        %1995 = vmatprep.subr.mxu0 0.0
        %1996 = vmatpush1.msra.mxu0 0.0
        %1997 = vmatprep.mubr.f32.mxu0 0.0
        %1998 = vmatmul.mubr.f32.gmra.mrb[0].mxu0 %v1931
        %v1999 = vpop.f32.mrb[0].mxu0
        %v2000 = vadd.f32 0.0, %v1999
        %v2001 = vpop.f32.mrb[0].mxu0
        %2002 = vdwg.mxu0
        %v2003 = vld [vmem:[#allocation11 + $0x60] sm:$0xff]
        %v2004 = vld [vmem:[#allocation11 + $0x68] sm:$0xff]
        %v2005 = vld [vmem:[#allocation11 + $0x70] sm:$0xff]
        %v2006 = vld [vmem:[#allocation11 + $0x78] sm:$0xff]
        %v2008 = vsel %vm1105, %v2000, 0
        %2010 = vmatprep.subr.mxu0 0.0
        %2011 = vmatpush1.msra.mxu0 %v2003
        %2012 = vmatprep.subr.mxu0 0.0
        %2013 = vmatpush1.msra.mxu0 %v2004
        %2014 = vmatprep.subr.mxu0 0.0
        %2015 = vmatpush1.msra.mxu0 %v2005
        %2016 = vmatprep.subr.mxu0 0.0
        %2017 = vmatpush1.msra.mxu0 %v2006
        %2018 = vmatprep.subr.mxu0 0.0
        %2019 = vmatpush1.msra.mxu0 0.0
        %2020 = vmatprep.subr.mxu0 0.0
        %2021 = vmatpush1.msra.mxu0 0.0
        %2022 = vmatprep.subr.mxu0 0.0
        %2023 = vmatpush1.msra.mxu0 0.0
        %2024 = vmatprep.subr.mxu0 0.0
        %2025 = vmatpush1.msra.mxu0 0.0
        %2026 = vmatprep.subr.mxu0 0.0
        %2027 = vmatpush1.msra.mxu0 0.0
        %2028 = vmatprep.subr.mxu0 0.0
        %2029 = vmatpush1.msra.mxu0 0.0
        %2030 = vmatprep.subr.mxu0 0.0
        %2031 = vmatpush1.msra.mxu0 0.0
        %2032 = vmatprep.subr.mxu0 0.0
        %2033 = vmatpush1.msra.mxu0 0.0
        %2034 = vmatprep.subr.mxu0 0.0
        %2035 = vmatpush1.msra.mxu0 0.0
        %2036 = vmatprep.subr.mxu0 0.0
        %2037 = vmatpush1.msra.mxu0 0.0
        %2038 = vmatprep.subr.mxu0 0.0
        %2039 = vmatpush1.msra.mxu0 0.0
        %2040 = vmatprep.subr.mxu0 0.0
        %2041 = vmatpush1.msra.mxu0 0.0
        %2042 = vmatprep.subr.mxu0 0.0
        %2043 = vmatpush1.msra.mxu0 0.0
        %2044 = vmatprep.subr.mxu0 0.0
        %2045 = vmatpush1.msra.mxu0 0.0
        %2046 = vmatprep.subr.mxu0 0.0
        %2047 = vmatpush1.msra.mxu0 0.0
        %2048 = vmatprep.subr.mxu0 0.0
        %2049 = vmatpush1.msra.mxu0 0.0
        %2050 = vmatprep.subr.mxu0 0.0
        %2051 = vmatpush1.msra.mxu0 0.0
        %2052 = vmatprep.subr.mxu0 0.0
        %2053 = vmatpush1.msra.mxu0 0.0
        %2054 = vmatprep.subr.mxu0 0.0
        %2055 = vmatpush1.msra.mxu0 0.0
        %2056 = vmatprep.subr.mxu0 0.0
        %2057 = vmatpush1.msra.mxu0 0.0
        %2058 = vmatprep.subr.mxu0 0.0
        %2059 = vmatpush1.msra.mxu0 0.0
        %2060 = vmatprep.subr.mxu0 0.0
        %2061 = vmatpush1.msra.mxu0 0.0
        %2062 = vmatprep.subr.mxu0 0.0
        %2063 = vmatpush1.msra.mxu0 0.0
        %2064 = vmatprep.subr.mxu0 0.0
        %2065 = vmatpush1.msra.mxu0 0.0
        %2066 = vmatprep.subr.mxu0 0.0
        %2067 = vmatpush1.msra.mxu0 0.0
        %2068 = vmatprep.subr.mxu0 0.0
        %2069 = vmatpush1.msra.mxu0 0.0
        %2070 = vmatprep.subr.mxu0 0.0
        %2071 = vmatpush1.msra.mxu0 0.0
        %2072 = vmatprep.subr.mxu0 0.0
        %2073 = vmatpush1.msra.mxu0 0.0
        %2074 = vmatprep.mubr.f32.mxu0 0.0
        %2075 = vmatmul.mubr.f32.gmra.mrb[0].mxu0 %v2008
        %v2076 = vpop.f32.mrb[0].mxu0
        %v2077 = vadd.f32 0.0, %v2076
        %v2078 = vpop.f32.mrb[0].mxu0
        %2079 = vdwg.mxu0
        %v2080 = vadd.f32 %v1835, %v2077
        %v2081 = vld [vmem:[%s9] sm:$0x1]
        %v2083 = vlaneseq
        %v2084 = vshrl.u32 %v2083, 7
        %v2085 = vsub.s32 0, %v2084
        %v2086 = vrot.slane %v2081, %v2085
        %v2088 = vadd.f32 %v2080, %v2086
        %v2089 = vadd.f32 %v857, %v2088
        %2090 = vadd.xlane.f32.xlu0 %v2089
        %v2091 = vpop.xlane.xlu0 %2090
        %v2092 = vmul.f32 %v2091, %v864
        %v2093 = vsub.f32 %v2089, %v2092
        %v2094 = vmul.f32 %v2093, %v2093
        %2095 = vadd.xlane.f32.xlu0 %v2094
        %v2096 = vpop.xlane.xlu0 %2095
        %v2097 = vmul.f32 %v2096, %v870
        %v2098 = vrsqrt.pop %v2097
        %v2099 = vmul.f32 %v2097, %v2098
        %vm2100 = vcmp.eq.f32.partialorder %v2097, inf
        %v2101 = vsel %vm2100, %v2097, %v2099
        %vm2102 = vcmp.eq.f32.partialorder %v2097, 0.0
        %v2103 = vand.u32 %v2097, 2147483648
        %v2104 = vsel %vm2102, %v2103, %v2101
        %v2105 = vadd.f32 %v2104, 1e-06
        %v2106 = vrcp.pop %v2105
        %v2107 = vmul.f32 1.0, %v2106
        %s2108 = scalar_lea.vmem %s4, 1
        %v2109 = vld [vmem:[%s2108] sm:$0x1]
        %v2110 = vmul.f32 %v2093, %v2107
        %v2112 = vlaneseq
        %v2113 = vshrl.u32 %v2112, 7
        %v2114 = vsub.s32 0, %v2113
        %v2115 = vrot.slane %v2109, %v2114
        %v2117 = vmul.f32 %v2115, %v2110
        %s2118 = scalar_lea.vmem %s5, 1
        %v2119 = vld [vmem:[%s2118] sm:$0x1]
        %v2121 = vlaneseq
        %v2122 = vshrl.u32 %v2121, 7
        %v2123 = vsub.s32 0, %v2122
        %v2124 = vrot.slane %v2119, %v2123
        %v2126 = vadd.f32 %v2117, %v2124
        %v2127 = vld [vmem:[#allocation13] sm:$0xff]
        %v2128 = vld [vmem:[#allocation13 + $0x8] sm:$0xff]
        %v2129 = vld [vmem:[#allocation13 + $0x10] sm:$0xff]
        %v2130 = vld [vmem:[#allocation13 + $0x18] sm:$0xff]
        %v2131 = vld [vmem:[#allocation13 + $0x20] sm:$0xff]
        %v2132 = vld [vmem:[#allocation13 + $0x28] sm:$0xff]
        %v2133 = vld [vmem:[#allocation13 + $0x30] sm:$0xff]
        %v2134 = vld [vmem:[#allocation13 + $0x38] sm:$0xff]
        %v2135 = vld [vmem:[#allocation13 + $0x40] sm:$0xff]
        %v2136 = vld [vmem:[#allocation13 + $0x48] sm:$0xff]
        %v2137 = vld [vmem:[#allocation13 + $0x50] sm:$0xff]
        %v2138 = vld [vmem:[#allocation13 + $0x58] sm:$0xff]
        %v2139 = vld [vmem:[#allocation13 + $0x60] sm:$0xff]
        %v2140 = vld [vmem:[#allocation13 + $0x68] sm:$0xff]
        %v2141 = vld [vmem:[#allocation13 + $0x70] sm:$0xff]
        %v2142 = vld [vmem:[#allocation13 + $0x78] sm:$0xff]
        %v2143 = vld [vmem:[%s11] sm:$0x1]
        %v2145 = vlaneseq
        %v2146 = vshrl.u32 %v2145, 7
        %v2147 = vsub.s32 0, %v2146
        %v2148 = vrot.slane %v2143, %v2147
        %2150 = vmatprep.subr.mxu0 0.0
        %2151 = vmatpush1.msra.mxu0 %v2127
        %2152 = vmatprep.subr.mxu0 0.0
        %2153 = vmatpush1.msra.mxu0 %v2128
        %2154 = vmatprep.subr.mxu0 0.0
        %2155 = vmatpush1.msra.mxu0 %v2129
        %2156 = vmatprep.subr.mxu0 0.0
        %2157 = vmatpush1.msra.mxu0 %v2130
        %2158 = vmatprep.subr.mxu0 0.0
        %2159 = vmatpush1.msra.mxu0 %v2131
        %2160 = vmatprep.subr.mxu0 0.0
        %2161 = vmatpush1.msra.mxu0 %v2132
        %2162 = vmatprep.subr.mxu0 0.0
        %2163 = vmatpush1.msra.mxu0 %v2133
        %2164 = vmatprep.subr.mxu0 0.0
        %2165 = vmatpush1.msra.mxu0 %v2134
        %2166 = vmatprep.subr.mxu0 0.0
        %2167 = vmatpush1.msra.mxu0 %v2135
        %2168 = vmatprep.subr.mxu0 0.0
        %2169 = vmatpush1.msra.mxu0 %v2136
        %2170 = vmatprep.subr.mxu0 0.0
        %2171 = vmatpush1.msra.mxu0 %v2137
        %2172 = vmatprep.subr.mxu0 0.0
        %2173 = vmatpush1.msra.mxu0 %v2138
        %2174 = vmatprep.subr.mxu0 0.0
        %2175 = vmatpush1.msra.mxu0 %v2139
        %2176 = vmatprep.subr.mxu0 0.0
        %2177 = vmatpush1.msra.mxu0 %v2140
        %2178 = vmatprep.subr.mxu0 0.0
        %2179 = vmatpush1.msra.mxu0 %v2141
        %2180 = vmatprep.subr.mxu0 0.0
        %2181 = vmatpush1.msra.mxu0 %v2142
        %2182 = vmatprep.subr.mxu0 0.0
        %2183 = vmatpush1.msra.mxu0 0.0
        %2184 = vmatprep.subr.mxu0 0.0
        %2185 = vmatpush1.msra.mxu0 0.0
        %2186 = vmatprep.subr.mxu0 0.0
        %2187 = vmatpush1.msra.mxu0 0.0
        %2188 = vmatprep.subr.mxu0 0.0
        %2189 = vmatpush1.msra.mxu0 0.0
        %2190 = vmatprep.subr.mxu0 0.0
        %2191 = vmatpush1.msra.mxu0 0.0
        %2192 = vmatprep.subr.mxu0 0.0
        %2193 = vmatpush1.msra.mxu0 0.0
        %2194 = vmatprep.subr.mxu0 0.0
        %2195 = vmatpush1.msra.mxu0 0.0
        %2196 = vmatprep.subr.mxu0 0.0
        %2197 = vmatpush1.msra.mxu0 0.0
        %2198 = vmatprep.subr.mxu0 0.0
        %2199 = vmatpush1.msra.mxu0 0.0
        %2200 = vmatprep.subr.mxu0 0.0
        %2201 = vmatpush1.msra.mxu0 0.0
        %2202 = vmatprep.subr.mxu0 0.0
        %2203 = vmatpush1.msra.mxu0 0.0
        %2204 = vmatprep.subr.mxu0 0.0
        %2205 = vmatpush1.msra.mxu0 0.0
        %2206 = vmatprep.subr.mxu0 0.0
        %2207 = vmatpush1.msra.mxu0 0.0
        %2208 = vmatprep.subr.mxu0 0.0
        %2209 = vmatpush1.msra.mxu0 0.0
        %2210 = vmatprep.subr.mxu0 0.0
        %2211 = vmatpush1.msra.mxu0 0.0
        %2212 = vmatprep.subr.mxu0 0.0
        %2213 = vmatpush1.msra.mxu0 0.0
        %2214 = vmatprep.mubr.f32.mxu0 0.0
        %2215 = vmatmul.mubr.f32.gmra.mrb[0].mxu0 %v2126
        %v2216 = vpop.f32.mrb[0].mxu0
        %v2217 = vadd.f32 %v2148, %v2216
        %v2218 = vpop.f32.mrb[0].mxu0
        %2219 = vdwg.mxu0
        %v2220 = vld [vmem:[#allocation14] sm:$0xff]
        %v2221 = vld [vmem:[#allocation14 + $0x8] sm:$0xff]
        %v2222 = vld [vmem:[#allocation14 + $0x10] sm:$0xff]
        %v2223 = vld [vmem:[#allocation14 + $0x18] sm:$0xff]
        %v2224 = vld [vmem:[#allocation14 + $0x20] sm:$0xff]
        %v2225 = vld [vmem:[#allocation14 + $0x28] sm:$0xff]
        %v2226 = vld [vmem:[#allocation14 + $0x30] sm:$0xff]
        %v2227 = vld [vmem:[#allocation14 + $0x38] sm:$0xff]
        %v2228 = vld [vmem:[#allocation14 + $0x40] sm:$0xff]
        %v2229 = vld [vmem:[#allocation14 + $0x48] sm:$0xff]
        %v2230 = vld [vmem:[#allocation14 + $0x50] sm:$0xff]
        %v2231 = vld [vmem:[#allocation14 + $0x58] sm:$0xff]
        %v2232 = vld [vmem:[#allocation14 + $0x60] sm:$0xff]
        %v2233 = vld [vmem:[#allocation14 + $0x68] sm:$0xff]
        %v2234 = vld [vmem:[#allocation14 + $0x70] sm:$0xff]
        %v2235 = vld [vmem:[#allocation14 + $0x78] sm:$0xff]
        %v2236 = vld [vmem:[#allocation14 + $0x80] sm:$0xff]
        %v2237 = vld [vmem:[#allocation14 + $0x88] sm:$0xff]
        %v2238 = vld [vmem:[#allocation14 + $0x90] sm:$0xff]
        %v2239 = vld [vmem:[#allocation14 + $0x98] sm:$0xff]
        %v2240 = vld [vmem:[#allocation14 + $0xa0] sm:$0xff]
        %v2241 = vld [vmem:[#allocation14 + $0xa8] sm:$0xff]
        %v2242 = vld [vmem:[#allocation14 + $0xb0] sm:$0xff]
        %v2243 = vld [vmem:[#allocation14 + $0xb8] sm:$0xff]
        %v2244 = vld [vmem:[#allocation14 + $0xc0] sm:$0xff]
        %v2245 = vld [vmem:[#allocation14 + $0xc8] sm:$0xff]
        %v2246 = vld [vmem:[#allocation14 + $0xd0] sm:$0xff]
        %v2247 = vld [vmem:[#allocation14 + $0xd8] sm:$0xff]
        %v2248 = vld [vmem:[#allocation14 + $0xe0] sm:$0xff]
        %v2249 = vld [vmem:[#allocation14 + $0xe8] sm:$0xff]
        %v2250 = vld [vmem:[#allocation14 + $0xf0] sm:$0xff]
        %v2251 = vld [vmem:[#allocation14 + $0xf8] sm:$0xff]
        %v2252 = vld [vmem:[%s13] sm:$0x3]
        %v2254 = vlaneseq
        %v2255 = vshrl.u32 %v2254, 7
        %v2256 = vsub.s32 0, %v2255
        %v2257 = vrot.slane %v2252, %v2256
        %v2258 = vlaneseq
        %v2259 = vshrl.u32 %v2258, 7
        %v2260 = vsub.s32 1, %v2259
        %v2261 = vrot.slane %v2252, %v2260
        %2264 = vmatprep.subr.mxu0 %v2221
        %2265 = vmatpush1.msra.mxu0 %v2220
        %2266 = vmatprep.subr.mxu0 %v2223
        %2267 = vmatpush1.msra.mxu0 %v2222
        %2268 = vmatprep.subr.mxu0 %v2225
        %2269 = vmatpush1.msra.mxu0 %v2224
        %2270 = vmatprep.subr.mxu0 %v2227
        %2271 = vmatpush1.msra.mxu0 %v2226
        %2272 = vmatprep.subr.mxu0 %v2229
        %2273 = vmatpush1.msra.mxu0 %v2228
        %2274 = vmatprep.subr.mxu0 %v2231
        %2275 = vmatpush1.msra.mxu0 %v2230
        %2276 = vmatprep.subr.mxu0 %v2233
        %2277 = vmatpush1.msra.mxu0 %v2232
        %2278 = vmatprep.subr.mxu0 %v2235
        %2279 = vmatpush1.msra.mxu0 %v2234
        %2280 = vmatprep.subr.mxu0 %v2237
        %2281 = vmatpush1.msra.mxu0 %v2236
        %2282 = vmatprep.subr.mxu0 %v2239
        %2283 = vmatpush1.msra.mxu0 %v2238
        %2284 = vmatprep.subr.mxu0 %v2241
        %2285 = vmatpush1.msra.mxu0 %v2240
        %2286 = vmatprep.subr.mxu0 %v2243
        %2287 = vmatpush1.msra.mxu0 %v2242
        %2288 = vmatprep.subr.mxu0 %v2245
        %2289 = vmatpush1.msra.mxu0 %v2244
        %2290 = vmatprep.subr.mxu0 %v2247
        %2291 = vmatpush1.msra.mxu0 %v2246
        %2292 = vmatprep.subr.mxu0 %v2249
        %2293 = vmatpush1.msra.mxu0 %v2248
        %2294 = vmatprep.subr.mxu0 %v2251
        %2295 = vmatpush1.msra.mxu0 %v2250
        %2296 = vmatprep.subr.mxu0 0.0
        %2297 = vmatpush1.msra.mxu0 0.0
        %2298 = vmatprep.subr.mxu0 0.0
        %2299 = vmatpush1.msra.mxu0 0.0
        %2300 = vmatprep.subr.mxu0 0.0
        %2301 = vmatpush1.msra.mxu0 0.0
        %2302 = vmatprep.subr.mxu0 0.0
        %2303 = vmatpush1.msra.mxu0 0.0
        %2304 = vmatprep.subr.mxu0 0.0
        %2305 = vmatpush1.msra.mxu0 0.0
        %2306 = vmatprep.subr.mxu0 0.0
        %2307 = vmatpush1.msra.mxu0 0.0
        %2308 = vmatprep.subr.mxu0 0.0
        %2309 = vmatpush1.msra.mxu0 0.0
        %2310 = vmatprep.subr.mxu0 0.0
        %2311 = vmatpush1.msra.mxu0 0.0
        %2312 = vmatprep.subr.mxu0 0.0
        %2313 = vmatpush1.msra.mxu0 0.0
        %2314 = vmatprep.subr.mxu0 0.0
        %2315 = vmatpush1.msra.mxu0 0.0
        %2316 = vmatprep.subr.mxu0 0.0
        %2317 = vmatpush1.msra.mxu0 0.0
        %2318 = vmatprep.subr.mxu0 0.0
        %2319 = vmatpush1.msra.mxu0 0.0
        %2320 = vmatprep.subr.mxu0 0.0
        %2321 = vmatpush1.msra.mxu0 0.0
        %2322 = vmatprep.subr.mxu0 0.0
        %2323 = vmatpush1.msra.mxu0 0.0
        %2324 = vmatprep.subr.mxu0 0.0
        %2325 = vmatpush1.msra.mxu0 0.0
        %2326 = vmatprep.subr.mxu0 0.0
        %2327 = vmatpush1.msra.mxu0 0.0
        %2328 = vmatprep.mubr.f32.mxu0 0.0
        %2329 = vmatmul.mubr.f32.gmra.mrb[0].mxu0 %v858
        %v2330 = vpop.f32.mrb[0].mxu0
        %v2331 = vadd.f32 %v2257, %v2330
        %v2332 = vpop.f32.mrb[0].mxu0
        %v2333 = vadd.f32 %v2261, %v2332
        %2334 = vmatprep.mubr.f32.mxu0 0.0
        %2335 = vmatmul.mubr.f32.gmra.mrb[0].mxu0 %v859
        %v2336 = vpop.f32.mrb[0].mxu0
        %v2337 = vadd.f32 %v2257, %v2336
        %v2338 = vpop.f32.mrb[0].mxu0
        %v2339 = vadd.f32 %v2261, %v2338
        %2340 = vdwg.mxu0
        %v2342 = vsel %vm1105, %v2217, 0
        %v2345 = vsel %vm1105, %v2331, 0
        %v2348 = vsel %vm1105, %v2337, 0
        %2350 = vmatprep.subr.mxu0 0.0
        %2351 = vmatpush1.xpose.msra.mxu0 %v2345
        %2352 = vmatprep.subr.mxu0 0.0
        %2353 = vmatpush1.xpose.msra.mxu0 %v2348
        %2354 = vmatprep.subr.mxu0 0.0
        %2355 = vmatpush1.xpose.msra.mxu0 0.0
        %2356 = vmatprep.subr.mxu0 0.0
        %2357 = vmatpush1.xpose.msra.mxu0 0.0
        %2358 = vmatprep.subr.mxu0 0.0
        %2359 = vmatpush1.xpose.msra.mxu0 0.0
        %2360 = vmatprep.subr.mxu0 0.0
        %2361 = vmatpush1.xpose.msra.mxu0 0.0
        %2362 = vmatprep.subr.mxu0 0.0
        %2363 = vmatpush1.xpose.msra.mxu0 0.0
        %2364 = vmatprep.subr.mxu0 0.0
        %2365 = vmatpush1.xpose.msra.mxu0 0.0
        %2366 = vmatprep.subr.mxu0 0.0
        %2367 = vmatpush1.xpose.msra.mxu0 0.0
        %2368 = vmatprep.subr.mxu0 0.0
        %2369 = vmatpush1.xpose.msra.mxu0 0.0
        %2370 = vmatprep.subr.mxu0 0.0
        %2371 = vmatpush1.xpose.msra.mxu0 0.0
        %2372 = vmatprep.subr.mxu0 0.0
        %2373 = vmatpush1.xpose.msra.mxu0 0.0
        %2374 = vmatprep.subr.mxu0 0.0
        %2375 = vmatpush1.xpose.msra.mxu0 0.0
        %2376 = vmatprep.subr.mxu0 0.0
        %2377 = vmatpush1.xpose.msra.mxu0 0.0
        %2378 = vmatprep.subr.mxu0 0.0
        %2379 = vmatpush1.xpose.msra.mxu0 0.0
        %2380 = vmatprep.subr.mxu0 0.0
        %2381 = vmatpush1.xpose.msra.mxu0 0.0
        %2382 = vmatprep.subr.mxu0 0.0
        %2383 = vmatpush1.xpose.msra.mxu0 0.0
        %2384 = vmatprep.subr.mxu0 0.0
        %2385 = vmatpush1.xpose.msra.mxu0 0.0
        %2386 = vmatprep.subr.mxu0 0.0
        %2387 = vmatpush1.xpose.msra.mxu0 0.0
        %2388 = vmatprep.subr.mxu0 0.0
        %2389 = vmatpush1.xpose.msra.mxu0 0.0
        %2390 = vmatprep.subr.mxu0 0.0
        %2391 = vmatpush1.xpose.msra.mxu0 0.0
        %2392 = vmatprep.subr.mxu0 0.0
        %2393 = vmatpush1.xpose.msra.mxu0 0.0
        %2394 = vmatprep.subr.mxu0 0.0
        %2395 = vmatpush1.xpose.msra.mxu0 0.0
        %2396 = vmatprep.subr.mxu0 0.0
        %2397 = vmatpush1.xpose.msra.mxu0 0.0
        %2398 = vmatprep.subr.mxu0 0.0
        %2399 = vmatpush1.xpose.msra.mxu0 0.0
        %2400 = vmatprep.subr.mxu0 0.0
        %2401 = vmatpush1.xpose.msra.mxu0 0.0
        %2402 = vmatprep.subr.mxu0 0.0
        %2403 = vmatpush1.xpose.msra.mxu0 0.0
        %2404 = vmatprep.subr.mxu0 0.0
        %2405 = vmatpush1.xpose.msra.mxu0 0.0
        %2406 = vmatprep.subr.mxu0 0.0
        %2407 = vmatpush1.xpose.msra.mxu0 0.0
        %2408 = vmatprep.subr.mxu0 0.0
        %2409 = vmatpush1.xpose.msra.mxu0 0.0
        %2410 = vmatprep.subr.mxu0 0.0
        %2411 = vmatpush1.xpose.msra.mxu0 0.0
        %2412 = vmatprep.subr.mxu0 0.0
        %2413 = vmatpush1.xpose.msra.mxu0 0.0
        %2414 = vmatprep.mubr.f32.mxu0 0.0
        %2415 = vmatmul.mubr.f32.gmra.mrb[0].mxu0 %v2342
        %v2416 = vpop.f32.mrb[0].mxu0
        %v2417 = vadd.f32 0.0, %v2416
        %v2418 = vpop.f32.mrb[0].mxu0
        %2419 = vdwg.mxu0
        %v2420 = vmul.f32 %v2417, 0.17677669
        %v2421 = vadd.f32 %v2420, %v861
        %vm2422 = vcmask 130048
        %v2423 = vsel %vm2422, %v2421, -inf
        %2424 = vmax.xlane.f32.xlu0 %v2423
        %v2425 = vpop.xlane.xlu0 %2424
        %v2426 = vsub.f32 %v2421, %v2425
        %v2427 = vmul.f32 %v2426, 1.442695
        %v2428 = vpow.pop %v2427
        %v2429 = vsel %vm2422, %v2428, 0.0
        %2430 = vadd.xlane.f32.xlu0 %v2429
        %v2431 = vpop.xlane.xlu0 %2430
        %v2432 = vrcp.pop %v2431
        %v2433 = vmul.f32 %v2428, %v2432
        %v2435 = vsel %vm2422, %v2433, 0
        %2437 = vmatprep.subr.mxu0 0.0
        %2438 = vmatpush1.msra.mxu0 %v2333
        %2439 = vmatprep.subr.mxu0 0.0
        %2440 = vmatpush1.msra.mxu0 %v2339
        %2441 = vmatprep.subr.mxu0 0.0
        %2442 = vmatpush1.msra.mxu0 0.0
        %2443 = vmatprep.subr.mxu0 0.0
        %2444 = vmatpush1.msra.mxu0 0.0
        %2445 = vmatprep.subr.mxu0 0.0
        %2446 = vmatpush1.msra.mxu0 0.0
        %2447 = vmatprep.subr.mxu0 0.0
        %2448 = vmatpush1.msra.mxu0 0.0
        %2449 = vmatprep.subr.mxu0 0.0
        %2450 = vmatpush1.msra.mxu0 0.0
        %2451 = vmatprep.subr.mxu0 0.0
        %2452 = vmatpush1.msra.mxu0 0.0
        %2453 = vmatprep.subr.mxu0 0.0
        %2454 = vmatpush1.msra.mxu0 0.0
        %2455 = vmatprep.subr.mxu0 0.0
        %2456 = vmatpush1.msra.mxu0 0.0
        %2457 = vmatprep.subr.mxu0 0.0
        %2458 = vmatpush1.msra.mxu0 0.0
        %2459 = vmatprep.subr.mxu0 0.0
        %2460 = vmatpush1.msra.mxu0 0.0
        %2461 = vmatprep.subr.mxu0 0.0
        %2462 = vmatpush1.msra.mxu0 0.0
        %2463 = vmatprep.subr.mxu0 0.0
        %2464 = vmatpush1.msra.mxu0 0.0
        %2465 = vmatprep.subr.mxu0 0.0
        %2466 = vmatpush1.msra.mxu0 0.0
        %2467 = vmatprep.subr.mxu0 0.0
        %2468 = vmatpush1.msra.mxu0 0.0
        %2469 = vmatprep.subr.mxu0 0.0
        %2470 = vmatpush1.msra.mxu0 0.0
        %2471 = vmatprep.subr.mxu0 0.0
        %2472 = vmatpush1.msra.mxu0 0.0
        %2473 = vmatprep.subr.mxu0 0.0
        %2474 = vmatpush1.msra.mxu0 0.0
        %2475 = vmatprep.subr.mxu0 0.0
        %2476 = vmatpush1.msra.mxu0 0.0
        %2477 = vmatprep.subr.mxu0 0.0
        %2478 = vmatpush1.msra.mxu0 0.0
        %2479 = vmatprep.subr.mxu0 0.0
        %2480 = vmatpush1.msra.mxu0 0.0
        %2481 = vmatprep.subr.mxu0 0.0
        %2482 = vmatpush1.msra.mxu0 0.0
        %2483 = vmatprep.subr.mxu0 0.0
        %2484 = vmatpush1.msra.mxu0 0.0
        %2485 = vmatprep.subr.mxu0 0.0
        %2486 = vmatpush1.msra.mxu0 0.0
        %2487 = vmatprep.subr.mxu0 0.0
        %2488 = vmatpush1.msra.mxu0 0.0
        %2489 = vmatprep.subr.mxu0 0.0
        %2490 = vmatpush1.msra.mxu0 0.0
        %2491 = vmatprep.subr.mxu0 0.0
        %2492 = vmatpush1.msra.mxu0 0.0
        %2493 = vmatprep.subr.mxu0 0.0
        %2494 = vmatpush1.msra.mxu0 0.0
        %2495 = vmatprep.subr.mxu0 0.0
        %2496 = vmatpush1.msra.mxu0 0.0
        %2497 = vmatprep.subr.mxu0 0.0
        %2498 = vmatpush1.msra.mxu0 0.0
        %2499 = vmatprep.subr.mxu0 0.0
        %2500 = vmatpush1.msra.mxu0 0.0
        %2501 = vmatprep.mubr.f32.mxu0 0.0
        %2502 = vmatmul.mubr.f32.gmra.mrb[0].mxu0 %v2435
        %v2503 = vpop.f32.mrb[0].mxu0
        %v2504 = vadd.f32 0.0, %v2503
        %v2505 = vpop.f32.mrb[0].mxu0
        %2506 = vdwg.mxu0
        %v2507 = vld [vmem:[#allocation16] sm:$0xff]
        %v2508 = vld [vmem:[#allocation16 + $0x8] sm:$0xff]
        %v2509 = vld [vmem:[#allocation16 + $0x10] sm:$0xff]
        %v2510 = vld [vmem:[#allocation16 + $0x18] sm:$0xff]
        %2511 = vrot.lane.b32.xlu0 %v2217, 96
        %v2512 = vpop.permute.xlu0 %2511
        %2513 = vrot.lane.b32.xlu0 %v2331, 96
        %v2514 = vpop.permute.xlu0 %2513
        %2515 = vrot.lane.b32.xlu0 %v2337, 96
        %v2516 = vpop.permute.xlu0 %2515
        %v2517 = vsel %vm1105, %v2512, 0
        %v2519 = vsel %vm1105, %v2514, 0
        %v2521 = vsel %vm1105, %v2516, 0
        %2523 = vmatprep.subr.mxu0 0.0
        %2524 = vmatpush1.xpose.msra.mxu0 %v2519
        %2525 = vmatprep.subr.mxu0 0.0
        %2526 = vmatpush1.xpose.msra.mxu0 %v2521
        %2527 = vmatprep.subr.mxu0 0.0
        %2528 = vmatpush1.xpose.msra.mxu0 0.0
        %2529 = vmatprep.subr.mxu0 0.0
        %2530 = vmatpush1.xpose.msra.mxu0 0.0
        %2531 = vmatprep.subr.mxu0 0.0
        %2532 = vmatpush1.xpose.msra.mxu0 0.0
        %2533 = vmatprep.subr.mxu0 0.0
        %2534 = vmatpush1.xpose.msra.mxu0 0.0
        %2535 = vmatprep.subr.mxu0 0.0
        %2536 = vmatpush1.xpose.msra.mxu0 0.0
        %2537 = vmatprep.subr.mxu0 0.0
        %2538 = vmatpush1.xpose.msra.mxu0 0.0
        %2539 = vmatprep.subr.mxu0 0.0
        %2540 = vmatpush1.xpose.msra.mxu0 0.0
        %2541 = vmatprep.subr.mxu0 0.0
        %2542 = vmatpush1.xpose.msra.mxu0 0.0
        %2543 = vmatprep.subr.mxu0 0.0
        %2544 = vmatpush1.xpose.msra.mxu0 0.0
        %2545 = vmatprep.subr.mxu0 0.0
        %2546 = vmatpush1.xpose.msra.mxu0 0.0
        %2547 = vmatprep.subr.mxu0 0.0
        %2548 = vmatpush1.xpose.msra.mxu0 0.0
        %2549 = vmatprep.subr.mxu0 0.0
        %2550 = vmatpush1.xpose.msra.mxu0 0.0
        %2551 = vmatprep.subr.mxu0 0.0
        %2552 = vmatpush1.xpose.msra.mxu0 0.0
        %2553 = vmatprep.subr.mxu0 0.0
        %2554 = vmatpush1.xpose.msra.mxu0 0.0
        %2555 = vmatprep.subr.mxu0 0.0
        %2556 = vmatpush1.xpose.msra.mxu0 0.0
        %2557 = vmatprep.subr.mxu0 0.0
        %2558 = vmatpush1.xpose.msra.mxu0 0.0
        %2559 = vmatprep.subr.mxu0 0.0
        %2560 = vmatpush1.xpose.msra.mxu0 0.0
        %2561 = vmatprep.subr.mxu0 0.0
        %2562 = vmatpush1.xpose.msra.mxu0 0.0
        %2563 = vmatprep.subr.mxu0 0.0
        %2564 = vmatpush1.xpose.msra.mxu0 0.0
        %2565 = vmatprep.subr.mxu0 0.0
        %2566 = vmatpush1.xpose.msra.mxu0 0.0
        %2567 = vmatprep.subr.mxu0 0.0
        %2568 = vmatpush1.xpose.msra.mxu0 0.0
        %2569 = vmatprep.subr.mxu0 0.0
        %2570 = vmatpush1.xpose.msra.mxu0 0.0
        %2571 = vmatprep.subr.mxu0 0.0
        %2572 = vmatpush1.xpose.msra.mxu0 0.0
        %2573 = vmatprep.subr.mxu0 0.0
        %2574 = vmatpush1.xpose.msra.mxu0 0.0
        %2575 = vmatprep.subr.mxu0 0.0
        %2576 = vmatpush1.xpose.msra.mxu0 0.0
        %2577 = vmatprep.subr.mxu0 0.0
        %2578 = vmatpush1.xpose.msra.mxu0 0.0
        %2579 = vmatprep.subr.mxu0 0.0
        %2580 = vmatpush1.xpose.msra.mxu0 0.0
        %2581 = vmatprep.subr.mxu0 0.0
        %2582 = vmatpush1.xpose.msra.mxu0 0.0
        %2583 = vmatprep.subr.mxu0 0.0
        %2584 = vmatpush1.xpose.msra.mxu0 0.0
        %2585 = vmatprep.subr.mxu0 0.0
        %2586 = vmatpush1.xpose.msra.mxu0 0.0
        %2587 = vmatprep.mubr.f32.mxu0 0.0
        %2588 = vmatmul.mubr.f32.gmra.mrb[0].mxu0 %v2517
        %v2589 = vpop.f32.mrb[0].mxu0
        %v2590 = vadd.f32 0.0, %v2589
        %v2591 = vpop.f32.mrb[0].mxu0
        %2592 = vdwg.mxu0
        %v2593 = vmul.f32 %v2590, 0.17677669
        %v2594 = vadd.f32 %v2593, %v861
        %v2595 = vsel %vm2422, %v2594, -inf
        %2596 = vmax.xlane.f32.xlu0 %v2595
        %v2597 = vpop.xlane.xlu0 %2596
        %v2598 = vsub.f32 %v2594, %v2597
        %v2599 = vmul.f32 %v2598, 1.442695
        %v2600 = vpow.pop %v2599
        %v2601 = vsel %vm2422, %v2600, 0.0
        %2602 = vadd.xlane.f32.xlu0 %v2601
        %v2603 = vpop.xlane.xlu0 %2602
        %v2604 = vrcp.pop %v2603
        %v2605 = vmul.f32 %v2600, %v2604
        %2608 = vrot.lane.b32.xlu0 %v2333, 96
        %v2609 = vpop.permute.xlu0 %2608
        %2610 = vrot.lane.b32.xlu0 %v2339, 96
        %v2611 = vpop.permute.xlu0 %2610
        %v2615 = vsel %vm2422, %v2605, 0
        %2617 = vmatprep.subr.mxu0 0.0
        %2618 = vmatpush1.msra.mxu0 %v2609
        %2619 = vmatprep.subr.mxu0 0.0
        %2620 = vmatpush1.msra.mxu0 %v2611
        %2621 = vmatprep.subr.mxu0 0.0
        %2622 = vmatpush1.msra.mxu0 0.0
        %2623 = vmatprep.subr.mxu0 0.0
        %2624 = vmatpush1.msra.mxu0 0.0
        %2625 = vmatprep.subr.mxu0 0.0
        %2626 = vmatpush1.msra.mxu0 0.0
        %2627 = vmatprep.subr.mxu0 0.0
        %2628 = vmatpush1.msra.mxu0 0.0
        %2629 = vmatprep.subr.mxu0 0.0
        %2630 = vmatpush1.msra.mxu0 0.0
        %2631 = vmatprep.subr.mxu0 0.0
        %2632 = vmatpush1.msra.mxu0 0.0
        %2633 = vmatprep.subr.mxu0 0.0
        %2634 = vmatpush1.msra.mxu0 0.0
        %2635 = vmatprep.subr.mxu0 0.0
        %2636 = vmatpush1.msra.mxu0 0.0
        %2637 = vmatprep.subr.mxu0 0.0
        %2638 = vmatpush1.msra.mxu0 0.0
        %2639 = vmatprep.subr.mxu0 0.0
        %2640 = vmatpush1.msra.mxu0 0.0
        %2641 = vmatprep.subr.mxu0 0.0
        %2642 = vmatpush1.msra.mxu0 0.0
        %2643 = vmatprep.subr.mxu0 0.0
        %2644 = vmatpush1.msra.mxu0 0.0
        %2645 = vmatprep.subr.mxu0 0.0
        %2646 = vmatpush1.msra.mxu0 0.0
        %2647 = vmatprep.subr.mxu0 0.0
        %2648 = vmatpush1.msra.mxu0 0.0
        %2649 = vmatprep.subr.mxu0 0.0
        %2650 = vmatpush1.msra.mxu0 0.0
        %2651 = vmatprep.subr.mxu0 0.0
        %2652 = vmatpush1.msra.mxu0 0.0
        %2653 = vmatprep.subr.mxu0 0.0
        %2654 = vmatpush1.msra.mxu0 0.0
        %2655 = vmatprep.subr.mxu0 0.0
        %2656 = vmatpush1.msra.mxu0 0.0
        %2657 = vmatprep.subr.mxu0 0.0
        %2658 = vmatpush1.msra.mxu0 0.0
        %2659 = vmatprep.subr.mxu0 0.0
        %2660 = vmatpush1.msra.mxu0 0.0
        %2661 = vmatprep.subr.mxu0 0.0
        %2662 = vmatpush1.msra.mxu0 0.0
        %2663 = vmatprep.subr.mxu0 0.0
        %2664 = vmatpush1.msra.mxu0 0.0
        %2665 = vmatprep.subr.mxu0 0.0
        %2666 = vmatpush1.msra.mxu0 0.0
        %2667 = vmatprep.subr.mxu0 0.0
        %2668 = vmatpush1.msra.mxu0 0.0
        %2669 = vmatprep.subr.mxu0 0.0
        %2670 = vmatpush1.msra.mxu0 0.0
        %2671 = vmatprep.subr.mxu0 0.0
        %2672 = vmatpush1.msra.mxu0 0.0
        %2673 = vmatprep.subr.mxu0 0.0
        %2674 = vmatpush1.msra.mxu0 0.0
        %2675 = vmatprep.subr.mxu0 0.0
        %2676 = vmatpush1.msra.mxu0 0.0
        %2677 = vmatprep.subr.mxu0 0.0
        %2678 = vmatpush1.msra.mxu0 0.0
        %2679 = vmatprep.subr.mxu0 0.0
        %2680 = vmatpush1.msra.mxu0 0.0
        %2681 = vmatprep.mubr.f32.mxu0 0.0
        %2682 = vmatmul.mubr.f32.gmra.mrb[0].mxu0 %v2615
        %v2683 = vpop.f32.mrb[0].mxu0
        %v2684 = vadd.f32 0.0, %v2683
        %v2685 = vpop.f32.mrb[0].mxu0
        %2686 = vdwg.mxu0
        %v2687 = vld [vmem:[#allocation16 + $0x20] sm:$0xff]
        %v2688 = vld [vmem:[#allocation16 + $0x28] sm:$0xff]
        %v2689 = vld [vmem:[#allocation16 + $0x30] sm:$0xff]
        %v2690 = vld [vmem:[#allocation16 + $0x38] sm:$0xff]
        %v2692 = vsel %vm1105, %v2684, 0
        %2694 = vmatprep.subr.mxu0 0.0
        %2695 = vmatpush1.msra.mxu0 %v2687
        %2696 = vmatprep.subr.mxu0 0.0
        %2697 = vmatpush1.msra.mxu0 %v2688
        %2698 = vmatprep.subr.mxu0 0.0
        %2699 = vmatpush1.msra.mxu0 %v2689
        %2700 = vmatprep.subr.mxu0 0.0
        %2701 = vmatpush1.msra.mxu0 %v2690
        %2702 = vmatprep.subr.mxu0 0.0
        %2703 = vmatpush1.msra.mxu0 0.0
        %2704 = vmatprep.subr.mxu0 0.0
        %2705 = vmatpush1.msra.mxu0 0.0
        %2706 = vmatprep.subr.mxu0 0.0
        %2707 = vmatpush1.msra.mxu0 0.0
        %2708 = vmatprep.subr.mxu0 0.0
        %2709 = vmatpush1.msra.mxu0 0.0
        %2710 = vmatprep.subr.mxu0 0.0
        %2711 = vmatpush1.msra.mxu0 0.0
        %2712 = vmatprep.subr.mxu0 0.0
        %2713 = vmatpush1.msra.mxu0 0.0
        %2714 = vmatprep.subr.mxu0 0.0
        %2715 = vmatpush1.msra.mxu0 0.0
        %2716 = vmatprep.subr.mxu0 0.0
        %2717 = vmatpush1.msra.mxu0 0.0
        %2718 = vmatprep.subr.mxu0 0.0
        %2719 = vmatpush1.msra.mxu0 0.0
        %2720 = vmatprep.subr.mxu0 0.0
        %2721 = vmatpush1.msra.mxu0 0.0
        %2722 = vmatprep.subr.mxu0 0.0
        %2723 = vmatpush1.msra.mxu0 0.0
        %2724 = vmatprep.subr.mxu0 0.0
        %2725 = vmatpush1.msra.mxu0 0.0
        %2726 = vmatprep.subr.mxu0 0.0
        %2727 = vmatpush1.msra.mxu0 0.0
        %2728 = vmatprep.subr.mxu0 0.0
        %2729 = vmatpush1.msra.mxu0 0.0
        %2730 = vmatprep.subr.mxu0 0.0
        %2731 = vmatpush1.msra.mxu0 0.0
        %2732 = vmatprep.subr.mxu0 0.0
        %2733 = vmatpush1.msra.mxu0 0.0
        %2734 = vmatprep.subr.mxu0 0.0
        %2735 = vmatpush1.msra.mxu0 0.0
        %2736 = vmatprep.subr.mxu0 0.0
        %2737 = vmatpush1.msra.mxu0 0.0
        %2738 = vmatprep.subr.mxu0 0.0
        %2739 = vmatpush1.msra.mxu0 0.0
        %2740 = vmatprep.subr.mxu0 0.0
        %2741 = vmatpush1.msra.mxu0 0.0
        %2742 = vmatprep.subr.mxu0 0.0
        %2743 = vmatpush1.msra.mxu0 0.0
        %2744 = vmatprep.subr.mxu0 0.0
        %2745 = vmatpush1.msra.mxu0 0.0
        %2746 = vmatprep.subr.mxu0 0.0
        %2747 = vmatpush1.msra.mxu0 0.0
        %2748 = vmatprep.subr.mxu0 0.0
        %2749 = vmatpush1.msra.mxu0 0.0
        %2750 = vmatprep.subr.mxu0 0.0
        %2751 = vmatpush1.msra.mxu0 0.0
        %2752 = vmatprep.subr.mxu0 0.0
        %2753 = vmatpush1.msra.mxu0 0.0
        %2754 = vmatprep.subr.mxu0 0.0
        %2755 = vmatpush1.msra.mxu0 0.0
        %2756 = vmatprep.subr.mxu0 0.0
        %2757 = vmatpush1.msra.mxu0 0.0
        %2758 = vmatprep.mubr.f32.mxu0 0.0
        %2759 = vmatmul.mubr.f32.gmra.mrb[0].mxu0 %v2692
        %v2760 = vpop.f32.mrb[0].mxu0
        %v2761 = vadd.f32 0.0, %v2760
        %v2762 = vpop.f32.mrb[0].mxu0
        %2763 = vdwg.mxu0
        %v2765 = vsel %vm1105, %v2504, 0
        %2767 = vmatprep.subr.mxu0 0.0
        %2768 = vmatpush1.msra.mxu0 %v2507
        %2769 = vmatprep.subr.mxu0 0.0
        %2770 = vmatpush1.msra.mxu0 %v2508
        %2771 = vmatprep.subr.mxu0 0.0
        %2772 = vmatpush1.msra.mxu0 %v2509
        %2773 = vmatprep.subr.mxu0 0.0
        %2774 = vmatpush1.msra.mxu0 %v2510
        %2775 = vmatprep.subr.mxu0 0.0
        %2776 = vmatpush1.msra.mxu0 0.0
        %2777 = vmatprep.subr.mxu0 0.0
        %2778 = vmatpush1.msra.mxu0 0.0
        %2779 = vmatprep.subr.mxu0 0.0
        %2780 = vmatpush1.msra.mxu0 0.0
        %2781 = vmatprep.subr.mxu0 0.0
        %2782 = vmatpush1.msra.mxu0 0.0
        %2783 = vmatprep.subr.mxu0 0.0
        %2784 = vmatpush1.msra.mxu0 0.0
        %2785 = vmatprep.subr.mxu0 0.0
        %2786 = vmatpush1.msra.mxu0 0.0
        %2787 = vmatprep.subr.mxu0 0.0
        %2788 = vmatpush1.msra.mxu0 0.0
        %2789 = vmatprep.subr.mxu0 0.0
        %2790 = vmatpush1.msra.mxu0 0.0
        %2791 = vmatprep.subr.mxu0 0.0
        %2792 = vmatpush1.msra.mxu0 0.0
        %2793 = vmatprep.subr.mxu0 0.0
        %2794 = vmatpush1.msra.mxu0 0.0
        %2795 = vmatprep.subr.mxu0 0.0
        %2796 = vmatpush1.msra.mxu0 0.0
        %2797 = vmatprep.subr.mxu0 0.0
        %2798 = vmatpush1.msra.mxu0 0.0
        %2799 = vmatprep.subr.mxu0 0.0
        %2800 = vmatpush1.msra.mxu0 0.0
        %2801 = vmatprep.subr.mxu0 0.0
        %2802 = vmatpush1.msra.mxu0 0.0
        %2803 = vmatprep.subr.mxu0 0.0
        %2804 = vmatpush1.msra.mxu0 0.0
        %2805 = vmatprep.subr.mxu0 0.0
        %2806 = vmatpush1.msra.mxu0 0.0
        %2807 = vmatprep.subr.mxu0 0.0
        %2808 = vmatpush1.msra.mxu0 0.0
        %2809 = vmatprep.subr.mxu0 0.0
        %2810 = vmatpush1.msra.mxu0 0.0
        %2811 = vmatprep.subr.mxu0 0.0
        %2812 = vmatpush1.msra.mxu0 0.0
        %2813 = vmatprep.subr.mxu0 0.0
        %2814 = vmatpush1.msra.mxu0 0.0
        %2815 = vmatprep.subr.mxu0 0.0
        %2816 = vmatpush1.msra.mxu0 0.0
        %2817 = vmatprep.subr.mxu0 0.0
        %2818 = vmatpush1.msra.mxu0 0.0
        %2819 = vmatprep.subr.mxu0 0.0
        %2820 = vmatpush1.msra.mxu0 0.0
        %2821 = vmatprep.subr.mxu0 0.0
        %2822 = vmatpush1.msra.mxu0 0.0
        %2823 = vmatprep.subr.mxu0 0.0
        %2824 = vmatpush1.msra.mxu0 0.0
        %2825 = vmatprep.subr.mxu0 0.0
        %2826 = vmatpush1.msra.mxu0 0.0
        %2827 = vmatprep.subr.mxu0 0.0
        %2828 = vmatpush1.msra.mxu0 0.0
        %2829 = vmatprep.subr.mxu0 0.0
        %2830 = vmatpush1.msra.mxu0 0.0
        %2831 = vmatprep.mubr.f32.mxu0 0.0
        %2832 = vmatmul.mubr.f32.gmra.mrb[0].mxu0 %v2765
        %v2833 = vpop.f32.mrb[0].mxu0
        %v2834 = vadd.f32 %v2761, %v2833
        %v2835 = vpop.f32.mrb[0].mxu0
        %2836 = vdwg.mxu0
        %2837 = vrot.lane.b32.xlu0 %v2217, 64
        %v2838 = vpop.permute.xlu0 %2837
        %2839 = vrot.lane.b32.xlu0 %v2331, 64
        %v2840 = vpop.permute.xlu0 %2839
        %2841 = vrot.lane.b32.xlu0 %v2337, 64
        %v2842 = vpop.permute.xlu0 %2841
        %v2843 = vsel %vm1105, %v2838, 0
        %v2845 = vsel %vm1105, %v2840, 0
        %v2847 = vsel %vm1105, %v2842, 0
        %2849 = vmatprep.subr.mxu0 0.0
        %2850 = vmatpush1.xpose.msra.mxu0 %v2845
        %2851 = vmatprep.subr.mxu0 0.0
        %2852 = vmatpush1.xpose.msra.mxu0 %v2847
        %2853 = vmatprep.subr.mxu0 0.0
        %2854 = vmatpush1.xpose.msra.mxu0 0.0
        %2855 = vmatprep.subr.mxu0 0.0
        %2856 = vmatpush1.xpose.msra.mxu0 0.0
        %2857 = vmatprep.subr.mxu0 0.0
        %2858 = vmatpush1.xpose.msra.mxu0 0.0
        %2859 = vmatprep.subr.mxu0 0.0
        %2860 = vmatpush1.xpose.msra.mxu0 0.0
        %2861 = vmatprep.subr.mxu0 0.0
        %2862 = vmatpush1.xpose.msra.mxu0 0.0
        %2863 = vmatprep.subr.mxu0 0.0
        %2864 = vmatpush1.xpose.msra.mxu0 0.0
        %2865 = vmatprep.subr.mxu0 0.0
        %2866 = vmatpush1.xpose.msra.mxu0 0.0
        %2867 = vmatprep.subr.mxu0 0.0
        %2868 = vmatpush1.xpose.msra.mxu0 0.0
        %2869 = vmatprep.subr.mxu0 0.0
        %2870 = vmatpush1.xpose.msra.mxu0 0.0
        %2871 = vmatprep.subr.mxu0 0.0
        %2872 = vmatpush1.xpose.msra.mxu0 0.0
        %2873 = vmatprep.subr.mxu0 0.0
        %2874 = vmatpush1.xpose.msra.mxu0 0.0
        %2875 = vmatprep.subr.mxu0 0.0
        %2876 = vmatpush1.xpose.msra.mxu0 0.0
        %2877 = vmatprep.subr.mxu0 0.0
        %2878 = vmatpush1.xpose.msra.mxu0 0.0
        %2879 = vmatprep.subr.mxu0 0.0
        %2880 = vmatpush1.xpose.msra.mxu0 0.0
        %2881 = vmatprep.subr.mxu0 0.0
        %2882 = vmatpush1.xpose.msra.mxu0 0.0
        %2883 = vmatprep.subr.mxu0 0.0
        %2884 = vmatpush1.xpose.msra.mxu0 0.0
        %2885 = vmatprep.subr.mxu0 0.0
        %2886 = vmatpush1.xpose.msra.mxu0 0.0
        %2887 = vmatprep.subr.mxu0 0.0
        %2888 = vmatpush1.xpose.msra.mxu0 0.0
        %2889 = vmatprep.subr.mxu0 0.0
        %2890 = vmatpush1.xpose.msra.mxu0 0.0
        %2891 = vmatprep.subr.mxu0 0.0
        %2892 = vmatpush1.xpose.msra.mxu0 0.0
        %2893 = vmatprep.subr.mxu0 0.0
        %2894 = vmatpush1.xpose.msra.mxu0 0.0
        %2895 = vmatprep.subr.mxu0 0.0
        %2896 = vmatpush1.xpose.msra.mxu0 0.0
        %2897 = vmatprep.subr.mxu0 0.0
        %2898 = vmatpush1.xpose.msra.mxu0 0.0
        %2899 = vmatprep.subr.mxu0 0.0
        %2900 = vmatpush1.xpose.msra.mxu0 0.0
        %2901 = vmatprep.subr.mxu0 0.0
        %2902 = vmatpush1.xpose.msra.mxu0 0.0
        %2903 = vmatprep.subr.mxu0 0.0
        %2904 = vmatpush1.xpose.msra.mxu0 0.0
        %2905 = vmatprep.subr.mxu0 0.0
        %2906 = vmatpush1.xpose.msra.mxu0 0.0
        %2907 = vmatprep.subr.mxu0 0.0
        %2908 = vmatpush1.xpose.msra.mxu0 0.0
        %2909 = vmatprep.subr.mxu0 0.0
        %2910 = vmatpush1.xpose.msra.mxu0 0.0
        %2911 = vmatprep.subr.mxu0 0.0
        %2912 = vmatpush1.xpose.msra.mxu0 0.0
        %2913 = vmatprep.mubr.f32.mxu0 0.0
        %2914 = vmatmul.mubr.f32.gmra.mrb[0].mxu0 %v2843
        %v2915 = vpop.f32.mrb[0].mxu0
        %v2916 = vadd.f32 0.0, %v2915
        %v2917 = vpop.f32.mrb[0].mxu0
        %2918 = vdwg.mxu0
        %v2919 = vmul.f32 %v2916, 0.17677669
        %v2920 = vadd.f32 %v2919, %v861
        %v2921 = vsel %vm2422, %v2920, -inf
        %2922 = vmax.xlane.f32.xlu0 %v2921
        %v2923 = vpop.xlane.xlu0 %2922
        %v2924 = vsub.f32 %v2920, %v2923
        %v2925 = vmul.f32 %v2924, 1.442695
        %v2926 = vpow.pop %v2925
        %v2927 = vsel %vm2422, %v2926, 0.0
        %2928 = vadd.xlane.f32.xlu0 %v2927
        %v2929 = vpop.xlane.xlu0 %2928
        %v2930 = vrcp.pop %v2929
        %v2931 = vmul.f32 %v2926, %v2930
        %2932 = vrot.lane.b32.xlu0 %v2333, 64
        %v2933 = vpop.permute.xlu0 %2932
        %2934 = vrot.lane.b32.xlu0 %v2339, 64
        %v2935 = vpop.permute.xlu0 %2934
        %v2939 = vsel %vm2422, %v2931, 0
        %2941 = vmatprep.subr.mxu0 0.0
        %2942 = vmatpush1.msra.mxu0 %v2933
        %2943 = vmatprep.subr.mxu0 0.0
        %2944 = vmatpush1.msra.mxu0 %v2935
        %2945 = vmatprep.subr.mxu0 0.0
        %2946 = vmatpush1.msra.mxu0 0.0
        %2947 = vmatprep.subr.mxu0 0.0
        %2948 = vmatpush1.msra.mxu0 0.0
        %2949 = vmatprep.subr.mxu0 0.0
        %2950 = vmatpush1.msra.mxu0 0.0
        %2951 = vmatprep.subr.mxu0 0.0
        %2952 = vmatpush1.msra.mxu0 0.0
        %2953 = vmatprep.subr.mxu0 0.0
        %2954 = vmatpush1.msra.mxu0 0.0
        %2955 = vmatprep.subr.mxu0 0.0
        %2956 = vmatpush1.msra.mxu0 0.0
        %2957 = vmatprep.subr.mxu0 0.0
        %2958 = vmatpush1.msra.mxu0 0.0
        %2959 = vmatprep.subr.mxu0 0.0
        %2960 = vmatpush1.msra.mxu0 0.0
        %2961 = vmatprep.subr.mxu0 0.0
        %2962 = vmatpush1.msra.mxu0 0.0
        %2963 = vmatprep.subr.mxu0 0.0
        %2964 = vmatpush1.msra.mxu0 0.0
        %2965 = vmatprep.subr.mxu0 0.0
        %2966 = vmatpush1.msra.mxu0 0.0
        %2967 = vmatprep.subr.mxu0 0.0
        %2968 = vmatpush1.msra.mxu0 0.0
        %2969 = vmatprep.subr.mxu0 0.0
        %2970 = vmatpush1.msra.mxu0 0.0
        %2971 = vmatprep.subr.mxu0 0.0
        %2972 = vmatpush1.msra.mxu0 0.0
        %2973 = vmatprep.subr.mxu0 0.0
        %2974 = vmatpush1.msra.mxu0 0.0
        %2975 = vmatprep.subr.mxu0 0.0
        %2976 = vmatpush1.msra.mxu0 0.0
        %2977 = vmatprep.subr.mxu0 0.0
        %2978 = vmatpush1.msra.mxu0 0.0
        %2979 = vmatprep.subr.mxu0 0.0
        %2980 = vmatpush1.msra.mxu0 0.0
        %2981 = vmatprep.subr.mxu0 0.0
        %2982 = vmatpush1.msra.mxu0 0.0
        %2983 = vmatprep.subr.mxu0 0.0
        %2984 = vmatpush1.msra.mxu0 0.0
        %2985 = vmatprep.subr.mxu0 0.0
        %2986 = vmatpush1.msra.mxu0 0.0
        %2987 = vmatprep.subr.mxu0 0.0
        %2988 = vmatpush1.msra.mxu0 0.0
        %2989 = vmatprep.subr.mxu0 0.0
        %2990 = vmatpush1.msra.mxu0 0.0
        %2991 = vmatprep.subr.mxu0 0.0
        %2992 = vmatpush1.msra.mxu0 0.0
        %2993 = vmatprep.subr.mxu0 0.0
        %2994 = vmatpush1.msra.mxu0 0.0
        %2995 = vmatprep.subr.mxu0 0.0
        %2996 = vmatpush1.msra.mxu0 0.0
        %2997 = vmatprep.subr.mxu0 0.0
        %2998 = vmatpush1.msra.mxu0 0.0
        %2999 = vmatprep.subr.mxu0 0.0
        %3000 = vmatpush1.msra.mxu0 0.0
        %3001 = vmatprep.subr.mxu0 0.0
        %3002 = vmatpush1.msra.mxu0 0.0
        %3003 = vmatprep.subr.mxu0 0.0
        %3004 = vmatpush1.msra.mxu0 0.0
        %3005 = vmatprep.mubr.f32.mxu0 0.0
        %3006 = vmatmul.mubr.f32.gmra.mrb[0].mxu0 %v2939
        %v3007 = vpop.f32.mrb[0].mxu0
        %v3008 = vadd.f32 0.0, %v3007
        %v3009 = vpop.f32.mrb[0].mxu0
        %3010 = vdwg.mxu0
        %v3011 = vld [vmem:[#allocation16 + $0x40] sm:$0xff]
        %v3012 = vld [vmem:[#allocation16 + $0x48] sm:$0xff]
        %v3013 = vld [vmem:[#allocation16 + $0x50] sm:$0xff]
        %v3014 = vld [vmem:[#allocation16 + $0x58] sm:$0xff]
        %v3016 = vsel %vm1105, %v3008, 0
        %3018 = vmatprep.subr.mxu0 0.0
        %3019 = vmatpush1.msra.mxu0 %v3011
        %3020 = vmatprep.subr.mxu0 0.0
        %3021 = vmatpush1.msra.mxu0 %v3012
        %3022 = vmatprep.subr.mxu0 0.0
        %3023 = vmatpush1.msra.mxu0 %v3013
        %3024 = vmatprep.subr.mxu0 0.0
        %3025 = vmatpush1.msra.mxu0 %v3014
        %3026 = vmatprep.subr.mxu0 0.0
        %3027 = vmatpush1.msra.mxu0 0.0
        %3028 = vmatprep.subr.mxu0 0.0
        %3029 = vmatpush1.msra.mxu0 0.0
        %3030 = vmatprep.subr.mxu0 0.0
        %3031 = vmatpush1.msra.mxu0 0.0
        %3032 = vmatprep.subr.mxu0 0.0
        %3033 = vmatpush1.msra.mxu0 0.0
        %3034 = vmatprep.subr.mxu0 0.0
        %3035 = vmatpush1.msra.mxu0 0.0
        %3036 = vmatprep.subr.mxu0 0.0
        %3037 = vmatpush1.msra.mxu0 0.0
        %3038 = vmatprep.subr.mxu0 0.0
        %3039 = vmatpush1.msra.mxu0 0.0
        %3040 = vmatprep.subr.mxu0 0.0
        %3041 = vmatpush1.msra.mxu0 0.0
        %3042 = vmatprep.subr.mxu0 0.0
        %3043 = vmatpush1.msra.mxu0 0.0
        %3044 = vmatprep.subr.mxu0 0.0
        %3045 = vmatpush1.msra.mxu0 0.0
        %3046 = vmatprep.subr.mxu0 0.0
        %3047 = vmatpush1.msra.mxu0 0.0
        %3048 = vmatprep.subr.mxu0 0.0
        %3049 = vmatpush1.msra.mxu0 0.0
        %3050 = vmatprep.subr.mxu0 0.0
        %3051 = vmatpush1.msra.mxu0 0.0
        %3052 = vmatprep.subr.mxu0 0.0
        %3053 = vmatpush1.msra.mxu0 0.0
        %3054 = vmatprep.subr.mxu0 0.0
        %3055 = vmatpush1.msra.mxu0 0.0
        %3056 = vmatprep.subr.mxu0 0.0
        %3057 = vmatpush1.msra.mxu0 0.0
        %3058 = vmatprep.subr.mxu0 0.0
        %3059 = vmatpush1.msra.mxu0 0.0
        %3060 = vmatprep.subr.mxu0 0.0
        %3061 = vmatpush1.msra.mxu0 0.0
        %3062 = vmatprep.subr.mxu0 0.0
        %3063 = vmatpush1.msra.mxu0 0.0
        %3064 = vmatprep.subr.mxu0 0.0
        %3065 = vmatpush1.msra.mxu0 0.0
        %3066 = vmatprep.subr.mxu0 0.0
        %3067 = vmatpush1.msra.mxu0 0.0
        %3068 = vmatprep.subr.mxu0 0.0
        %3069 = vmatpush1.msra.mxu0 0.0
        %3070 = vmatprep.subr.mxu0 0.0
        %3071 = vmatpush1.msra.mxu0 0.0
        %3072 = vmatprep.subr.mxu0 0.0
        %3073 = vmatpush1.msra.mxu0 0.0
        %3074 = vmatprep.subr.mxu0 0.0
        %3075 = vmatpush1.msra.mxu0 0.0
        %3076 = vmatprep.subr.mxu0 0.0
        %3077 = vmatpush1.msra.mxu0 0.0
        %3078 = vmatprep.subr.mxu0 0.0
        %3079 = vmatpush1.msra.mxu0 0.0
        %3080 = vmatprep.subr.mxu0 0.0
        %3081 = vmatpush1.msra.mxu0 0.0
        %3082 = vmatprep.mubr.f32.mxu0 0.0
        %3083 = vmatmul.mubr.f32.gmra.mrb[0].mxu0 %v3016
        %v3084 = vpop.f32.mrb[0].mxu0
        %v3085 = vadd.f32 0.0, %v3084
        %v3086 = vpop.f32.mrb[0].mxu0
        %3087 = vdwg.mxu0
        %v3088 = vadd.f32 %v2834, %v3085
        %3089 = vrot.lane.b32.xlu0 %v2217, 32
        %v3090 = vpop.permute.xlu0 %3089
        %3091 = vrot.lane.b32.xlu0 %v2331, 32
        %v3092 = vpop.permute.xlu0 %3091
        %3093 = vrot.lane.b32.xlu0 %v2337, 32
        %v3094 = vpop.permute.xlu0 %3093
        %v3095 = vsel %vm1105, %v3090, 0
        %v3097 = vsel %vm1105, %v3092, 0
        %v3099 = vsel %vm1105, %v3094, 0
        %3101 = vmatprep.subr.mxu0 0.0
        %3102 = vmatpush1.xpose.msra.mxu0 %v3097
        %3103 = vmatprep.subr.mxu0 0.0
        %3104 = vmatpush1.xpose.msra.mxu0 %v3099
        %3105 = vmatprep.subr.mxu0 0.0
        %3106 = vmatpush1.xpose.msra.mxu0 0.0
        %3107 = vmatprep.subr.mxu0 0.0
        %3108 = vmatpush1.xpose.msra.mxu0 0.0
        %3109 = vmatprep.subr.mxu0 0.0
        %3110 = vmatpush1.xpose.msra.mxu0 0.0
        %3111 = vmatprep.subr.mxu0 0.0
        %3112 = vmatpush1.xpose.msra.mxu0 0.0
        %3113 = vmatprep.subr.mxu0 0.0
        %3114 = vmatpush1.xpose.msra.mxu0 0.0
        %3115 = vmatprep.subr.mxu0 0.0
        %3116 = vmatpush1.xpose.msra.mxu0 0.0
        %3117 = vmatprep.subr.mxu0 0.0
        %3118 = vmatpush1.xpose.msra.mxu0 0.0
        %3119 = vmatprep.subr.mxu0 0.0
        %3120 = vmatpush1.xpose.msra.mxu0 0.0
        %3121 = vmatprep.subr.mxu0 0.0
        %3122 = vmatpush1.xpose.msra.mxu0 0.0
        %3123 = vmatprep.subr.mxu0 0.0
        %3124 = vmatpush1.xpose.msra.mxu0 0.0
        %3125 = vmatprep.subr.mxu0 0.0
        %3126 = vmatpush1.xpose.msra.mxu0 0.0
        %3127 = vmatprep.subr.mxu0 0.0
        %3128 = vmatpush1.xpose.msra.mxu0 0.0
        %3129 = vmatprep.subr.mxu0 0.0
        %3130 = vmatpush1.xpose.msra.mxu0 0.0
        %3131 = vmatprep.subr.mxu0 0.0
        %3132 = vmatpush1.xpose.msra.mxu0 0.0
        %3133 = vmatprep.subr.mxu0 0.0
        %3134 = vmatpush1.xpose.msra.mxu0 0.0
        %3135 = vmatprep.subr.mxu0 0.0
        %3136 = vmatpush1.xpose.msra.mxu0 0.0
        %3137 = vmatprep.subr.mxu0 0.0
        %3138 = vmatpush1.xpose.msra.mxu0 0.0
        %3139 = vmatprep.subr.mxu0 0.0
        %3140 = vmatpush1.xpose.msra.mxu0 0.0
        %3141 = vmatprep.subr.mxu0 0.0
        %3142 = vmatpush1.xpose.msra.mxu0 0.0
        %3143 = vmatprep.subr.mxu0 0.0
        %3144 = vmatpush1.xpose.msra.mxu0 0.0
        %3145 = vmatprep.subr.mxu0 0.0
        %3146 = vmatpush1.xpose.msra.mxu0 0.0
        %3147 = vmatprep.subr.mxu0 0.0
        %3148 = vmatpush1.xpose.msra.mxu0 0.0
        %3149 = vmatprep.subr.mxu0 0.0
        %3150 = vmatpush1.xpose.msra.mxu0 0.0
        %3151 = vmatprep.subr.mxu0 0.0
        %3152 = vmatpush1.xpose.msra.mxu0 0.0
        %3153 = vmatprep.subr.mxu0 0.0
        %3154 = vmatpush1.xpose.msra.mxu0 0.0
        %3155 = vmatprep.subr.mxu0 0.0
        %3156 = vmatpush1.xpose.msra.mxu0 0.0
        %3157 = vmatprep.subr.mxu0 0.0
        %3158 = vmatpush1.xpose.msra.mxu0 0.0
        %3159 = vmatprep.subr.mxu0 0.0
        %3160 = vmatpush1.xpose.msra.mxu0 0.0
        %3161 = vmatprep.subr.mxu0 0.0
        %3162 = vmatpush1.xpose.msra.mxu0 0.0
        %3163 = vmatprep.subr.mxu0 0.0
        %3164 = vmatpush1.xpose.msra.mxu0 0.0
        %3165 = vmatprep.mubr.f32.mxu0 0.0
        %3166 = vmatmul.mubr.f32.gmra.mrb[0].mxu0 %v3095
        %v3167 = vpop.f32.mrb[0].mxu0
        %v3168 = vadd.f32 0.0, %v3167
        %v3169 = vpop.f32.mrb[0].mxu0
        %3170 = vdwg.mxu0
        %v3171 = vmul.f32 %v3168, 0.17677669
        %v3172 = vadd.f32 %v3171, %v861
        %v3173 = vsel %vm2422, %v3172, -inf
        %3174 = vmax.xlane.f32.xlu0 %v3173
        %v3175 = vpop.xlane.xlu0 %3174
        %v3176 = vsub.f32 %v3172, %v3175
        %v3177 = vmul.f32 %v3176, 1.442695
        %v3178 = vpow.pop %v3177
        %v3179 = vsel %vm2422, %v3178, 0.0
        %3180 = vadd.xlane.f32.xlu0 %v3179
        %v3181 = vpop.xlane.xlu0 %3180
        %v3182 = vrcp.pop %v3181
        %v3183 = vmul.f32 %v3178, %v3182
        %3184 = vrot.lane.b32.xlu0 %v2333, 32
        %v3185 = vpop.permute.xlu0 %3184
        %3186 = vrot.lane.b32.xlu0 %v2339, 32
        %v3187 = vpop.permute.xlu0 %3186
        %v3191 = vsel %vm2422, %v3183, 0
        %3193 = vmatprep.subr.mxu0 0.0
        %3194 = vmatpush1.msra.mxu0 %v3185
        %3195 = vmatprep.subr.mxu0 0.0
        %3196 = vmatpush1.msra.mxu0 %v3187
        %3197 = vmatprep.subr.mxu0 0.0
        %3198 = vmatpush1.msra.mxu0 0.0
        %3199 = vmatprep.subr.mxu0 0.0
        %3200 = vmatpush1.msra.mxu0 0.0
        %3201 = vmatprep.subr.mxu0 0.0
        %3202 = vmatpush1.msra.mxu0 0.0
        %3203 = vmatprep.subr.mxu0 0.0
        %3204 = vmatpush1.msra.mxu0 0.0
        %3205 = vmatprep.subr.mxu0 0.0
        %3206 = vmatpush1.msra.mxu0 0.0
        %3207 = vmatprep.subr.mxu0 0.0
        %3208 = vmatpush1.msra.mxu0 0.0
        %3209 = vmatprep.subr.mxu0 0.0
        %3210 = vmatpush1.msra.mxu0 0.0
        %3211 = vmatprep.subr.mxu0 0.0
        %3212 = vmatpush1.msra.mxu0 0.0
        %3213 = vmatprep.subr.mxu0 0.0
        %3214 = vmatpush1.msra.mxu0 0.0
        %3215 = vmatprep.subr.mxu0 0.0
        %3216 = vmatpush1.msra.mxu0 0.0
        %3217 = vmatprep.subr.mxu0 0.0
        %3218 = vmatpush1.msra.mxu0 0.0
        %3219 = vmatprep.subr.mxu0 0.0
        %3220 = vmatpush1.msra.mxu0 0.0
        %3221 = vmatprep.subr.mxu0 0.0
        %3222 = vmatpush1.msra.mxu0 0.0
        %3223 = vmatprep.subr.mxu0 0.0
        %3224 = vmatpush1.msra.mxu0 0.0
        %3225 = vmatprep.subr.mxu0 0.0
        %3226 = vmatpush1.msra.mxu0 0.0
        %3227 = vmatprep.subr.mxu0 0.0
        %3228 = vmatpush1.msra.mxu0 0.0
        %3229 = vmatprep.subr.mxu0 0.0
        %3230 = vmatpush1.msra.mxu0 0.0
        %3231 = vmatprep.subr.mxu0 0.0
        %3232 = vmatpush1.msra.mxu0 0.0
        %3233 = vmatprep.subr.mxu0 0.0
        %3234 = vmatpush1.msra.mxu0 0.0
        %3235 = vmatprep.subr.mxu0 0.0
        %3236 = vmatpush1.msra.mxu0 0.0
        %3237 = vmatprep.subr.mxu0 0.0
        %3238 = vmatpush1.msra.mxu0 0.0
        %3239 = vmatprep.subr.mxu0 0.0
        %3240 = vmatpush1.msra.mxu0 0.0
        %3241 = vmatprep.subr.mxu0 0.0
        %3242 = vmatpush1.msra.mxu0 0.0
        %3243 = vmatprep.subr.mxu0 0.0
        %3244 = vmatpush1.msra.mxu0 0.0
        %3245 = vmatprep.subr.mxu0 0.0
        %3246 = vmatpush1.msra.mxu0 0.0
        %3247 = vmatprep.subr.mxu0 0.0
        %3248 = vmatpush1.msra.mxu0 0.0
        %3249 = vmatprep.subr.mxu0 0.0
        %3250 = vmatpush1.msra.mxu0 0.0
        %3251 = vmatprep.subr.mxu0 0.0
        %3252 = vmatpush1.msra.mxu0 0.0
        %3253 = vmatprep.subr.mxu0 0.0
        %3254 = vmatpush1.msra.mxu0 0.0
        %3255 = vmatprep.subr.mxu0 0.0
        %3256 = vmatpush1.msra.mxu0 0.0
        %3257 = vmatprep.mubr.f32.mxu0 0.0
        %3258 = vmatmul.mubr.f32.gmra.mrb[0].mxu0 %v3191
        %v3259 = vpop.f32.mrb[0].mxu0
        %v3260 = vadd.f32 0.0, %v3259
        %v3261 = vpop.f32.mrb[0].mxu0
        %3262 = vdwg.mxu0
        %v3263 = vld [vmem:[#allocation16 + $0x60] sm:$0xff]
        %v3264 = vld [vmem:[#allocation16 + $0x68] sm:$0xff]
        %v3265 = vld [vmem:[#allocation16 + $0x70] sm:$0xff]
        %v3266 = vld [vmem:[#allocation16 + $0x78] sm:$0xff]
        %v3268 = vsel %vm1105, %v3260, 0
        %3270 = vmatprep.subr.mxu0 0.0
        %3271 = vmatpush1.msra.mxu0 %v3263
        %3272 = vmatprep.subr.mxu0 0.0
        %3273 = vmatpush1.msra.mxu0 %v3264
        %3274 = vmatprep.subr.mxu0 0.0
        %3275 = vmatpush1.msra.mxu0 %v3265
        %3276 = vmatprep.subr.mxu0 0.0
        %3277 = vmatpush1.msra.mxu0 %v3266
        %3278 = vmatprep.subr.mxu0 0.0
        %3279 = vmatpush1.msra.mxu0 0.0
        %3280 = vmatprep.subr.mxu0 0.0
        %3281 = vmatpush1.msra.mxu0 0.0
        %3282 = vmatprep.subr.mxu0 0.0
        %3283 = vmatpush1.msra.mxu0 0.0
        %3284 = vmatprep.subr.mxu0 0.0
        %3285 = vmatpush1.msra.mxu0 0.0
        %3286 = vmatprep.subr.mxu0 0.0
        %3287 = vmatpush1.msra.mxu0 0.0
        %3288 = vmatprep.subr.mxu0 0.0
        %3289 = vmatpush1.msra.mxu0 0.0
        %3290 = vmatprep.subr.mxu0 0.0
        %3291 = vmatpush1.msra.mxu0 0.0
        %3292 = vmatprep.subr.mxu0 0.0
        %3293 = vmatpush1.msra.mxu0 0.0
        %3294 = vmatprep.subr.mxu0 0.0
        %3295 = vmatpush1.msra.mxu0 0.0
        %3296 = vmatprep.subr.mxu0 0.0
        %3297 = vmatpush1.msra.mxu0 0.0
        %3298 = vmatprep.subr.mxu0 0.0
        %3299 = vmatpush1.msra.mxu0 0.0
        %3300 = vmatprep.subr.mxu0 0.0
        %3301 = vmatpush1.msra.mxu0 0.0
        %3302 = vmatprep.subr.mxu0 0.0
        %3303 = vmatpush1.msra.mxu0 0.0
        %3304 = vmatprep.subr.mxu0 0.0
        %3305 = vmatpush1.msra.mxu0 0.0
        %3306 = vmatprep.subr.mxu0 0.0
        %3307 = vmatpush1.msra.mxu0 0.0
        %3308 = vmatprep.subr.mxu0 0.0
        %3309 = vmatpush1.msra.mxu0 0.0
        %3310 = vmatprep.subr.mxu0 0.0
        %3311 = vmatpush1.msra.mxu0 0.0
        %3312 = vmatprep.subr.mxu0 0.0
        %3313 = vmatpush1.msra.mxu0 0.0
        %3314 = vmatprep.subr.mxu0 0.0
        %3315 = vmatpush1.msra.mxu0 0.0
        %3316 = vmatprep.subr.mxu0 0.0
        %3317 = vmatpush1.msra.mxu0 0.0
        %3318 = vmatprep.subr.mxu0 0.0
        %3319 = vmatpush1.msra.mxu0 0.0
        %3320 = vmatprep.subr.mxu0 0.0
        %3321 = vmatpush1.msra.mxu0 0.0
        %3322 = vmatprep.subr.mxu0 0.0
        %3323 = vmatpush1.msra.mxu0 0.0
        %3324 = vmatprep.subr.mxu0 0.0
        %3325 = vmatpush1.msra.mxu0 0.0
        %3326 = vmatprep.subr.mxu0 0.0
        %3327 = vmatpush1.msra.mxu0 0.0
        %3328 = vmatprep.subr.mxu0 0.0
        %3329 = vmatpush1.msra.mxu0 0.0
        %3330 = vmatprep.subr.mxu0 0.0
        %3331 = vmatpush1.msra.mxu0 0.0
        %3332 = vmatprep.subr.mxu0 0.0
        %3333 = vmatpush1.msra.mxu0 0.0
        %3334 = vmatprep.mubr.f32.mxu0 0.0
        %3335 = vmatmul.mubr.f32.gmra.mrb[0].mxu0 %v3268
        %v3336 = vpop.f32.mrb[0].mxu0
        %v3337 = vadd.f32 0.0, %v3336
        %v3338 = vpop.f32.mrb[0].mxu0
        %3339 = vdwg.mxu0
        %v3340 = vadd.f32 %v3088, %v3337
        %v3341 = vld [vmem:[%s15] sm:$0x1]
        %v3343 = vlaneseq
        %v3344 = vshrl.u32 %v3343, 7
        %v3345 = vsub.s32 0, %v3344
        %v3346 = vrot.slane %v3341, %v3345
        %v3348 = vadd.f32 %v3340, %v3346
        %v3349 = vadd.f32 %v2089, %v3348
        %3350 = vadd.xlane.f32.xlu0 %v3349
        %v3351 = vpop.xlane.xlu0 %3350
        %v3352 = vmul.f32 %v3351, %v864
        %v3353 = vsub.f32 %v3349, %v3352
        %v3354 = vmul.f32 %v3353, %v3353
        %3355 = vadd.xlane.f32.xlu0 %v3354
        %v3356 = vpop.xlane.xlu0 %3355
        %v3357 = vmul.f32 %v3356, %v870
        %v3358 = vrsqrt.pop %v3357
        %v3359 = vmul.f32 %v3357, %v3358
        %vm3360 = vcmp.eq.f32.partialorder %v3357, inf
        %v3361 = vsel %vm3360, %v3357, %v3359
        %vm3362 = vcmp.eq.f32.partialorder %v3357, 0.0
        %v3363 = vand.u32 %v3357, 2147483648
        %v3364 = vsel %vm3362, %v3363, %v3361
        %v3365 = vadd.f32 %v3364, 1e-06
        %v3366 = vrcp.pop %v3365
        %v3367 = vmul.f32 1.0, %v3366
        %s3368 = scalar_lea.vmem %s4, 2
        %v3369 = vld [vmem:[%s3368] sm:$0x1]
        %v3370 = vmul.f32 %v3353, %v3367
        %v3372 = vlaneseq
        %v3373 = vshrl.u32 %v3372, 7
        %v3374 = vsub.s32 0, %v3373
        %v3375 = vrot.slane %v3369, %v3374
        %v3377 = vmul.f32 %v3375, %v3370
        %s3378 = scalar_lea.vmem %s5, 2
        %v3379 = vld [vmem:[%s3378] sm:$0x1]
        %v3381 = vlaneseq
        %v3382 = vshrl.u32 %v3381, 7
        %v3383 = vsub.s32 0, %v3382
        %v3384 = vrot.slane %v3379, %v3383
        %v3386 = vadd.f32 %v3377, %v3384
        %v3387 = vld [vmem:[#allocation17] sm:$0xff]
        %v3388 = vld [vmem:[#allocation17 + $0x8] sm:$0xff]
        %v3389 = vld [vmem:[#allocation17 + $0x10] sm:$0xff]
        %v3390 = vld [vmem:[#allocation17 + $0x18] sm:$0xff]
        %v3391 = vld [vmem:[#allocation17 + $0x20] sm:$0xff]
        %v3392 = vld [vmem:[#allocation17 + $0x28] sm:$0xff]
        %v3393 = vld [vmem:[#allocation17 + $0x30] sm:$0xff]
        %v3394 = vld [vmem:[#allocation17 + $0x38] sm:$0xff]
        %v3395 = vld [vmem:[#allocation17 + $0x40] sm:$0xff]
        %v3396 = vld [vmem:[#allocation17 + $0x48] sm:$0xff]
        %v3397 = vld [vmem:[#allocation17 + $0x50] sm:$0xff]
        %v3398 = vld [vmem:[#allocation17 + $0x58] sm:$0xff]
        %v3399 = vld [vmem:[#allocation17 + $0x60] sm:$0xff]
        %v3400 = vld [vmem:[#allocation17 + $0x68] sm:$0xff]
        %v3401 = vld [vmem:[#allocation17 + $0x70] sm:$0xff]
        %v3402 = vld [vmem:[#allocation17 + $0x78] sm:$0xff]
        %v3403 = vld [vmem:[#allocation17 + $0x80] sm:$0xff]
        %v3404 = vld [vmem:[#allocation17 + $0x88] sm:$0xff]
        %v3405 = vld [vmem:[#allocation17 + $0x90] sm:$0xff]
        %v3406 = vld [vmem:[#allocation17 + $0x98] sm:$0xff]
        %v3407 = vld [vmem:[#allocation17 + $0xa0] sm:$0xff]
        %v3408 = vld [vmem:[#allocation17 + $0xa8] sm:$0xff]
        %v3409 = vld [vmem:[#allocation17 + $0xb0] sm:$0xff]
        %v3410 = vld [vmem:[#allocation17 + $0xb8] sm:$0xff]
        %v3411 = vld [vmem:[#allocation17 + $0xc0] sm:$0xff]
        %v3412 = vld [vmem:[#allocation17 + $0xc8] sm:$0xff]
        %v3413 = vld [vmem:[#allocation17 + $0xd0] sm:$0xff]
        %v3414 = vld [vmem:[#allocation17 + $0xd8] sm:$0xff]
        %v3415 = vld [vmem:[#allocation17 + $0xe0] sm:$0xff]
        %v3416 = vld [vmem:[#allocation17 + $0xe8] sm:$0xff]
        %v3417 = vld [vmem:[#allocation17 + $0xf0] sm:$0xff]
        %v3418 = vld [vmem:[#allocation17 + $0xf8] sm:$0xff]
        %v3419 = vld [vmem:[%s17] sm:$0x3]
        %v3421 = vlaneseq
        %v3422 = vshrl.u32 %v3421, 7
        %v3423 = vsub.s32 0, %v3422
        %v3424 = vrot.slane %v3419, %v3423
        %v3425 = vlaneseq
        %v3426 = vshrl.u32 %v3425, 7
        %v3427 = vsub.s32 1, %v3426
        %v3428 = vrot.slane %v3419, %v3427
        %3431 = vmatprep.subr.mxu0 %v3388
        %3432 = vmatpush1.msra.mxu0 %v3387
        %3433 = vmatprep.subr.mxu0 %v3390
        %3434 = vmatpush1.msra.mxu0 %v3389
        %3435 = vmatprep.subr.mxu0 %v3392
        %3436 = vmatpush1.msra.mxu0 %v3391
        %3437 = vmatprep.subr.mxu0 %v3394
        %3438 = vmatpush1.msra.mxu0 %v3393
        %3439 = vmatprep.subr.mxu0 %v3396
        %3440 = vmatpush1.msra.mxu0 %v3395
        %3441 = vmatprep.subr.mxu0 %v3398
        %3442 = vmatpush1.msra.mxu0 %v3397
        %3443 = vmatprep.subr.mxu0 %v3400
        %3444 = vmatpush1.msra.mxu0 %v3399
        %3445 = vmatprep.subr.mxu0 %v3402
        %3446 = vmatpush1.msra.mxu0 %v3401
        %3447 = vmatprep.subr.mxu0 %v3404
        %3448 = vmatpush1.msra.mxu0 %v3403
        %3449 = vmatprep.subr.mxu0 %v3406
        %3450 = vmatpush1.msra.mxu0 %v3405
        %3451 = vmatprep.subr.mxu0 %v3408
        %3452 = vmatpush1.msra.mxu0 %v3407
        %3453 = vmatprep.subr.mxu0 %v3410
        %3454 = vmatpush1.msra.mxu0 %v3409
        %3455 = vmatprep.subr.mxu0 %v3412
        %3456 = vmatpush1.msra.mxu0 %v3411
        %3457 = vmatprep.subr.mxu0 %v3414
        %3458 = vmatpush1.msra.mxu0 %v3413
        %3459 = vmatprep.subr.mxu0 %v3416
        %3460 = vmatpush1.msra.mxu0 %v3415
        %3461 = vmatprep.subr.mxu0 %v3418
        %3462 = vmatpush1.msra.mxu0 %v3417
        %3463 = vmatprep.subr.mxu0 0.0
        %3464 = vmatpush1.msra.mxu0 0.0
        %3465 = vmatprep.subr.mxu0 0.0
        %3466 = vmatpush1.msra.mxu0 0.0
        %3467 = vmatprep.subr.mxu0 0.0
        %3468 = vmatpush1.msra.mxu0 0.0
        %3469 = vmatprep.subr.mxu0 0.0
        %3470 = vmatpush1.msra.mxu0 0.0
        %3471 = vmatprep.subr.mxu0 0.0
        %3472 = vmatpush1.msra.mxu0 0.0
        %3473 = vmatprep.subr.mxu0 0.0
        %3474 = vmatpush1.msra.mxu0 0.0
        %3475 = vmatprep.subr.mxu0 0.0
        %3476 = vmatpush1.msra.mxu0 0.0
        %3477 = vmatprep.subr.mxu0 0.0
        %3478 = vmatpush1.msra.mxu0 0.0
        %3479 = vmatprep.subr.mxu0 0.0
        %3480 = vmatpush1.msra.mxu0 0.0
        %3481 = vmatprep.subr.mxu0 0.0
        %3482 = vmatpush1.msra.mxu0 0.0
        %3483 = vmatprep.subr.mxu0 0.0
        %3484 = vmatpush1.msra.mxu0 0.0
        %3485 = vmatprep.subr.mxu0 0.0
        %3486 = vmatpush1.msra.mxu0 0.0
        %3487 = vmatprep.subr.mxu0 0.0
        %3488 = vmatpush1.msra.mxu0 0.0
        %3489 = vmatprep.subr.mxu0 0.0
        %3490 = vmatpush1.msra.mxu0 0.0
        %3491 = vmatprep.subr.mxu0 0.0
        %3492 = vmatpush1.msra.mxu0 0.0
        %3493 = vmatprep.subr.mxu0 0.0
        %3494 = vmatpush1.msra.mxu0 0.0
        %3495 = vmatprep.mubr.f32.mxu0 0.0
        %3496 = vmatmul.mubr.f32.gmra.mrb[0].mxu0 %v3386
        %v3497 = vpop.f32.mrb[0].mxu0
        %v3498 = vadd.f32 %v3424, %v3497
        %v3499 = vpop.f32.mrb[0].mxu0
        %v3500 = vadd.f32 %v3428, %v3499
        %3501 = vdwg.mxu0
        %v3502 = vmax.f32 %v3498, 0.0
        %v3503 = vmax.f32 %v3500, 0.0
        %v3504 = vld [vmem:[#allocation19] sm:$0xff]
        %v3505 = vld [vmem:[#allocation19 + $0x8] sm:$0xff]
        %v3506 = vld [vmem:[#allocation19 + $0x10] sm:$0xff]
        %v3507 = vld [vmem:[#allocation19 + $0x18] sm:$0xff]
        %v3508 = vld [vmem:[#allocation19 + $0x20] sm:$0xff]
        %v3509 = vld [vmem:[#allocation19 + $0x28] sm:$0xff]
        %v3510 = vld [vmem:[#allocation19 + $0x30] sm:$0xff]
        %v3511 = vld [vmem:[#allocation19 + $0x38] sm:$0xff]
        %v3512 = vld [vmem:[#allocation19 + $0x40] sm:$0xff]
        %v3513 = vld [vmem:[#allocation19 + $0x48] sm:$0xff]
        %v3514 = vld [vmem:[#allocation19 + $0x50] sm:$0xff]
        %v3515 = vld [vmem:[#allocation19 + $0x58] sm:$0xff]
        %v3516 = vld [vmem:[#allocation19 + $0x60] sm:$0xff]
        %v3517 = vld [vmem:[#allocation19 + $0x68] sm:$0xff]
        %v3518 = vld [vmem:[#allocation19 + $0x70] sm:$0xff]
        %v3519 = vld [vmem:[#allocation19 + $0x78] sm:$0xff]
        %v3520 = vld [vmem:[#allocation19 + $0x80] sm:$0xff]
        %v3521 = vld [vmem:[#allocation19 + $0x88] sm:$0xff]
        %v3522 = vld [vmem:[#allocation19 + $0x90] sm:$0xff]
        %v3523 = vld [vmem:[#allocation19 + $0x98] sm:$0xff]
        %v3524 = vld [vmem:[#allocation19 + $0xa0] sm:$0xff]
        %v3525 = vld [vmem:[#allocation19 + $0xa8] sm:$0xff]
        %v3526 = vld [vmem:[#allocation19 + $0xb0] sm:$0xff]
        %v3527 = vld [vmem:[#allocation19 + $0xb8] sm:$0xff]
        %v3528 = vld [vmem:[#allocation19 + $0xc0] sm:$0xff]
        %v3529 = vld [vmem:[#allocation19 + $0xc8] sm:$0xff]
        %v3530 = vld [vmem:[#allocation19 + $0xd0] sm:$0xff]
        %v3531 = vld [vmem:[#allocation19 + $0xd8] sm:$0xff]
        %v3532 = vld [vmem:[#allocation19 + $0xe0] sm:$0xff]
        %v3533 = vld [vmem:[#allocation19 + $0xe8] sm:$0xff]
        %v3534 = vld [vmem:[#allocation19 + $0xf0] sm:$0xff]
        %v3535 = vld [vmem:[#allocation19 + $0xf8] sm:$0xff]
        %3536 = vmatprep.subr.mxu0 0.0
        %3537 = vmatpush1.msra.mxu0 %v3504
        %3538 = vmatprep.subr.mxu0 0.0
        %3539 = vmatpush1.msra.mxu0 %v3505
        %3540 = vmatprep.subr.mxu0 0.0
        %3541 = vmatpush1.msra.mxu0 %v3506
        %3542 = vmatprep.subr.mxu0 0.0
        %3543 = vmatpush1.msra.mxu0 %v3507
        %3544 = vmatprep.subr.mxu0 0.0
        %3545 = vmatpush1.msra.mxu0 %v3508
        %3546 = vmatprep.subr.mxu0 0.0
        %3547 = vmatpush1.msra.mxu0 %v3509
        %3548 = vmatprep.subr.mxu0 0.0
        %3549 = vmatpush1.msra.mxu0 %v3510
        %3550 = vmatprep.subr.mxu0 0.0
        %3551 = vmatpush1.msra.mxu0 %v3511
        %3552 = vmatprep.subr.mxu0 0.0
        %3553 = vmatpush1.msra.mxu0 %v3512
        %3554 = vmatprep.subr.mxu0 0.0
        %3555 = vmatpush1.msra.mxu0 %v3513
        %3556 = vmatprep.subr.mxu0 0.0
        %3557 = vmatpush1.msra.mxu0 %v3514
        %3558 = vmatprep.subr.mxu0 0.0
        %3559 = vmatpush1.msra.mxu0 %v3515
        %3560 = vmatprep.subr.mxu0 0.0
        %3561 = vmatpush1.msra.mxu0 %v3516
        %3562 = vmatprep.subr.mxu0 0.0
        %3563 = vmatpush1.msra.mxu0 %v3517
        %3564 = vmatprep.subr.mxu0 0.0
        %3565 = vmatpush1.msra.mxu0 %v3518
        %3566 = vmatprep.subr.mxu0 0.0
        %3567 = vmatpush1.msra.mxu0 %v3519
        %3568 = vmatprep.subr.mxu0 0.0
        %3569 = vmatpush1.msra.mxu0 %v3520
        %3570 = vmatprep.subr.mxu0 0.0
        %3571 = vmatpush1.msra.mxu0 %v3521
        %3572 = vmatprep.subr.mxu0 0.0
        %3573 = vmatpush1.msra.mxu0 %v3522
        %3574 = vmatprep.subr.mxu0 0.0
        %3575 = vmatpush1.msra.mxu0 %v3523
        %3576 = vmatprep.subr.mxu0 0.0
        %3577 = vmatpush1.msra.mxu0 %v3524
        %3578 = vmatprep.subr.mxu0 0.0
        %3579 = vmatpush1.msra.mxu0 %v3525
        %3580 = vmatprep.subr.mxu0 0.0
        %3581 = vmatpush1.msra.mxu0 %v3526
        %3582 = vmatprep.subr.mxu0 0.0
        %3583 = vmatpush1.msra.mxu0 %v3527
        %3584 = vmatprep.subr.mxu0 0.0
        %3585 = vmatpush1.msra.mxu0 %v3528
        %3586 = vmatprep.subr.mxu0 0.0
        %3587 = vmatpush1.msra.mxu0 %v3529
        %3588 = vmatprep.subr.mxu0 0.0
        %3589 = vmatpush1.msra.mxu0 %v3530
        %3590 = vmatprep.subr.mxu0 0.0
        %3591 = vmatpush1.msra.mxu0 %v3531
        %3592 = vmatprep.subr.mxu0 0.0
        %3593 = vmatpush1.msra.mxu0 %v3532
        %3594 = vmatprep.subr.mxu0 0.0
        %3595 = vmatpush1.msra.mxu0 %v3533
        %3596 = vmatprep.subr.mxu0 0.0
        %3597 = vmatpush1.msra.mxu0 %v3534
        %3598 = vmatprep.subr.mxu0 0.0
        %3599 = vmatpush1.msra.mxu0 %v3535
        %3600 = vmatprep.mubr.f32.mxu0 %v3503
        %3601 = vmatmul.mubr.f32.gmra.mrb[0].mxu0 %v3502
        %v3602 = vpop.f32.mrb[0].mxu0
        %v3603 = vadd.f32 0.0, %v3602
        %v3604 = vpop.f32.mrb[0].mxu0
        %3605 = vdwg.mxu0
        %v3606 = vadd.f32 %v3349, %v3603
        %v3607 = vld [vmem:[%s19] sm:$0x1]
        %v3609 = vlaneseq
        %v3610 = vshrl.u32 %v3609, 7
        %v3611 = vsub.s32 0, %v3610
        %v3612 = vrot.slane %v3607, %v3611
        %v3614 = vadd.f32 %v3606, %v3612
        %3615 = vst [vmem:[%s856] sm:$0xff] %v3614
        %s3616 = sand.u32 %s494, 1
        %s3617 = scalar_lea.sflag [#allocation4], %s3616
        %s3618 = sand.u32 %s494, 1
        %s3619 = smul.addr %s3618, 8
        %s3620 = scalar_lea.vmem [#allocation20], %s3619
        // Predicated region
        $region145: #{tpu_custom_call.1} parent=99 // pred_check
          %p3621 = pneg %p504
        $region146: #{tpu_custom_call.1} parent=99 // pred_check_branch
          %3623 = sbr.rel (%p3621) target = $region148
        $region147: #{tpu_custom_call.1} parent=99 // pred_region
          %s3625 = ssub.s32 128, 128
          %3626 = vsyncadd %s3617, %s3625
          %s3627 = smul.addr %s46, 128
          %s3628 = scalar_lea.hbm %s20, %s3627
          %s3630 = sshll.u32 %s3620, 4
          %s3631 = int_to_ptr.vmem [resolvable:$true] %s3630
          %3633 = dma.vmem_to_hbm [thread:$0]  %s3631, 128, %s3628, %s3617
        $region148: #{tpu_custom_call.1} parent=99 // pred_fallthru
          _
      $region100: #{tpu_custom_call.1} parent=5 // pred_fallthru
        _
      %p3634 = scmp.le.s32.totalorder 2, %s41
      // Predicated region
      $region149: #{tpu_custom_call.1} parent=5 // pred_check
        %p3635 = pneg %p3634
      $region150: #{tpu_custom_call.1} parent=5 // pred_check_branch
        %3637 = sbr.rel (%p3635) target = $region152
      $region151: #{tpu_custom_call.1} parent=5 // pred_region
        %s3638 = ssub.s32 %s41, 2
        // Predicated region
        $region153: #{tpu_custom_call.1} parent=151 // pred_check
          %p3639 = pneg %p510
        $region154: #{tpu_custom_call.1} parent=151 // pred_check_branch
          %3641 = sbr.rel (%p3639) target = $region156
        $region155: #{tpu_custom_call.1} parent=151 // pred_region
          %s3642 = sand.u32 %s495, 1
          %s3643 = scalar_lea.sflag [#allocation4], %s3642
          %s3644 = sand.u32 %s495, 1
          %s3645 = smul.addr %s3644, 8
          %s3646 = scalar_lea.vmem [#allocation20], %s3645
          %3647 = dma.done %s3643, 128
        $region156: #{tpu_custom_call.1} parent=151 // pred_fallthru
          _
      $region152: #{tpu_custom_call.1} parent=5 // pred_fallthru
        _
    $region6: #{tpu_custom_call.1} parent=1 // loop_footer
      %s45 = sadd.s32 1, %s41
    $region7: #{tpu_custom_call.1} parent=1 // loop_footer_branch
      %40 = sbr.rel target = $region3
    $region8: #{tpu_custom_call.1} parent=1 // loop_exit
      _
    %3648 = vsyncpa [#allocation3], 1
    %s3649 = scalar_lea.sflag [#allocation3], 1
    %3650 = vsyncpa %s3649, 1
    %3651 = vsyncpa [#allocation6], 1
    %s3652 = scalar_lea.sflag [#allocation6], 1
    %3653 = vsyncpa %s3652, 1
    %3654 = vsyncpa [#allocation9], 1
    %s3655 = scalar_lea.sflag [#allocation9], 1
    %3656 = vsyncpa %s3655, 1
    %3657 = vsyncpa [#allocation12], 1
    %3658 = vsyncpa [#allocation15], 1
    %3659 = vsyncpa [#allocation18], 1
    %3660 = vsyncpa [#allocation4], 1
    %s3661 = scalar_lea.sflag [#allocation4], 1
    %3662 = vsyncpa %s3661, 1

</llo_original>
